<compile_context>
chip_gen: v7x
topology: tpu7x:2x2x1
jax: 0.10.0
libtpu: 0.0.40
codegen_flags: <defaults>
</compile_context>

<pallas_src>
import math

import jax
import jax.numpy as jnp
from jax import lax
from jax.experimental import pallas as pl
from jax.experimental.pallas import tpu as pltpu


LEAKY_SLOPE = 0.25     # nn.LeakyReLU(0.25)
L2NORM_EPS = 1e-8      # l2norm() eps
ATT_MASK = -1000000.0  # zero_eye diagonal value
BN_EPS = 1e-5


def _vmem_limit_bytes():
    """Generation-aware scoped-VMEM limit (v7x has only 64 MiB per TensorCore)."""
    limit = 48 * 1024 * 1024
    try:
        cap = int(pltpu.get_tpu_info().vmem_capacity_bytes)
        limit = min(limit, cap * 3 // 4)
    except Exception:
        pass
    return limit


_COMPILER_PARAMS = pltpu.CompilerParams(
    dimension_semantics=("parallel",),
    vmem_limit_bytes=_vmem_limit_bytes(),
)


def _leaky_relu(y):
    # LeakyReLU(0.25) == max(y, 0.25*y): identity for y>=0, 0.25*y for y<0.
    return jnp.maximum(y, LEAKY_SLOPE * y)


# ----------------------------------------------------------------------------
# Kernel A: per-part conv1x1 + LeakyReLU + l2norm (both part_sim & cur_sim)
# ----------------------------------------------------------------------------
def _proj_norm_kernel(x_ref, wps_ref, wcs_ref, ps_ref, cs_ref):
    x = x_ref[0].astype(jnp.bfloat16)                                   # (B, C)

    def proj(w_ref):
        y = jnp.dot(x, w_ref[0], preferred_element_type=jnp.float32)    # (B, D)
        y = _leaky_relu(y)
        norm = jnp.sqrt(jnp.sum(y * y, axis=-1, keepdims=True)) + L2NORM_EPS
        return y / norm

    ps_ref[0] = proj(wps_ref)
    cs_ref[0] = proj(wcs_ref)


def projections(emb_pbc, w_ps, w_cs):
    P, B, C = emb_pbc.shape
    D = w_ps.shape[-1]
    cost = pl.CostEstimate(
        flops=2 * (2 * P * B * C * D),
        transcendentals=2 * P * B,
        bytes_accessed=int(emb_pbc.nbytes + w_ps.nbytes + w_cs.nbytes
                           + 2 * P * B * D * 4),
    )
    return pl.pallas_call(
        _proj_norm_kernel,
        out_shape=(
            jax.ShapeDtypeStruct((P, B, D), jnp.float32),
            jax.ShapeDtypeStruct((P, B, D), jnp.float32),
        ),
        grid=(P,),
        in_specs=[
            pl.BlockSpec((1, B, C), lambda p: (p, 0, 0)),   # embedding slice
            pl.BlockSpec((1, C, D), lambda p: (p, 0, 0)),   # part_sim weight (bf16)
            pl.BlockSpec((1, C, D), lambda p: (p, 0, 0)),   # cur_sim weight (bf16)
        ],
        out_specs=(
            pl.BlockSpec((1, B, D), lambda p: (p, 0, 0)),
            pl.BlockSpec((1, B, D), lambda p: (p, 0, 0)),
        ),
        compiler_params=_COMPILER_PARAMS,
        cost_estimate=cost,
    )(emb_pbc, w_ps, w_cs)


# ----------------------------------------------------------------------------
# Kernel B: masked softmax attention over parts + re-weighting bmm (per batch)
# ----------------------------------------------------------------------------
def _attention_kernel(ps_ref, cs_ref, mask_ref, out_ref):
    ps = ps_ref[0]                                                      # (P, D) f32
    cs = cs_ref[0]                                                      # (P, D) f32
    # s[i, j] = <ps[i, :], cs[j, :]>  (== bmm(part_norm^T, cur_norm))
    s = lax.dot_general(ps, cs, (((1,), (1,)), ((), ())),
                        preferred_element_type=jnp.float32)             # (P, P)
    s = s + mask_ref[...]                                               # -1e6 on diag
    # softmax over i  (torch: F.softmax(self_att, dim=1))
    m = jnp.max(s, axis=0, keepdims=True)
    e = jnp.exp(s - m)
    att = e / jnp.sum(e, axis=0, keepdims=True)
    # out[j, d] = sum_i att[i, j] * ps[i, d]   (== bmm(part_norm, self_att))
    out_ref[0] = lax.dot_general(att, ps, (((0,), (0,)), ((), ())),
                                 preferred_element_type=jnp.float32)


def attention(ps_bpd, cs_bpd, neg_eye):
    B, P, D = ps_bpd.shape
    cost = pl.CostEstimate(
        flops=2 * B * (2 * P * P * D),
        transcendentals=B * P * P,
        bytes_accessed=int(ps_bpd.nbytes + cs_bpd.nbytes + neg_eye.nbytes
                           + B * P * D * 4),
    )
    return pl.pallas_call(
        _attention_kernel,
        out_shape=jax.ShapeDtypeStruct((B, P, D), jnp.float32),
        grid=(B,),
        in_specs=[
            pl.BlockSpec((1, P, D), lambda b: (b, 0, 0)),
            pl.BlockSpec((1, P, D), lambda b: (b, 0, 0)),
            pl.BlockSpec((P, P), lambda b: (0, 0)),
        ],
        out_specs=pl.BlockSpec((1, P, D), lambda b: (b, 0, 0)),
        compiler_params=_COMPILER_PARAMS,
        cost_estimate=cost,
    )(ps_bpd, cs_bpd, neg_eye)


# ----------------------------------------------------------------------------
# Kernel C: per-part up-dim conv (BN folded) + LeakyReLU + residual + local conv
# ----------------------------------------------------------------------------
def _updim_res_local_kernel(att_ref, emb_ref, wup_ref, bup_ref, wla_ref, out_ref):
    a = att_ref[0].astype(jnp.bfloat16)                                 # (B, D)
    up = jnp.dot(a, wup_ref[0], preferred_element_type=jnp.float32)     # (B, C)
    up = _leaky_relu(up + bup_ref[0])         # folded-BN bias + LeakyReLU(0.25)
    r = emb_ref[0] + up                       # residual with the raw embedding (f32)
    out = jnp.dot(r.astype(jnp.bfloat16), wla_ref[0],
                  preferred_element_type=jnp.float32)                   # (B, F)
    out_ref[0] = out.astype(out_ref.dtype)


def updim_residual_local(att_pbd, emb_pbc, w_up, b_up, w_la):
    P, B, D = att_pbd.shape
    C = emb_pbc.shape[-1]
    F = w_la.shape[-1]
    cost = pl.CostEstimate(
        flops=2 * P * B * (D * C + C * F),
        transcendentals=0,
        bytes_accessed=int(att_pbd.nbytes + emb_pbc.nbytes + w_up.nbytes
                           + b_up.nbytes + w_la.nbytes + P * B * F * 4),
    )
    return pl.pallas_call(
        _updim_res_local_kernel,
        out_shape=jax.ShapeDtypeStruct((P, B, F), jnp.float32),
        grid=(P,),
        in_specs=[
            pl.BlockSpec((1, B, D), lambda p: (p, 0, 0)),   # attended embedding
            pl.BlockSpec((1, B, C), lambda p: (p, 0, 0)),   # raw embedding (residual)
            pl.BlockSpec((1, D, C), lambda p: (p, 0, 0)),   # up_dim weight (bf16, BN-folded)
            pl.BlockSpec((1, 1, C), lambda p: (p, 0, 0)),   # folded BN bias (f32)
            pl.BlockSpec((1, C, F), lambda p: (p, 0, 0)),   # conv_local_att weight (bf16)
        ],
        out_specs=pl.BlockSpec((1, B, F), lambda p: (p, 0, 0)),
        compiler_params=_COMPILER_PARAMS,
        cost_estimate=cost,
    )(att_pbd, emb_pbc, w_up, b_up, w_la)


# ----------------------------------------------------------------------------
# Parameter init (deterministic, matching weights_init_kaiming in the module)
# ----------------------------------------------------------------------------
def init_params(key, *, feature_length=1024, part=8, dim_cut=8,
                up_dim=1024, local_dim=512):
    C = feature_length
    D = C // dim_cut
    k_ps, k_cs, k_up, k_la = jax.random.split(key, 4)

    def kaiming_1x1(k, p, cin, cout):
        # kaiming_normal_(mode='fan_out', nonlinearity='relu') on a 1x1 Conv2d:
        # std = sqrt(2 / (cout * 1 * 1)); stored as GEMM weight (p, cin, cout).
        std = math.sqrt(2.0 / cout)
        return std * jax.random.normal(k, (p, cin, cout), jnp.float32)

    w_ps = kaiming_1x1(k_ps, part, C, D)            # part_sim_conv[i]
    w_cs = kaiming_1x1(k_cs, part, C, D)            # cur_sim_conv[i]
    w_up = kaiming_1x1(k_up, part, D, up_dim)       # up_dim_conv[i] conv
    w_la = kaiming_1x1(k_la, part, C, local_dim)    # conv_local_att[i]

    # BatchNorm2d after up_dim conv: gamma=1, beta=0, running mean=0, var=1
    # (inference mode).  Fold the scale into the conv weight columns; keep bias.
    bn_scale = 1.0 / math.sqrt(1.0 + BN_EPS)
    w_up = w_up * bn_scale
    b_up = jnp.zeros((part, 1, up_dim), jnp.float32)

    return {
        "w_ps": w_ps.astype(jnp.bfloat16),
        "w_cs": w_cs.astype(jnp.bfloat16),
        "w_up": w_up.astype(jnp.bfloat16),
        "b_up": b_up,
        "w_la": w_la.astype(jnp.bfloat16),
        "neg_eye": ATT_MASK * jnp.eye(part, dtype=jnp.float32),
    }


# ----------------------------------------------------------------------------
# Model forward
# ----------------------------------------------------------------------------
def nonlocal_net_forward(embedding_bcp, params):
    """embedding_bcp: (B, feature_length, part) f32 -> (B, 512, part) f32."""
    B, C, P = embedding_bcp.shape
    emb_pbc = jnp.transpose(embedding_bcp, (2, 0, 1))              # (P, B, C), tiny

    # per-part projections + LeakyReLU + l2norm
    ps_pbd, cs_pbd = projections(emb_pbc, params["w_ps"], params["w_cs"])

    # attention over parts (per batch element)
    ps_bpd = jnp.transpose(ps_pbd, (1, 0, 2))                      # (B, P, D), tiny
    cs_bpd = jnp.transpose(cs_pbd, (1, 0, 2))
    att_bpd = attention(ps_bpd, cs_bpd, params["neg_eye"])         # (B, P, D)

    # per-part up-dim + BN + LeakyReLU + residual + local conv
    att_pbd = jnp.transpose(att_bpd, (1, 0, 2))                    # (P, B, D), tiny
    out_pbf = updim_residual_local(att_pbd, emb_pbc,
                                   params["w_up"], params["b_up"],
                                   params["w_la"])                 # (P, B, 512)

    # match PyTorch output layout: cat over parts in dim 2 -> (B, 512, P); the
    # trailing .squeeze() is a no-op for B>1, P>1.
    return jnp.transpose(out_pbf, (1, 2, 0))


# ----------------------------------------------------------------------------
if __name__ == "__main__":
    # feature_length=1024 is forced by the module (residual add with the
    # 1024-channel up_dim output); part/batch kept small.
    B, C, P = 2, 1024, 8
    key = jax.random.PRNGKey(0)
    k_x, k_p = jax.random.split(key)

    embedding = jax.random.normal(k_x, (B, C, P), jnp.float32)
    params = init_params(k_p, feature_length=C, part=P)

    fwd = jax.jit(nonlocal_net_forward)
    out = fwd(embedding, params)
    jax.block_until_ready(out)

    assert out.shape == (B, 512, P), out.shape
    assert bool(jnp.all(jnp.isfinite(out)))
    print("KERNEL_OK")
</pallas_src>

<mosaic_0001>
module attributes {stable_mosaic.version = 11 : i64} {
  func.func @_attention_kernel(%arg0: i32, %arg1: memref<1x8x128xf32, #tpu.memory_space<vmem>>, %arg2: memref<1x8x128xf32, #tpu.memory_space<vmem>>, %arg3: memref<8x8xf32, #tpu.memory_space<vmem>>, %arg4: memref<1x8x128xf32, #tpu.memory_space<vmem>>) attributes {dimension_semantics = [#tpu.dimension_semantics<parallel>], iteration_bounds = array<i64: 2>, scalar_prefetch = 0 : i64, scratch_operands = 0 : i64, tpu.core_type = #tpu.core_type<tc>, window_params = [{transform_indices = @transform_0, window_bounds = array<i64: 1, 8, 128>}, {transform_indices = @transform_1, window_bounds = array<i64: 1, 8, 128>}, {pipeline_mode = #tpu.pipeline_mode<synchronous>, transform_indices = @transform_2, window_bounds = array<i64: 8, 8>}, {transform_indices = @transform_3, window_bounds = array<i64: 1, 8, 128>}]} {
    %c0 = arith.constant 0 : index
    %c0_0 = arith.constant 0 : index
    %c0_1 = arith.constant 0 : index
    %0 = vector.load %arg1[%c0, %c0_0, %c0_1] : memref<1x8x128xf32, #tpu.memory_space<vmem>>, vector<1x8x128xf32>
    %1 = vector.shape_cast %0 : vector<1x8x128xf32> to vector<8x128xf32>
    %c0_2 = arith.constant 0 : index
    %c0_3 = arith.constant 0 : index
    %c0_4 = arith.constant 0 : index
    %2 = vector.load %arg2[%c0_2, %c0_3, %c0_4] : memref<1x8x128xf32, #tpu.memory_space<vmem>>, vector<1x8x128xf32>
    %3 = vector.shape_cast %2 : vector<1x8x128xf32> to vector<8x128xf32>
    %cst = arith.constant dense<0.000000e+00> : vector<8x8xf32>
    %4 = tpu.matmul %1, %3, %cst {dimension_numbers = #tpu.dot_dimension_numbers<[1], [1], [0], [0], [0, 0, 1, 0], [], []>} : vector<8x128xf32>, vector<8x128xf32>, vector<8x8xf32> -> vector<8x8xf32>
    %c0_5 = arith.constant 0 : index
    %c0_6 = arith.constant 0 : index
    %5 = vector.load %arg3[%c0_5, %c0_6] : memref<8x8xf32, #tpu.memory_space<vmem>>, vector<8x8xf32>
    %6 = arith.addf %4, %5 : vector<8x8xf32>
    %cst_7 = arith.constant dense<0xFF800000> : vector<8xf32>
    %7 = vector.multi_reduction <maximumf>, %6, %cst_7 [0] : vector<8x8xf32> to vector<8xf32>
    %8 = vector.shape_cast %7 : vector<8xf32> to vector<1x8xf32>
    %9 = vector.broadcast %8 : vector<1x8xf32> to vector<8x8xf32>
    %10 = arith.subf %6, %9 : vector<8x8xf32>
    %11 = math.exp %10 : vector<8x8xf32>
    %cst_8 = arith.constant dense<0.000000e+00> : vector<8xf32>
    %12 = vector.multi_reduction <add>, %11, %cst_8 [0] : vector<8x8xf32> to vector<8xf32>
    %13 = vector.shape_cast %12 : vector<8xf32> to vector<1x8xf32>
    %14 = vector.broadcast %13 : vector<1x8xf32> to vector<8x8xf32>
    %15 = arith.divf %11, %14 : vector<8x8xf32>
    %cst_9 = arith.constant dense<0.000000e+00> : vector<8x128xf32>
    %16 = tpu.matmul %15, %1, %cst_9 {dimension_numbers = #tpu.dot_dimension_numbers<[0], [0], [1], [1], [0, 1, 1, 1], [], []>} : vector<8x8xf32>, vector<8x128xf32>, vector<8x128xf32> -> vector<8x128xf32>
    %c0_10 = arith.constant 0 : index
    %c0_11 = arith.constant 0 : index
    %c0_12 = arith.constant 0 : index
    %17 = vector.load %arg4[%c0_10, %c0_11, %c0_12] : memref<1x8x128xf32, #tpu.memory_space<vmem>>, vector<1x8x128xf32>
    %18 = vector.shape_cast %17 : vector<1x8x128xf32> to vector<8x128xf32>
    %19 = vector.shape_cast %16 : vector<8x128xf32> to vector<1x8x128xf32>
    tpu.vector_store %arg4[%c0_10, %c0_11, %c0_12], %19 {strides = array<i32>} : memref<1x8x128xf32, #tpu.memory_space<vmem>>, vector<1x8x128xf32>,
    return
  }
  func.func @transform_0(%arg0: i32) -> (i32, i32, i32) {
    %c0_i32 = arith.constant 0 : i32
    %c0_i32_0 = arith.constant 0 : i32
    %c0_i32_1 = arith.constant 0 : i32
    return %arg0, %c0_i32, %c0_i32_0 : i32, i32, i32
  }
  func.func @transform_1(%arg0: i32) -> (i32, i32, i32) {
    %c0_i32 = arith.constant 0 : i32
    %c0_i32_0 = arith.constant 0 : i32
    %c0_i32_1 = arith.constant 0 : i32
    return %arg0, %c0_i32, %c0_i32_0 : i32, i32, i32
  }
  func.func @transform_2(%arg0: i32) -> (i32, i32) {
    %c0_i32 = arith.constant 0 : i32
    %c0_i32_0 = arith.constant 0 : i32
    %c0_i32_1 = arith.constant 0 : i32
    return %c0_i32, %c0_i32_0 : i32, i32
  }
  func.func @transform_3(%arg0: i32) -> (i32, i32, i32) {
    %c0_i32 = arith.constant 0 : i32
    %c0_i32_0 = arith.constant 0 : i32
    %c0_i32_1 = arith.constant 0 : i32
    return %arg0, %c0_i32, %c0_i32_0 : i32, i32, i32
  }
}

module attributes {stable_mosaic.version = 11 : i64} {
  func.func @_updim_res_local_kernel(%arg0: i32, %arg1: memref<1x2x128xf32, #tpu.memory_space<vmem>>, %arg2: memref<1x2x1024xf32, #tpu.memory_space<vmem>>, %arg3: memref<1x128x1024xbf16, #tpu.memory_space<vmem>>, %arg4: memref<1x1x1024xf32, #tpu.memory_space<vmem>>, %arg5: memref<1x1024x512xbf16, #tpu.memory_space<vmem>>, %arg6: memref<1x2x512xf32, #tpu.memory_space<vmem>>) attributes {dimension_semantics = [#tpu.dimension_semantics<parallel>], iteration_bounds = array<i64: 8>, scalar_prefetch = 0 : i64, scratch_operands = 0 : i64, tpu.core_type = #tpu.core_type<tc>, window_params = [{transform_indices = @transform_0, window_bounds = array<i64: 1, 2, 128>}, {transform_indices = @transform_1, window_bounds = array<i64: 1, 2, 1024>}, {transform_indices = @transform_2, window_bounds = array<i64: 1, 128, 1024>}, {transform_indices = @transform_3, window_bounds = array<i64: 1, 1, 1024>}, {transform_indices = @transform_4, window_bounds = array<i64: 1, 1024, 512>}, {transform_indices = @transform_5, window_bounds = array<i64: 1, 2, 512>}]} {
    %c0 = arith.constant 0 : index
    %c0_0 = arith.constant 0 : index
    %c0_1 = arith.constant 0 : index
    %0 = vector.load %arg1[%c0, %c0_0, %c0_1] : memref<1x2x128xf32, #tpu.memory_space<vmem>>, vector<1x2x128xf32>
    %1 = vector.shape_cast %0 : vector<1x2x128xf32> to vector<2x128xf32>
    %2 = arith.truncf %1 : vector<2x128xf32> to vector<2x128xbf16>
    %c0_2 = arith.constant 0 : index
    %c0_3 = arith.constant 0 : index
    %c0_4 = arith.constant 0 : index
    %3 = vector.load %arg3[%c0_2, %c0_3, %c0_4] : memref<1x128x1024xbf16, #tpu.memory_space<vmem>>, vector<1x128x1024xbf16>
    %4 = vector.shape_cast %3 : vector<1x128x1024xbf16> to vector<128x1024xbf16>
    %cst = arith.constant dense<0.000000e+00> : vector<2x1024xf32>
    %5 = tpu.matmul %2, %4, %cst {dimension_numbers = #tpu.dot_dimension_numbers<[1], [0], [0], [1], [0, 0, 1, 1], [], []>} : vector<2x128xbf16>, vector<128x1024xbf16>, vector<2x1024xf32> -> vector<2x1024xf32>
    %c0_5 = arith.constant 0 : index
    %c0_6 = arith.constant 0 : index
    %c0_7 = arith.constant 0 : index
    %6 = vector.load %arg4[%c0_5, %c0_6, %c0_7] : memref<1x1x1024xf32, #tpu.memory_space<vmem>>, vector<1x1x1024xf32>
    %7 = vector.shape_cast %6 : vector<1x1x1024xf32> to vector<1x1024xf32>
    %8 = vector.broadcast %7 : vector<1x1024xf32> to vector<2x1024xf32>
    %9 = arith.addf %5, %8 : vector<2x1024xf32>
    %cst_8 = arith.constant 2.500000e-01 : f32
    %10 = vector.broadcast %cst_8 : f32 to vector<2x1024xf32>
    %11 = arith.mulf %10, %9 : vector<2x1024xf32>
    %12 = arith.maximumf %9, %11 : vector<2x1024xf32>
    %c0_9 = arith.constant 0 : index
    %c0_10 = arith.constant 0 : index
    %c0_11 = arith.constant 0 : index
    %13 = vector.load %arg2[%c0_9, %c0_10, %c0_11] : memref<1x2x1024xf32, #tpu.memory_space<vmem>>, vector<1x2x1024xf32>
    %14 = vector.shape_cast %13 : vector<1x2x1024xf32> to vector<2x1024xf32>
    %15 = arith.addf %14, %12 : vector<2x1024xf32>
    %16 = arith.truncf %15 : vector<2x1024xf32> to vector<2x1024xbf16>
    %c0_12 = arith.constant 0 : index
    %c0_13 = arith.constant 0 : index
    %c0_14 = arith.constant 0 : index
    %17 = vector.load %arg5[%c0_12, %c0_13, %c0_14] : memref<1x1024x512xbf16, #tpu.memory_space<vmem>>, vector<1x1024x512xbf16>
    %18 = vector.shape_cast %17 : vector<1x1024x512xbf16> to vector<1024x512xbf16>
    %cst_15 = arith.constant dense<0.000000e+00> : vector<2x512xf32>
    %19 = tpu.matmul %16, %18, %cst_15 {dimension_numbers = #tpu.dot_dimension_numbers<[1], [0], [0], [1], [0, 0, 1, 1], [], []>} : vector<2x1024xbf16>, vector<1024x512xbf16>, vector<2x512xf32> -> vector<2x512xf32>
    %c0_16 = arith.constant 0 : index
    %c0_17 = arith.constant 0 : index
    %c0_18 = arith.constant 0 : index
    %20 = vector.load %arg6[%c0_16, %c0_17, %c0_18] : memref<1x2x512xf32, #tpu.memory_space<vmem>>, vector<1x2x512xf32>
    %21 = vector.shape_cast %20 : vector<1x2x512xf32> to vector<2x512xf32>
    %22 = vector.shape_cast %19 : vector<2x512xf32> to vector<1x2x512xf32>
    tpu.vector_store %arg6[%c0_16, %c0_17, %c0_18], %22 {strides = array<i32>} : memref<1x2x512xf32, #tpu.memory_space<vmem>>, vector<1x2x512xf32>,
    return
  }
  func.func @transform_0(%arg0: i32) -> (i32, i32, i32) {
    %c0_i32 = arith.constant 0 : i32
    %c0_i32_0 = arith.constant 0 : i32
    %c0_i32_1 = arith.constant 0 : i32
    return %arg0, %c0_i32, %c0_i32_0 : i32, i32, i32
  }
  func.func @transform_1(%arg0: i32) -> (i32, i32, i32) {
    %c0_i32 = arith.constant 0 : i32
    %c0_i32_0 = arith.constant 0 : i32
    %c0_i32_1 = arith.constant 0 : i32
    return %arg0, %c0_i32, %c0_i32_0 : i32, i32, i32
  }
  func.func @transform_2(%arg0: i32) -> (i32, i32, i32) {
    %c0_i32 = arith.constant 0 : i32
    %c0_i32_0 = arith.constant 0 : i32
    %c0_i32_1 = arith.constant 0 : i32
    return %arg0, %c0_i32, %c0_i32_0 : i32, i32, i32
  }
  func.func @transform_3(%arg0: i32) -> (i32, i32, i32) {
    %c0_i32 = arith.constant 0 : i32
    %c0_i32_0 = arith.constant 0 : i32
    %c0_i32_1 = arith.constant 0 : i32
    return %arg0, %c0_i32, %c0_i32_0 : i32, i32, i32
  }
  func.func @transform_4(%arg0: i32) -> (i32, i32, i32) {
    %c0_i32 = arith.constant 0 : i32
    %c0_i32_0 = arith.constant 0 : i32
    %c0_i32_1 = arith.constant 0 : i32
    return %arg0, %c0_i32, %c0_i32_0 : i32, i32, i32
  }
  func.func @transform_5(%arg0: i32) -> (i32, i32, i32) {
    %c0_i32 = arith.constant 0 : i32
    %c0_i32_0 = arith.constant 0 : i32
    %c0_i32_1 = arith.constant 0 : i32
    return %arg0, %c0_i32, %c0_i32_0 : i32, i32, i32
  }
}

module attributes {stable_mosaic.version = 11 : i64} {
  func.func @_proj_norm_kernel(%arg0: i32, %arg1: memref<1x2x1024xf32, #tpu.memory_space<vmem>>, %arg2: memref<1x1024x128xbf16, #tpu.memory_space<vmem>>, %arg3: memref<1x1024x128xbf16, #tpu.memory_space<vmem>>, %arg4: memref<1x2x128xf32, #tpu.memory_space<vmem>>, %arg5: memref<1x2x128xf32, #tpu.memory_space<vmem>>) attributes {dimension_semantics = [#tpu.dimension_semantics<parallel>], iteration_bounds = array<i64: 8>, scalar_prefetch = 0 : i64, scratch_operands = 0 : i64, tpu.core_type = #tpu.core_type<tc>, window_params = [{transform_indices = @transform_0, window_bounds = array<i64: 1, 2, 1024>}, {transform_indices = @transform_1, window_bounds = array<i64: 1, 1024, 128>}, {transform_indices = @transform_2, window_bounds = array<i64: 1, 1024, 128>}, {transform_indices = @transform_3, window_bounds = array<i64: 1, 2, 128>}, {transform_indices = @transform_4, window_bounds = array<i64: 1, 2, 128>}]} {
    %c0 = arith.constant 0 : index
    %c0_0 = arith.constant 0 : index
    %c0_1 = arith.constant 0 : index
    %0 = vector.load %arg1[%c0, %c0_0, %c0_1] : memref<1x2x1024xf32, #tpu.memory_space<vmem>>, vector<1x2x1024xf32>
    %1 = vector.shape_cast %0 : vector<1x2x1024xf32> to vector<2x1024xf32>
    %2 = arith.truncf %1 : vector<2x1024xf32> to vector<2x1024xbf16>
    %c0_2 = arith.constant 0 : index
    %c0_3 = arith.constant 0 : index
    %c0_4 = arith.constant 0 : index
    %3 = vector.load %arg2[%c0_2, %c0_3, %c0_4] : memref<1x1024x128xbf16, #tpu.memory_space<vmem>>, vector<1x1024x128xbf16>
    %4 = vector.shape_cast %3 : vector<1x1024x128xbf16> to vector<1024x128xbf16>
    %cst = arith.constant dense<0.000000e+00> : vector<2x128xf32>
    %5 = tpu.matmul %2, %4, %cst {dimension_numbers = #tpu.dot_dimension_numbers<[1], [0], [0], [1], [0, 0, 1, 1], [], []>} : vector<2x1024xbf16>, vector<1024x128xbf16>, vector<2x128xf32> -> vector<2x128xf32>
    %cst_5 = arith.constant 2.500000e-01 : f32
    %6 = vector.broadcast %cst_5 : f32 to vector<2x128xf32>
    %7 = arith.mulf %6, %5 : vector<2x128xf32>
    %8 = arith.maximumf %5, %7 : vector<2x128xf32>
    %9 = arith.mulf %8, %8 : vector<2x128xf32>
    %cst_6 = arith.constant dense<0.000000e+00> : vector<2xf32>
    %10 = vector.multi_reduction <add>, %9, %cst_6 [1] : vector<2x128xf32> to vector<2xf32>
    %11 = vector.shape_cast %10 : vector<2xf32> to vector<2x1xf32>
    %12 = math.sqrt %11 : vector<2x1xf32>
    %cst_7 = arith.constant 9.99999993E-9 : f32
    %13 = vector.broadcast %cst_7 : f32 to vector<2x1xf32>
    %14 = arith.addf %12, %13 : vector<2x1xf32>
    %15 = vector.broadcast %14 : vector<2x1xf32> to vector<2x128xf32>
    %16 = arith.divf %8, %15 : vector<2x128xf32>
    %c0_8 = arith.constant 0 : index
    %c0_9 = arith.constant 0 : index
    %c0_10 = arith.constant 0 : index
    %17 = vector.load %arg4[%c0_8, %c0_9, %c0_10] : memref<1x2x128xf32, #tpu.memory_space<vmem>>, vector<1x2x128xf32>
    %18 = vector.shape_cast %17 : vector<1x2x128xf32> to vector<2x128xf32>
    %19 = vector.shape_cast %16 : vector<2x128xf32> to vector<1x2x128xf32>
    tpu.vector_store %arg4[%c0_8, %c0_9, %c0_10], %19 {strides = array<i32>} : memref<1x2x128xf32, #tpu.memory_space<vmem>>, vector<1x2x128xf32>,
    %c0_11 = arith.constant 0 : index
    %c0_12 = arith.constant 0 : index
    %c0_13 = arith.constant 0 : index
    %20 = vector.load %arg3[%c0_11, %c0_12, %c0_13] : memref<1x1024x128xbf16, #tpu.memory_space<vmem>>, vector<1x1024x128xbf16>
    %21 = vector.shape_cast %20 : vector<1x1024x128xbf16> to vector<1024x128xbf16>
    %cst_14 = arith.constant dense<0.000000e+00> : vector<2x128xf32>
    %22 = tpu.matmul %2, %21, %cst_14 {dimension_numbers = #tpu.dot_dimension_numbers<[1], [0], [0], [1], [0, 0, 1, 1], [], []>} : vector<2x1024xbf16>, vector<1024x128xbf16>, vector<2x128xf32> -> vector<2x128xf32>
    %cst_15 = arith.constant 2.500000e-01 : f32
    %23 = vector.broadcast %cst_15 : f32 to vector<2x128xf32>
    %24 = arith.mulf %23, %22 : vector<2x128xf32>
    %25 = arith.maximumf %22, %24 : vector<2x128xf32>
    %26 = arith.mulf %25, %25 : vector<2x128xf32>
    %cst_16 = arith.constant dense<0.000000e+00> : vector<2xf32>
    %27 = vector.multi_reduction <add>, %26, %cst_16 [1] : vector<2x128xf32> to vector<2xf32>
    %28 = vector.shape_cast %27 : vector<2xf32> to vector<2x1xf32>
    %29 = math.sqrt %28 : vector<2x1xf32>
    %cst_17 = arith.constant 9.99999993E-9 : f32
    %30 = vector.broadcast %cst_17 : f32 to vector<2x1xf32>
    %31 = arith.addf %29, %30 : vector<2x1xf32>
    %32 = vector.broadcast %31 : vector<2x1xf32> to vector<2x128xf32>
    %33 = arith.divf %25, %32 : vector<2x128xf32>
    %c0_18 = arith.constant 0 : index
    %c0_19 = arith.constant 0 : index
    %c0_20 = arith.constant 0 : index
    %34 = vector.load %arg5[%c0_18, %c0_19, %c0_20] : memref<1x2x128xf32, #tpu.memory_space<vmem>>, vector<1x2x128xf32>
    %35 = vector.shape_cast %34 : vector<1x2x128xf32> to vector<2x128xf32>
    %36 = vector.shape_cast %33 : vector<2x128xf32> to vector<1x2x128xf32>
    tpu.vector_store %arg5[%c0_18, %c0_19, %c0_20], %36 {strides = array<i32>} : memref<1x2x128xf32, #tpu.memory_space<vmem>>, vector<1x2x128xf32>,
    return
  }
  func.func @transform_0(%arg0: i32) -> (i32, i32, i32) {
    %c0_i32 = arith.constant 0 : i32
    %c0_i32_0 = arith.constant 0 : i32
    %c0_i32_1 = arith.constant 0 : i32
    return %arg0, %c0_i32, %c0_i32_0 : i32, i32, i32
  }
  func.func @transform_1(%arg0: i32) -> (i32, i32, i32) {
    %c0_i32 = arith.constant 0 : i32
    %c0_i32_0 = arith.constant 0 : i32
    %c0_i32_1 = arith.constant 0 : i32
    return %arg0, %c0_i32, %c0_i32_0 : i32, i32, i32
  }
  func.func @transform_2(%arg0: i32) -> (i32, i32, i32) {
    %c0_i32 = arith.constant 0 : i32
    %c0_i32_0 = arith.constant 0 : i32
    %c0_i32_1 = arith.constant 0 : i32
    return %arg0, %c0_i32, %c0_i32_0 : i32, i32, i32
  }
  func.func @transform_3(%arg0: i32) -> (i32, i32, i32) {
    %c0_i32 = arith.constant 0 : i32
    %c0_i32_0 = arith.constant 0 : i32
    %c0_i32_1 = arith.constant 0 : i32
    return %arg0, %c0_i32, %c0_i32_0 : i32, i32, i32
  }
  func.func @transform_4(%arg0: i32) -> (i32, i32, i32) {
    %c0_i32 = arith.constant 0 : i32
    %c0_i32_0 = arith.constant 0 : i32
    %c0_i32_1 = arith.constant 0 : i32
    return %arg0, %c0_i32, %c0_i32_0 : i32, i32, i32
  }
}

</mosaic_0001>

<llo_original>
// kernel: nonlocal_net_forward.4
$region0: #{nonlocal_net_forward.4}
  #allocation0 [shape = 'u32[]', space=smem, size = 0x4, offset = 0x4, fixed_abs, tag = 'smem constant byte address 0x4 - core index']
  #allocation1 [shape = 'u32[144,128]{1,0:T(1,128)}', space=vmem, size = 0x12000, scoped, tag = 'internal scratch']
  %s0 = inlined_call_operand.vmem [shape: f32[2,8,128], index: 0, kind: input, shape index: {}]
  %s1 = inlined_call_operand.vmem [shape: f32[2,8,128], index: 1, kind: input, shape index: {}]
  %s2 = inlined_call_operand.vmem [shape: f32[8,8], index: 2, kind: input, shape index: {}]
  %s3 = inlined_call_operand.vmem [shape: f32[2,8,128], index: 3, kind: output, shape index: {}]
  %s4 = sld [smem:[#allocation0]]
  $region45: #{nonlocal_net_forward.4} parent=0
    _
  %s6 = ssub.s32 1, %s4
  %s7 = scalar_select 0, %s6, %s4
  loop: start=0, step=1, limit=4
  $region2: #{nonlocal_net_forward.4} parent=0 // loop_pre_header
    _
  $region3: #{nonlocal_net_forward.4} parent=0 // loop_header
    %s9 = sphi 0, %s13
    %p10 = scmp.ge.s32.totalorder %s9, 4
    %s19 = sphi 0, %s21
    %s22 = sphi 0, %s19
    %s23 = sphi 0, %s22
    %s39 = sphi 0, %s23
    %s45 = sphi 0, %s47
    %s48 = sphi 0, %s45
    %s49 = sphi 0, %s48
    %s65 = sphi 0, %s49
    %s69 = sphi 0, %s69
    %s71 = sphi 0, %s69
    %s72 = sphi 0, %s71
    %s86 = sphi 0, %s72
    %s92 = sphi 0, %s94
    %s95 = sphi 0, %s92
    %s96 = sphi 0, %s95
    %s112 = sphi 0, %s96
  $region4: #{nonlocal_net_forward.4} parent=0 // loop_header_branch
    %12 = sbr.rel (%p10) target = $region8
  $region5: #{nonlocal_net_forward.4} parent=0 // loop_body
    %s14 = ssub.s32 %s9, 1
    %s15 = ssub.s32 %s9, 2
    %s16 = sadd.s32 %s9, 1
    %s17 = ssub.s32 %s9, %s16
    %p18 = scmp.eq.s32.totalorder %s17, 0
    %s20 = sadd.s32 %s19, 1
    %s21 = scalar_select %p18, %s19, %s20
    %p24 = pneg %p18
    %p25 = scmp.eq.s32.totalorder %s9, 1
    %p26 = por %p24, %p25
    %p27 = scmp.ne.s32.totalorder %s19, %s22
    %p28 = scmp.eq.s32.totalorder %s9, 0
    %p29 = por %p27, %p28
    %p30 = scmp.ne.s32.totalorder %s19, %s22
    %p31 = scmp.eq.s32.totalorder %s14, 1
    %p32 = por %p30, %p31
    %p33 = scmp.ne.s32.totalorder %s22, %s23
    %p34 = scmp.eq.s32.totalorder %s14, 0
    %p35 = por %p33, %p34
    %p36 = scmp.ne.s32.totalorder %s22, %s23
    %p37 = scmp.eq.s32.totalorder %s15, 1
    %p38 = por %p36, %p37
    %p40 = scmp.ne.s32.totalorder %s23, %s39
    %p41 = scmp.eq.s32.totalorder %s15, 0
    %p42 = por %p40, %p41
    %s43 = ssub.s32 %s9, %s16
    %p44 = scmp.eq.s32.totalorder %s43, 0
    %s46 = sadd.s32 %s45, 1
    %s47 = scalar_select %p44, %s45, %s46
    %p50 = pneg %p44
    %p51 = scmp.eq.s32.totalorder %s9, 1
    %p52 = por %p50, %p51
    %p53 = scmp.ne.s32.totalorder %s45, %s48
    %p54 = scmp.eq.s32.totalorder %s9, 0
    %p55 = por %p53, %p54
    %p56 = scmp.ne.s32.totalorder %s45, %s48
    %p57 = scmp.eq.s32.totalorder %s14, 1
    %p58 = por %p56, %p57
    %p59 = scmp.ne.s32.totalorder %s48, %s49
    %p60 = scmp.eq.s32.totalorder %s14, 0
    %p61 = por %p59, %p60
    %p62 = scmp.ne.s32.totalorder %s48, %s49
    %p63 = scmp.eq.s32.totalorder %s15, 1
    %p64 = por %p62, %p63
    %p66 = scmp.ne.s32.totalorder %s49, %s65
    %p67 = scmp.eq.s32.totalorder %s15, 0
    %p68 = por %p66, %p67
    %s70 = sadd.s32 %s69, 1
    %p73 = scmp.eq.s32.totalorder %s9, 1
    %p74 = scmp.ne.s32.totalorder %s69, %s71
    %p75 = scmp.eq.s32.totalorder %s9, 0
    %p76 = por %p74, %p75
    %p77 = scmp.ne.s32.totalorder %s69, %s71
    %p78 = scmp.eq.s32.totalorder %s14, 1
    %p79 = por %p77, %p78
    %p80 = scmp.ne.s32.totalorder %s71, %s72
    %p81 = scmp.eq.s32.totalorder %s14, 0
    %p82 = por %p80, %p81
    %p83 = scmp.ne.s32.totalorder %s71, %s72
    %p84 = scmp.eq.s32.totalorder %s15, 1
    %p85 = por %p83, %p84
    %p87 = scmp.ne.s32.totalorder %s72, %s86
    %p88 = scmp.eq.s32.totalorder %s15, 0
    %p89 = por %p87, %p88
    %s90 = ssub.s32 %s9, %s16
    %p91 = scmp.eq.s32.totalorder %s90, 0
    %s93 = sadd.s32 %s92, 1
    %s94 = scalar_select %p91, %s92, %s93
    %p97 = pneg %p91
    %p98 = scmp.eq.s32.totalorder %s9, 1
    %p99 = por %p97, %p98
    %p100 = scmp.ne.s32.totalorder %s92, %s95
    %p101 = scmp.eq.s32.totalorder %s9, 0
    %p102 = por %p100, %p101
    %p103 = scmp.ne.s32.totalorder %s92, %s95
    %p104 = scmp.eq.s32.totalorder %s14, 1
    %p105 = por %p103, %p104
    %p106 = scmp.ne.s32.totalorder %s95, %s96
    %p107 = scmp.eq.s32.totalorder %s14, 0
    %p108 = por %p106, %p107
    %p109 = scmp.ne.s32.totalorder %s95, %s96
    %p110 = scmp.eq.s32.totalorder %s15, 1
    %p111 = por %p109, %p110
    %p113 = scmp.ne.s32.totalorder %s96, %s112
    %p114 = scmp.eq.s32.totalorder %s15, 0
    %p115 = por %p113, %p114
    %p116 = scmp.le.s32.totalorder 1, %s9
    %p117 = scmp.lt.s32.totalorder %s9, 3
    %p118 = pnand %p116, %p117
    %p119 = pneg %p118
    // Predicated region
    $region9: #{nonlocal_net_forward.4} parent=5 // pred_check
      _
    $region10: #{nonlocal_net_forward.4} parent=5 // pred_check_branch
      %121 = sbr.rel (%p118) target = $region12
    $region11: #{nonlocal_net_forward.4} parent=5 // pred_region
      %s122 = ssub.s32 %s9, 1
      // Predicated region
      $region13: #{nonlocal_net_forward.4} parent=11 // pred_check
        %p123 = pneg %p82
      $region14: #{nonlocal_net_forward.4} parent=11 // pred_check_branch
        %125 = sbr.rel (%p123) target = $region16
      $region15: #{nonlocal_net_forward.4} parent=11 // pred_region
        _
      $region16: #{nonlocal_net_forward.4} parent=11 // pred_fallthru
        _
    $region12: #{nonlocal_net_forward.4} parent=5 // pred_fallthru
      _
    %p126 = scmp.lt.s32.totalorder %s9, 2
    // Predicated region
    $region17: #{nonlocal_net_forward.4} parent=5 // pred_check
      %p127 = pneg %p126
    $region18: #{nonlocal_net_forward.4} parent=5 // pred_check_branch
      %129 = sbr.rel (%p127) target = $region20
    $region19: #{nonlocal_net_forward.4} parent=5 // pred_region
      // Predicated region
      $region21: #{nonlocal_net_forward.4} parent=19 // pred_check
        %p130 = pneg %p29
      $region22: #{nonlocal_net_forward.4} parent=19 // pred_check_branch
        %132 = sbr.rel (%p130) target = $region24
      $region23: #{nonlocal_net_forward.4} parent=19 // pred_region
        %p133 = scmp.lt.s32.totalorder %s9, 1
        %s134 = scalar_select %p133, %s9, 1
        %s135 = smul.addr %s134, 8
        %s136 = scalar_lea.vmem %s0, %s135
      $region24: #{nonlocal_net_forward.4} parent=19 // pred_fallthru
        _
      // Predicated region
      $region25: #{nonlocal_net_forward.4} parent=19 // pred_check
        %p137 = pneg %p55
      $region26: #{nonlocal_net_forward.4} parent=19 // pred_check_branch
        %139 = sbr.rel (%p137) target = $region28
      $region27: #{nonlocal_net_forward.4} parent=19 // pred_region
        %p140 = scmp.lt.s32.totalorder %s9, 1
        %s141 = scalar_select %p140, %s9, 1
        %s142 = smul.addr %s141, 8
        %s143 = scalar_lea.vmem %s1, %s142
      $region28: #{nonlocal_net_forward.4} parent=19 // pred_fallthru
        _
    $region20: #{nonlocal_net_forward.4} parent=5 // pred_fallthru
      _
    %p144 = scmp.le.s32.totalorder 1, %s9
    %p145 = scmp.lt.s32.totalorder %s9, 3
    %p146 = pnand %p144, %p145
    %p147 = pneg %p146
    // Predicated region
    $region29: #{nonlocal_net_forward.4} parent=5 // pred_check
      _
    $region30: #{nonlocal_net_forward.4} parent=5 // pred_check_branch
      %149 = sbr.rel (%p146) target = $region32
    $region31: #{nonlocal_net_forward.4} parent=5 // pred_region
      %s150 = ssub.s32 %s9, 1
      %p151 = scmp.lt.s32.totalorder %s14, 1
      %s152 = scalar_select %p151, %s14, 1
      %s153 = smul.addr %s152, 8
      %s154 = scalar_lea.vmem %s0, %s153
      %p155 = pneg %p35
      %p156 = pneg %p32
      %p157 = scmp.lt.s32.totalorder %s14, 1
      %s158 = scalar_select %p157, %s14, 1
      %s159 = smul.addr %s158, 8
      %s160 = scalar_lea.vmem %s1, %s159
      %p161 = pneg %p61
      %p162 = pneg %p58
      %p163 = pneg %p82
      %p164 = pneg %p79
      %p165 = pneg %p108
      %p166 = pneg %p105
      %p167 = scmp.lt.s32.totalorder %s14, 1
      %s168 = scalar_select %p167, %s14, 1
      %s169 = smul.addr %s168, 8
      %s170 = scalar_lea.vmem %s3, %s169
      %p171 = scmp.lt.s32.totalorder %s14, 1
      %s172 = scalar_select %p171, %s14, 1
      %s173 = smul.addr %s172, 8
      %s174 = scalar_lea.vmem %s0, %s173
      %p175 = scmp.lt.s32.totalorder %s14, 1
      %s176 = scalar_select %p175, %s14, 1
      %s177 = smul.addr %s176, 8
      %s178 = scalar_lea.vmem %s1, %s177
      %p179 = scmp.lt.s32.totalorder %s14, 1
      %s180 = scalar_select %p179, %s14, 1
      %s181 = smul.addr %s180, 8
      %s182 = scalar_lea.vmem %s3, %s181
      %v183 = vld [vmem:[%s174] sm:$0xff]
      %v184 = vld [vmem:[%s178] sm:$0xff]
      %v185 = vld [vmem:[%s2] sm:$0xff]
      %186 = vmatprep.subr.mxu0 0.0
      %187 = vmatpush1.xpose.msra.mxu0 %v184
      %188 = vmatprep.subr.mxu0 0.0
      %189 = vmatpush1.xpose.msra.mxu0 0.0
      %190 = vmatprep.subr.mxu0 0.0
      %191 = vmatpush1.xpose.msra.mxu0 0.0
      %192 = vmatprep.subr.mxu0 0.0
      %193 = vmatpush1.xpose.msra.mxu0 0.0
      %194 = vmatprep.subr.mxu0 0.0
      %195 = vmatpush1.xpose.msra.mxu0 0.0
      %196 = vmatprep.subr.mxu0 0.0
      %197 = vmatpush1.xpose.msra.mxu0 0.0
      %198 = vmatprep.subr.mxu0 0.0
      %199 = vmatpush1.xpose.msra.mxu0 0.0
      %200 = vmatprep.subr.mxu0 0.0
      %201 = vmatpush1.xpose.msra.mxu0 0.0
      %202 = vmatprep.subr.mxu0 0.0
      %203 = vmatpush1.xpose.msra.mxu0 0.0
      %204 = vmatprep.subr.mxu0 0.0
      %205 = vmatpush1.xpose.msra.mxu0 0.0
      %206 = vmatprep.subr.mxu0 0.0
      %207 = vmatpush1.xpose.msra.mxu0 0.0
      %208 = vmatprep.subr.mxu0 0.0
      %209 = vmatpush1.xpose.msra.mxu0 0.0
      %210 = vmatprep.subr.mxu0 0.0
      %211 = vmatpush1.xpose.msra.mxu0 0.0
      %212 = vmatprep.subr.mxu0 0.0
      %213 = vmatpush1.xpose.msra.mxu0 0.0
      %214 = vmatprep.subr.mxu0 0.0
      %215 = vmatpush1.xpose.msra.mxu0 0.0
      %216 = vmatprep.subr.mxu0 0.0
      %217 = vmatpush1.xpose.msra.mxu0 0.0
      %218 = vmatprep.subr.mxu0 0.0
      %219 = vmatpush1.xpose.msra.mxu0 0.0
      %220 = vmatprep.subr.mxu0 0.0
      %221 = vmatpush1.xpose.msra.mxu0 0.0
      %222 = vmatprep.subr.mxu0 0.0
      %223 = vmatpush1.xpose.msra.mxu0 0.0
      %224 = vmatprep.subr.mxu0 0.0
      %225 = vmatpush1.xpose.msra.mxu0 0.0
      %226 = vmatprep.subr.mxu0 0.0
      %227 = vmatpush1.xpose.msra.mxu0 0.0
      %228 = vmatprep.subr.mxu0 0.0
      %229 = vmatpush1.xpose.msra.mxu0 0.0
      %230 = vmatprep.subr.mxu0 0.0
      %231 = vmatpush1.xpose.msra.mxu0 0.0
      %232 = vmatprep.subr.mxu0 0.0
      %233 = vmatpush1.xpose.msra.mxu0 0.0
      %234 = vmatprep.subr.mxu0 0.0
      %235 = vmatpush1.xpose.msra.mxu0 0.0
      %236 = vmatprep.subr.mxu0 0.0
      %237 = vmatpush1.xpose.msra.mxu0 0.0
      %238 = vmatprep.subr.mxu0 0.0
      %239 = vmatpush1.xpose.msra.mxu0 0.0
      %240 = vmatprep.subr.mxu0 0.0
      %241 = vmatpush1.xpose.msra.mxu0 0.0
      %242 = vmatprep.subr.mxu0 0.0
      %243 = vmatpush1.xpose.msra.mxu0 0.0
      %244 = vmatprep.subr.mxu0 0.0
      %245 = vmatpush1.xpose.msra.mxu0 0.0
      %246 = vmatprep.subr.mxu0 0.0
      %247 = vmatpush1.xpose.msra.mxu0 0.0
      %248 = vmatprep.subr.mxu0 0.0
      %249 = vmatpush1.xpose.msra.mxu0 0.0
      %250 = vmatprep.mubr.f32.mxu0 0.0
      %251 = vmatmul.mubr.f32.gmra.mrb[0].mxu0 %v183
      %v252 = vpop.f32.mrb[0].mxu0
      %v253 = vadd.f32 %v185, %v252
      %v254 = vpop.f32.mrb[0].mxu0
      %255 = vdwg.mxu0
      %vm256 = vcmask 64512
      %v257 = vsel %vm256, %v253, -inf
      %v258 = vrot.slane %v257, 4
      %v259 = vmax.f32 %v257, %v258
      %v260 = vrot.slane %v259, 2
      %v261 = vmax.f32 %v259, %v260
      %v262 = vrot.slane %v261, 1
      %v263 = vmax.f32 %v261, %v262
      %v264 = vsub.f32 %v253, %v263
      %v265 = vmul.f32 %v264, 1.442695
      %v266 = vpow.pop %v265
      %v267 = vsel %vm256, %v266, 0.0
      %v268 = vrot.slane %v267, 4
      %v269 = vadd.f32 %v267, %v268
      %v270 = vrot.slane %v269, 2
      %v271 = vadd.f32 %v269, %v270
      %v272 = vrot.slane %v271, 1
      %v273 = vadd.f32 %v271, %v272
      %v274 = vrcp.pop %v273
      %v275 = vmul.f32 %v266, %v274
      %276 = vxpose.xlu0.b32.start [1/16] %v275, 128
      %277 = vxpose.xlu0.b32.cont [2/16] 0.0, 128
      %278 = vxpose.xlu0.b32.cont [3/16] 0.0, 128
      %279 = vxpose.xlu0.b32.cont [4/16] 0.0, 128
      %280 = vxpose.xlu0.b32.cont [5/16] 0.0, 128
      %281 = vxpose.xlu0.b32.cont [6/16] 0.0, 128
      %282 = vxpose.xlu0.b32.cont [7/16] 0.0, 128
      %283 = vxpose.xlu0.b32.cont [8/16] 0.0, 128
      %284 = vxpose.xlu0.b32.cont [9/16] 0.0, 128
      %285 = vxpose.xlu0.b32.cont [10/16] 0.0, 128
      %286 = vxpose.xlu0.b32.cont [11/16] 0.0, 128
      %287 = vxpose.xlu0.b32.cont [12/16] 0.0, 128
      %288 = vxpose.xlu0.b32.cont [13/16] 0.0, 128
      %289 = vxpose.xlu0.b32.cont [14/16] 0.0, 128
      %290 = vxpose.xlu0.b32.cont [15/16] 0.0, 128
      %291 = vxpose.xlu0.b32.end [16/16] 0.0, 128
      %v292 = vpop.trf.xlu0
      %v293 = vpop.trf.xlu0
      %v294 = vpop.trf.xlu0
      %v295 = vpop.trf.xlu0
      %v296 = vpop.trf.xlu0
      %v297 = vpop.trf.xlu0
      %v298 = vpop.trf.xlu0
      %v299 = vpop.trf.xlu0
      %v300 = vpop.trf.xlu0
      %v301 = vpop.trf.xlu0
      %v302 = vpop.trf.xlu0
      %v303 = vpop.trf.xlu0
      %v304 = vpop.trf.xlu0
      %v305 = vpop.trf.xlu0
      %v306 = vpop.trf.xlu0
      %v307 = vpop.trf.xlu0
      %v309 = vsel %vm256, %v292, 0
      %311 = vmatprep.subr.mxu0 0.0
      %312 = vmatpush1.msra.mxu0 %v183
      %313 = vmatprep.subr.mxu0 0.0
      %314 = vmatpush1.msra.mxu0 0.0
      %315 = vmatprep.subr.mxu0 0.0
      %316 = vmatpush1.msra.mxu0 0.0
      %317 = vmatprep.subr.mxu0 0.0
      %318 = vmatpush1.msra.mxu0 0.0
      %319 = vmatprep.subr.mxu0 0.0
      %320 = vmatpush1.msra.mxu0 0.0
      %321 = vmatprep.subr.mxu0 0.0
      %322 = vmatpush1.msra.mxu0 0.0
      %323 = vmatprep.subr.mxu0 0.0
      %324 = vmatpush1.msra.mxu0 0.0
      %325 = vmatprep.subr.mxu0 0.0
      %326 = vmatpush1.msra.mxu0 0.0
      %327 = vmatprep.subr.mxu0 0.0
      %328 = vmatpush1.msra.mxu0 0.0
      %329 = vmatprep.subr.mxu0 0.0
      %330 = vmatpush1.msra.mxu0 0.0
      %331 = vmatprep.subr.mxu0 0.0
      %332 = vmatpush1.msra.mxu0 0.0
      %333 = vmatprep.subr.mxu0 0.0
      %334 = vmatpush1.msra.mxu0 0.0
      %335 = vmatprep.subr.mxu0 0.0
      %336 = vmatpush1.msra.mxu0 0.0
      %337 = vmatprep.subr.mxu0 0.0
      %338 = vmatpush1.msra.mxu0 0.0
      %339 = vmatprep.subr.mxu0 0.0
      %340 = vmatpush1.msra.mxu0 0.0
      %341 = vmatprep.subr.mxu0 0.0
      %342 = vmatpush1.msra.mxu0 0.0
      %343 = vmatprep.subr.mxu0 0.0
      %344 = vmatpush1.msra.mxu0 0.0
      %345 = vmatprep.subr.mxu0 0.0
      %346 = vmatpush1.msra.mxu0 0.0
      %347 = vmatprep.subr.mxu0 0.0
      %348 = vmatpush1.msra.mxu0 0.0
      %349 = vmatprep.subr.mxu0 0.0
      %350 = vmatpush1.msra.mxu0 0.0
      %351 = vmatprep.subr.mxu0 0.0
      %352 = vmatpush1.msra.mxu0 0.0
      %353 = vmatprep.subr.mxu0 0.0
      %354 = vmatpush1.msra.mxu0 0.0
      %355 = vmatprep.subr.mxu0 0.0
      %356 = vmatpush1.msra.mxu0 0.0
      %357 = vmatprep.subr.mxu0 0.0
      %358 = vmatpush1.msra.mxu0 0.0
      %359 = vmatprep.subr.mxu0 0.0
      %360 = vmatpush1.msra.mxu0 0.0
      %361 = vmatprep.subr.mxu0 0.0
      %362 = vmatpush1.msra.mxu0 0.0
      %363 = vmatprep.subr.mxu0 0.0
      %364 = vmatpush1.msra.mxu0 0.0
      %365 = vmatprep.subr.mxu0 0.0
      %366 = vmatpush1.msra.mxu0 0.0
      %367 = vmatprep.subr.mxu0 0.0
      %368 = vmatpush1.msra.mxu0 0.0
      %369 = vmatprep.subr.mxu0 0.0
      %370 = vmatpush1.msra.mxu0 0.0
      %371 = vmatprep.subr.mxu0 0.0
      %372 = vmatpush1.msra.mxu0 0.0
      %373 = vmatprep.subr.mxu0 0.0
      %374 = vmatpush1.msra.mxu0 0.0
      %375 = vmatprep.mubr.f32.mxu0 0.0
      %376 = vmatmul.mubr.f32.gmra.mrb[0].mxu0 %v309
      %v377 = vpop.f32.mrb[0].mxu0
      %v378 = vadd.f32 0.0, %v377
      %v379 = vpop.f32.mrb[0].mxu0
      %380 = vdwg.mxu0
      %381 = vst [vmem:[%s182] sm:$0xff] %v378
      %p382 = scmp.lt.s32.totalorder %s14, 1
      %s383 = scalar_select %p382, %s14, 1
      %s384 = smul.addr %s383, 8
      %s385 = scalar_lea.vmem %s3, %s384
      // Predicated region
      $region33: #{nonlocal_net_forward.4} parent=31 // pred_check
        %p386 = pneg %p105
      $region34: #{nonlocal_net_forward.4} parent=31 // pred_check_branch
        %388 = sbr.rel (%p386) target = $region36
      $region35: #{nonlocal_net_forward.4} parent=31 // pred_region
        _
      $region36: #{nonlocal_net_forward.4} parent=31 // pred_fallthru
        _
    $region32: #{nonlocal_net_forward.4} parent=5 // pred_fallthru
      _
    %p389 = scmp.le.s32.totalorder 2, %s9
    // Predicated region
    $region37: #{nonlocal_net_forward.4} parent=5 // pred_check
      %p390 = pneg %p389
    $region38: #{nonlocal_net_forward.4} parent=5 // pred_check_branch
      %392 = sbr.rel (%p390) target = $region40
    $region39: #{nonlocal_net_forward.4} parent=5 // pred_region
      %s393 = ssub.s32 %s9, 2
      // Predicated region
      $region41: #{nonlocal_net_forward.4} parent=39 // pred_check
        %p394 = pneg %p111
      $region42: #{nonlocal_net_forward.4} parent=39 // pred_check_branch
        %396 = sbr.rel (%p394) target = $region44
      $region43: #{nonlocal_net_forward.4} parent=39 // pred_region
        %p397 = scmp.lt.s32.totalorder %s15, 1
        %s398 = scalar_select %p397, %s15, 1
        %s399 = smul.addr %s398, 8
        %s400 = scalar_lea.vmem %s3, %s399
      $region44: #{nonlocal_net_forward.4} parent=39 // pred_fallthru
        _
    $region40: #{nonlocal_net_forward.4} parent=5 // pred_fallthru
      _
  $region6: #{nonlocal_net_forward.4} parent=0 // loop_footer
    %s13 = sadd.s32 1, %s9
  $region7: #{nonlocal_net_forward.4} parent=0 // loop_footer_branch
    %8 = sbr.rel target = $region3
  $region8: #{nonlocal_net_forward.4} parent=0 // loop_exit
    _

// kernel: nonlocal_net_forward.3
$region0: #{nonlocal_net_forward.3}
  #allocation0 [shape = 'u32[]', space=smem, size = 0x4, offset = 0x4, fixed_abs, tag = 'smem constant byte address 0x4 - core index']
  #allocation1 [shape = 'u32[144,128]{1,0:T(1,128)}', space=vmem, size = 0x12000, scoped, tag = 'internal scratch']
  %s0 = inlined_call_operand.vmem [shape: f32[8,2,1024], index: 0, kind: input, shape index: {}]
  %s1 = inlined_call_operand.hbm [shape: bf16[8,1024,128], index: 1, kind: input, shape index: {}]
  %s2 = inlined_call_operand.hbm [shape: bf16[8,1024,128], index: 2, kind: input, shape index: {}]
  %s3 = inlined_call_operand.vmem [shape: f32[8,2,128], index: 3, kind: output, shape index: {0}]
  %s4 = inlined_call_operand.vmem [shape: f32[8,2,128], index: 4, kind: output, shape index: {1}]
  %5 = xla_tuple %s3, %s4
  %s6 = sld [smem:[#allocation0]]
  $region61: #{nonlocal_net_forward.3} parent=0
    _
  %s8 = ssub.s32 1, %s6
  %s9 = scalar_select 0, %s8, %s6
  $region1: #{nonlocal_net_forward.3} parent=0
    #allocation2 [shape = 'u8[524288]{0}', space=vmem, size = 0x80000, scoped, tag = 'input window, operand 1']
    #allocation3 [shape = 's32[2]{0}', space=sflag, size = 0x8, scoped, tag = 'scoped memory for nonlocal_net_forward.3']
    #allocation4 [shape = 'u8[524288]{0}', space=vmem, size = 0x80000, scoped, tag = 'input window, operand 2']
    #allocation5 [shape = 's32[2]{0}', space=sflag, size = 0x8, scoped, tag = 'scoped memory for nonlocal_net_forward.3']
    %10 = vsyncpa [#allocation3], 0
    %s11 = scalar_lea.sflag [#allocation3], 1
    %12 = vsyncpa %s11, 0
    %13 = vsyncpa [#allocation5], 0
    %s14 = scalar_lea.sflag [#allocation5], 1
    %15 = vsyncpa %s14, 0
    loop: start=0, step=1, limit=10
    $region2: #{nonlocal_net_forward.3} parent=1 // loop_pre_header
      _
    $region3: #{nonlocal_net_forward.3} parent=1 // loop_header
      %s17 = sphi 0, %s21
      %p18 = scmp.ge.s32.totalorder %s17, 10
      %s27 = sphi 0, %s29
      %s30 = sphi 0, %s27
      %s31 = sphi 0, %s30
      %s47 = sphi 0, %s31
      %s53 = sphi 0, %s55
      %s56 = sphi 0, %s53
      %s57 = sphi 0, %s56
      %s73 = sphi 0, %s57
      %s79 = sphi 0, %s81
      %s82 = sphi 0, %s79
      %s83 = sphi 0, %s82
      %s99 = sphi 0, %s83
      %s105 = sphi 0, %s107
      %s108 = sphi 0, %s105
      %s109 = sphi 0, %s108
      %s125 = sphi 0, %s109
      %s131 = sphi 0, %s133
      %s134 = sphi 0, %s131
      %s135 = sphi 0, %s134
      %s151 = sphi 0, %s135
    $region4: #{nonlocal_net_forward.3} parent=1 // loop_header_branch
      %20 = sbr.rel (%p18) target = $region8
    $region5: #{nonlocal_net_forward.3} parent=1 // loop_body
      %s22 = ssub.s32 %s17, 1
      %s23 = ssub.s32 %s17, 2
      %s24 = sadd.s32 %s17, 1
      %s25 = ssub.s32 %s17, %s24
      %p26 = scmp.eq.s32.totalorder %s25, 0
      %s28 = sadd.s32 %s27, 1
      %s29 = scalar_select %p26, %s27, %s28
      %p32 = pneg %p26
      %p33 = scmp.eq.s32.totalorder %s17, 7
      %p34 = por %p32, %p33
      %p35 = scmp.ne.s32.totalorder %s27, %s30
      %p36 = scmp.eq.s32.totalorder %s17, 0
      %p37 = por %p35, %p36
      %p38 = scmp.ne.s32.totalorder %s27, %s30
      %p39 = scmp.eq.s32.totalorder %s22, 7
      %p40 = por %p38, %p39
      %p41 = scmp.ne.s32.totalorder %s30, %s31
      %p42 = scmp.eq.s32.totalorder %s22, 0
      %p43 = por %p41, %p42
      %p44 = scmp.ne.s32.totalorder %s30, %s31
      %p45 = scmp.eq.s32.totalorder %s23, 7
      %p46 = por %p44, %p45
      %p48 = scmp.ne.s32.totalorder %s31, %s47
      %p49 = scmp.eq.s32.totalorder %s23, 0
      %p50 = por %p48, %p49
      %s51 = ssub.s32 %s17, %s24
      %p52 = scmp.eq.s32.totalorder %s51, 0
      %s54 = sadd.s32 %s53, 1
      %s55 = scalar_select %p52, %s53, %s54
      %p58 = pneg %p52
      %p59 = scmp.eq.s32.totalorder %s17, 7
      %p60 = por %p58, %p59
      %p61 = scmp.ne.s32.totalorder %s53, %s56
      %p62 = scmp.eq.s32.totalorder %s17, 0
      %p63 = por %p61, %p62
      %p64 = scmp.ne.s32.totalorder %s53, %s56
      %p65 = scmp.eq.s32.totalorder %s22, 7
      %p66 = por %p64, %p65
      %p67 = scmp.ne.s32.totalorder %s56, %s57
      %p68 = scmp.eq.s32.totalorder %s22, 0
      %p69 = por %p67, %p68
      %p70 = scmp.ne.s32.totalorder %s56, %s57
      %p71 = scmp.eq.s32.totalorder %s23, 7
      %p72 = por %p70, %p71
      %p74 = scmp.ne.s32.totalorder %s57, %s73
      %p75 = scmp.eq.s32.totalorder %s23, 0
      %p76 = por %p74, %p75
      %s77 = ssub.s32 %s17, %s24
      %p78 = scmp.eq.s32.totalorder %s77, 0
      %s80 = sadd.s32 %s79, 1
      %s81 = scalar_select %p78, %s79, %s80
      %p84 = pneg %p78
      %p85 = scmp.eq.s32.totalorder %s17, 7
      %p86 = por %p84, %p85
      %p87 = scmp.ne.s32.totalorder %s79, %s82
      %p88 = scmp.eq.s32.totalorder %s17, 0
      %p89 = por %p87, %p88
      %p90 = scmp.ne.s32.totalorder %s79, %s82
      %p91 = scmp.eq.s32.totalorder %s22, 7
      %p92 = por %p90, %p91
      %p93 = scmp.ne.s32.totalorder %s82, %s83
      %p94 = scmp.eq.s32.totalorder %s22, 0
      %p95 = por %p93, %p94
      %p96 = scmp.ne.s32.totalorder %s82, %s83
      %p97 = scmp.eq.s32.totalorder %s23, 7
      %p98 = por %p96, %p97
      %p100 = scmp.ne.s32.totalorder %s83, %s99
      %p101 = scmp.eq.s32.totalorder %s23, 0
      %p102 = por %p100, %p101
      %s103 = ssub.s32 %s17, %s24
      %p104 = scmp.eq.s32.totalorder %s103, 0
      %s106 = sadd.s32 %s105, 1
      %s107 = scalar_select %p104, %s105, %s106
      %p110 = pneg %p104
      %p111 = scmp.eq.s32.totalorder %s17, 7
      %p112 = por %p110, %p111
      %p113 = scmp.ne.s32.totalorder %s105, %s108
      %p114 = scmp.eq.s32.totalorder %s17, 0
      %p115 = por %p113, %p114
      %p116 = scmp.ne.s32.totalorder %s105, %s108
      %p117 = scmp.eq.s32.totalorder %s22, 7
      %p118 = por %p116, %p117
      %p119 = scmp.ne.s32.totalorder %s108, %s109
      %p120 = scmp.eq.s32.totalorder %s22, 0
      %p121 = por %p119, %p120
      %p122 = scmp.ne.s32.totalorder %s108, %s109
      %p123 = scmp.eq.s32.totalorder %s23, 7
      %p124 = por %p122, %p123
      %p126 = scmp.ne.s32.totalorder %s109, %s125
      %p127 = scmp.eq.s32.totalorder %s23, 0
      %p128 = por %p126, %p127
      %s129 = ssub.s32 %s17, %s24
      %p130 = scmp.eq.s32.totalorder %s129, 0
      %s132 = sadd.s32 %s131, 1
      %s133 = scalar_select %p130, %s131, %s132
      %p136 = pneg %p130
      %p137 = scmp.eq.s32.totalorder %s17, 7
      %p138 = por %p136, %p137
      %p139 = scmp.ne.s32.totalorder %s131, %s134
      %p140 = scmp.eq.s32.totalorder %s17, 0
      %p141 = por %p139, %p140
      %p142 = scmp.ne.s32.totalorder %s131, %s134
      %p143 = scmp.eq.s32.totalorder %s22, 7
      %p144 = por %p142, %p143
      %p145 = scmp.ne.s32.totalorder %s134, %s135
      %p146 = scmp.eq.s32.totalorder %s22, 0
      %p147 = por %p145, %p146
      %p148 = scmp.ne.s32.totalorder %s134, %s135
      %p149 = scmp.eq.s32.totalorder %s23, 7
      %p150 = por %p148, %p149
      %p152 = scmp.ne.s32.totalorder %s135, %s151
      %p153 = scmp.eq.s32.totalorder %s23, 0
      %p154 = por %p152, %p153
      %p155 = scmp.le.s32.totalorder 1, %s17
      %p156 = scmp.lt.s32.totalorder %s17, 9
      %p157 = pnand %p155, %p156
      %p158 = pneg %p157
      // Predicated region
      $region9: #{nonlocal_net_forward.3} parent=5 // pred_check
        _
      $region10: #{nonlocal_net_forward.3} parent=5 // pred_check_branch
        %160 = sbr.rel (%p157) target = $region12
      $region11: #{nonlocal_net_forward.3} parent=5 // pred_region
        %s161 = ssub.s32 %s17, 1
      $region12: #{nonlocal_net_forward.3} parent=5 // pred_fallthru
        _
      %p162 = scmp.lt.s32.totalorder %s17, 8
      // Predicated region
      $region13: #{nonlocal_net_forward.3} parent=5 // pred_check
        %p163 = pneg %p162
      $region14: #{nonlocal_net_forward.3} parent=5 // pred_check_branch
        %165 = sbr.rel (%p163) target = $region16
      $region15: #{nonlocal_net_forward.3} parent=5 // pred_region
        // Predicated region
        $region17: #{nonlocal_net_forward.3} parent=15 // pred_check
          %p166 = pneg %p37
        $region18: #{nonlocal_net_forward.3} parent=15 // pred_check_branch
          %168 = sbr.rel (%p166) target = $region20
        $region19: #{nonlocal_net_forward.3} parent=15 // pred_region
          %p169 = scmp.lt.s32.totalorder %s17, 7
          %s170 = scalar_select %p169, %s17, 7
          %s171 = smul.addr %s170, 8
          %s172 = smul.addr %s171, 2
          %s173 = scalar_lea.vmem %s0, %s172
        $region20: #{nonlocal_net_forward.3} parent=15 // pred_fallthru
          _
        // Predicated region
        $region21: #{nonlocal_net_forward.3} parent=15 // pred_check
          %p174 = pneg %p63
        $region22: #{nonlocal_net_forward.3} parent=15 // pred_check_branch
          %176 = sbr.rel (%p174) target = $region24
        $region23: #{nonlocal_net_forward.3} parent=15 // pred_region
          %s177 = sand.u32 %s53, 1
          %s178 = scalar_lea.sflag [#allocation3], %s177
          %s179 = sand.u32 %s53, 1
          %s180 = smul.addr %s179, 512
          %s181 = scalar_lea.vmem [#allocation2], %s180
          %s183 = ssub.s32 8192, 8192
          %184 = vsyncadd %s178, %s183
          %s185 = smul.addr %s17, 128
          %s186 = smul.addr %s185, 64
          %s187 = scalar_lea.hbm %s1, %s186
          %s188 = sshll.u32 %s181, 4
          %s189 = int_to_ptr.vmem [resolvable:$true] %s188
          %194 = dma.hbm_to_vmem [thread:$0]  %s187, 8192, %s189, %s178, 64, 64, 4
        $region24: #{nonlocal_net_forward.3} parent=15 // pred_fallthru
          _
        // Predicated region
        $region25: #{nonlocal_net_forward.3} parent=15 // pred_check
          %p195 = pneg %p89
        $region26: #{nonlocal_net_forward.3} parent=15 // pred_check_branch
          %197 = sbr.rel (%p195) target = $region28
        $region27: #{nonlocal_net_forward.3} parent=15 // pred_region
          %s198 = sand.u32 %s79, 1
          %s199 = scalar_lea.sflag [#allocation5], %s198
          %s200 = sand.u32 %s79, 1
          %s201 = smul.addr %s200, 512
          %s202 = scalar_lea.vmem [#allocation4], %s201
          %s204 = ssub.s32 8192, 8192
          %205 = vsyncadd %s199, %s204
          %s206 = smul.addr %s17, 128
          %s207 = smul.addr %s206, 64
          %s208 = scalar_lea.hbm %s2, %s207
          %s209 = sshll.u32 %s202, 4
          %s210 = int_to_ptr.vmem [resolvable:$true] %s209
          %215 = dma.hbm_to_vmem [thread:$0]  %s208, 8192, %s210, %s199, 64, 64, 4
        $region28: #{nonlocal_net_forward.3} parent=15 // pred_fallthru
          _
      $region16: #{nonlocal_net_forward.3} parent=5 // pred_fallthru
        _
      %p216 = scmp.le.s32.totalorder 1, %s17
      %p217 = scmp.lt.s32.totalorder %s17, 9
      %p218 = pnand %p216, %p217
      %p219 = pneg %p218
      // Predicated region
      $region29: #{nonlocal_net_forward.3} parent=5 // pred_check
        _
      $region30: #{nonlocal_net_forward.3} parent=5 // pred_check_branch
        %221 = sbr.rel (%p218) target = $region32
      $region31: #{nonlocal_net_forward.3} parent=5 // pred_region
        %s222 = ssub.s32 %s17, 1
        %s223 = sand.u32 %s56, 1
        %s224 = scalar_lea.sflag [#allocation3], %s223
        %s225 = sand.u32 %s56, 1
        %s226 = smul.addr %s225, 512
        %s227 = scalar_lea.vmem [#allocation2], %s226
        // Predicated region
        $region33: #{nonlocal_net_forward.3} parent=31 // pred_check
          %p228 = pneg %p69
        $region34: #{nonlocal_net_forward.3} parent=31 // pred_check_branch
          %230 = sbr.rel (%p228) target = $region36
        $region35: #{nonlocal_net_forward.3} parent=31 // pred_region
          %231 = dma.done %s224, 8192
        $region36: #{nonlocal_net_forward.3} parent=31 // pred_fallthru
          _
        %s232 = sand.u32 %s82, 1
        %s233 = scalar_lea.sflag [#allocation5], %s232
        %s234 = sand.u32 %s82, 1
        %s235 = smul.addr %s234, 512
        %s236 = scalar_lea.vmem [#allocation4], %s235
        // Predicated region
        $region37: #{nonlocal_net_forward.3} parent=31 // pred_check
          %p237 = pneg %p95
        $region38: #{nonlocal_net_forward.3} parent=31 // pred_check_branch
          %239 = sbr.rel (%p237) target = $region40
        $region39: #{nonlocal_net_forward.3} parent=31 // pred_region
          %240 = dma.done %s233, 8192
        $region40: #{nonlocal_net_forward.3} parent=31 // pred_fallthru
          _
        %p241 = scmp.lt.s32.totalorder %s22, 7
        %s242 = scalar_select %p241, %s22, 7
        %s243 = smul.addr %s242, 8
        %s244 = smul.addr %s243, 2
        %s245 = scalar_lea.vmem %s0, %s244
        %p246 = pneg %p43
        %p247 = pneg %p40
        %s248 = sand.u32 %s56, 1
        %s249 = scalar_lea.sflag [#allocation3], %s248
        %s250 = sand.u32 %s56, 1
        %s251 = smul.addr %s250, 512
        %s252 = scalar_lea.vmem [#allocation2], %s251
        %p253 = pneg %p69
        %p254 = pneg %p66
        %s255 = sand.u32 %s82, 1
        %s256 = scalar_lea.sflag [#allocation5], %s255
        %s257 = sand.u32 %s82, 1
        %s258 = smul.addr %s257, 512
        %s259 = scalar_lea.vmem [#allocation4], %s258
        %p260 = pneg %p95
        %p261 = pneg %p92
        %p262 = pneg %p121
        %p263 = pneg %p118
        %p264 = scmp.lt.s32.totalorder %s22, 7
        %s265 = scalar_select %p264, %s22, 7
        %s266 = smul.addr %s265, 2
        %s267 = scalar_lea.vmem %s3, %s266
        %p268 = pneg %p147
        %p269 = pneg %p144
        %p270 = scmp.lt.s32.totalorder %s22, 7
        %s271 = scalar_select %p270, %s22, 7
        %s272 = smul.addr %s271, 2
        %s273 = scalar_lea.vmem %s4, %s272
        %p274 = scmp.lt.s32.totalorder %s22, 7
        %s275 = scalar_select %p274, %s22, 7
        %s276 = smul.addr %s275, 8
        %s277 = smul.addr %s276, 2
        %s278 = scalar_lea.vmem %s0, %s277
        %p279 = scmp.lt.s32.totalorder %s22, 7
        %s280 = scalar_select %p279, %s22, 7
        %s281 = smul.addr %s280, 2
        %s282 = scalar_lea.vmem %s3, %s281
        %p283 = scmp.lt.s32.totalorder %s22, 7
        %s284 = scalar_select %p283, %s22, 7
        %s285 = smul.addr %s284, 2
        %s286 = scalar_lea.vmem %s4, %s285
        %v288 = vld [vmem:[%s278] sm:$0xff]
        %v289 = vld [vmem:[%s278 + $0x8] sm:$0xff]
        %v292 = vcombine.high %v288, %v288
        %v294 = vunpack.c.l.s4 1983009808
        %v295 = vunpack.c.0.s8 %v294
        %v296 = vlaneseq
        %v297 = vshrl.u32 %v296, 7
        %v298 = vsub.s32 %v295, %v297
        %v299 = vrot.slane %v288, %v298
        %v301 = vunpack.c.l.s4 1983009808
        %v302 = vunpack.c.0.s8 %v301
        %v303 = vlaneseq
        %v304 = vshrl.u32 %v303, 7
        %v305 = vsub.s32 %v302, %v304
        %v306 = vrot.slane %v292, %v305
        %v307 = vcombine.high %v299, %v299
        %v308 = vcombine.high %v306, %v306
        %v309 = vcombine.high %v289, %v289
        %v311 = vunpack.c.l.s4 1983009808
        %v312 = vunpack.c.0.s8 %v311
        %v313 = vlaneseq
        %v314 = vshrl.u32 %v313, 7
        %v315 = vsub.s32 %v312, %v314
        %v316 = vrot.slane %v289, %v315
        %v318 = vunpack.c.l.s4 1983009808
        %v319 = vunpack.c.0.s8 %v318
        %v320 = vlaneseq
        %v321 = vshrl.u32 %v320, 7
        %v322 = vsub.s32 %v319, %v321
        %v323 = vrot.slane %v309, %v322
        %v324 = vcombine.high %v316, %v316
        %v325 = vcombine.high %v323, %v323
        %v334 = vpack.c.bf16 %v299, %v299
        %v335 = vpack.c.bf16 %v307, %v307
        %v336 = vpack.c.bf16 %v306, %v306
        %v337 = vpack.c.bf16 %v308, %v308
        %v338 = vpack.c.bf16 %v316, %v316
        %v339 = vpack.c.bf16 %v324, %v324
        %v340 = vpack.c.bf16 %v323, %v323
        %v341 = vpack.c.bf16 %v325, %v325
        %v342 = vld [vmem:[%s227] sm:$0xf]
        %v343 = vld [vmem:[%s227 + $0x4] sm:$0xf]
        %v344 = vld [vmem:[%s227 + $0x8] sm:$0xf]
        %v345 = vld [vmem:[%s227 + $0xc] sm:$0xf]
        %v346 = vld [vmem:[%s227 + $0x10] sm:$0xf]
        %v347 = vld [vmem:[%s227 + $0x14] sm:$0xf]
        %v348 = vld [vmem:[%s227 + $0x18] sm:$0xf]
        %v349 = vld [vmem:[%s227 + $0x1c] sm:$0xf]
        %v350 = vld [vmem:[%s227 + $0x20] sm:$0xf]
        %v351 = vld [vmem:[%s227 + $0x24] sm:$0xf]
        %v352 = vld [vmem:[%s227 + $0x28] sm:$0xf]
        %v353 = vld [vmem:[%s227 + $0x2c] sm:$0xf]
        %v354 = vld [vmem:[%s227 + $0x30] sm:$0xf]
        %v355 = vld [vmem:[%s227 + $0x34] sm:$0xf]
        %v356 = vld [vmem:[%s227 + $0x38] sm:$0xf]
        %v357 = vld [vmem:[%s227 + $0x3c] sm:$0xf]
        %v358 = vld [vmem:[%s227 + $0x40] sm:$0xf]
        %v359 = vld [vmem:[%s227 + $0x44] sm:$0xf]
        %v360 = vld [vmem:[%s227 + $0x48] sm:$0xf]
        %v361 = vld [vmem:[%s227 + $0x4c] sm:$0xf]
        %v362 = vld [vmem:[%s227 + $0x50] sm:$0xf]
        %v363 = vld [vmem:[%s227 + $0x54] sm:$0xf]
        %v364 = vld [vmem:[%s227 + $0x58] sm:$0xf]
        %v365 = vld [vmem:[%s227 + $0x5c] sm:$0xf]
        %v366 = vld [vmem:[%s227 + $0x60] sm:$0xf]
        %v367 = vld [vmem:[%s227 + $0x64] sm:$0xf]
        %v368 = vld [vmem:[%s227 + $0x68] sm:$0xf]
        %v369 = vld [vmem:[%s227 + $0x6c] sm:$0xf]
        %v370 = vld [vmem:[%s227 + $0x70] sm:$0xf]
        %v371 = vld [vmem:[%s227 + $0x74] sm:$0xf]
        %v372 = vld [vmem:[%s227 + $0x78] sm:$0xf]
        %v373 = vld [vmem:[%s227 + $0x7c] sm:$0xf]
        %v374 = vld [vmem:[%s227 + $0x80] sm:$0xf]
        %v375 = vld [vmem:[%s227 + $0x84] sm:$0xf]
        %v376 = vld [vmem:[%s227 + $0x88] sm:$0xf]
        %v377 = vld [vmem:[%s227 + $0x8c] sm:$0xf]
        %v378 = vld [vmem:[%s227 + $0x90] sm:$0xf]
        %v379 = vld [vmem:[%s227 + $0x94] sm:$0xf]
        %v380 = vld [vmem:[%s227 + $0x98] sm:$0xf]
        %v381 = vld [vmem:[%s227 + $0x9c] sm:$0xf]
        %v382 = vld [vmem:[%s227 + $0xa0] sm:$0xf]
        %v383 = vld [vmem:[%s227 + $0xa4] sm:$0xf]
        %v384 = vld [vmem:[%s227 + $0xa8] sm:$0xf]
        %v385 = vld [vmem:[%s227 + $0xac] sm:$0xf]
        %v386 = vld [vmem:[%s227 + $0xb0] sm:$0xf]
        %v387 = vld [vmem:[%s227 + $0xb4] sm:$0xf]
        %v388 = vld [vmem:[%s227 + $0xb8] sm:$0xf]
        %v389 = vld [vmem:[%s227 + $0xbc] sm:$0xf]
        %v390 = vld [vmem:[%s227 + $0xc0] sm:$0xf]
        %v391 = vld [vmem:[%s227 + $0xc4] sm:$0xf]
        %v392 = vld [vmem:[%s227 + $0xc8] sm:$0xf]
        %v393 = vld [vmem:[%s227 + $0xcc] sm:$0xf]
        %v394 = vld [vmem:[%s227 + $0xd0] sm:$0xf]
        %v395 = vld [vmem:[%s227 + $0xd4] sm:$0xf]
        %v396 = vld [vmem:[%s227 + $0xd8] sm:$0xf]
        %v397 = vld [vmem:[%s227 + $0xdc] sm:$0xf]
        %v398 = vld [vmem:[%s227 + $0xe0] sm:$0xf]
        %v399 = vld [vmem:[%s227 + $0xe4] sm:$0xf]
        %v400 = vld [vmem:[%s227 + $0xe8] sm:$0xf]
        %v401 = vld [vmem:[%s227 + $0xec] sm:$0xf]
        %v402 = vld [vmem:[%s227 + $0xf0] sm:$0xf]
        %v403 = vld [vmem:[%s227 + $0xf4] sm:$0xf]
        %v404 = vld [vmem:[%s227 + $0xf8] sm:$0xf]
        %v405 = vld [vmem:[%s227 + $0xfc] sm:$0xf]
        %v406 = vld [vmem:[%s227 + $0x100] sm:$0xf]
        %v407 = vld [vmem:[%s227 + $0x104] sm:$0xf]
        %v408 = vld [vmem:[%s227 + $0x108] sm:$0xf]
        %v409 = vld [vmem:[%s227 + $0x10c] sm:$0xf]
        %v410 = vld [vmem:[%s227 + $0x110] sm:$0xf]
        %v411 = vld [vmem:[%s227 + $0x114] sm:$0xf]
        %v412 = vld [vmem:[%s227 + $0x118] sm:$0xf]
        %v413 = vld [vmem:[%s227 + $0x11c] sm:$0xf]
        %v414 = vld [vmem:[%s227 + $0x120] sm:$0xf]
        %v415 = vld [vmem:[%s227 + $0x124] sm:$0xf]
        %v416 = vld [vmem:[%s227 + $0x128] sm:$0xf]
        %v417 = vld [vmem:[%s227 + $0x12c] sm:$0xf]
        %v418 = vld [vmem:[%s227 + $0x130] sm:$0xf]
        %v419 = vld [vmem:[%s227 + $0x134] sm:$0xf]
        %v420 = vld [vmem:[%s227 + $0x138] sm:$0xf]
        %v421 = vld [vmem:[%s227 + $0x13c] sm:$0xf]
        %v422 = vld [vmem:[%s227 + $0x140] sm:$0xf]
        %v423 = vld [vmem:[%s227 + $0x144] sm:$0xf]
        %v424 = vld [vmem:[%s227 + $0x148] sm:$0xf]
        %v425 = vld [vmem:[%s227 + $0x14c] sm:$0xf]
        %v426 = vld [vmem:[%s227 + $0x150] sm:$0xf]
        %v427 = vld [vmem:[%s227 + $0x154] sm:$0xf]
        %v428 = vld [vmem:[%s227 + $0x158] sm:$0xf]
        %v429 = vld [vmem:[%s227 + $0x15c] sm:$0xf]
        %v430 = vld [vmem:[%s227 + $0x160] sm:$0xf]
        %v431 = vld [vmem:[%s227 + $0x164] sm:$0xf]
        %v432 = vld [vmem:[%s227 + $0x168] sm:$0xf]
        %v433 = vld [vmem:[%s227 + $0x16c] sm:$0xf]
        %v434 = vld [vmem:[%s227 + $0x170] sm:$0xf]
        %v435 = vld [vmem:[%s227 + $0x174] sm:$0xf]
        %v436 = vld [vmem:[%s227 + $0x178] sm:$0xf]
        %v437 = vld [vmem:[%s227 + $0x17c] sm:$0xf]
        %v438 = vld [vmem:[%s227 + $0x180] sm:$0xf]
        %v439 = vld [vmem:[%s227 + $0x184] sm:$0xf]
        %v440 = vld [vmem:[%s227 + $0x188] sm:$0xf]
        %v441 = vld [vmem:[%s227 + $0x18c] sm:$0xf]
        %v442 = vld [vmem:[%s227 + $0x190] sm:$0xf]
        %v443 = vld [vmem:[%s227 + $0x194] sm:$0xf]
        %v444 = vld [vmem:[%s227 + $0x198] sm:$0xf]
        %v445 = vld [vmem:[%s227 + $0x19c] sm:$0xf]
        %v446 = vld [vmem:[%s227 + $0x1a0] sm:$0xf]
        %v447 = vld [vmem:[%s227 + $0x1a4] sm:$0xf]
        %v448 = vld [vmem:[%s227 + $0x1a8] sm:$0xf]
        %v449 = vld [vmem:[%s227 + $0x1ac] sm:$0xf]
        %v450 = vld [vmem:[%s227 + $0x1b0] sm:$0xf]
        %v451 = vld [vmem:[%s227 + $0x1b4] sm:$0xf]
        %v452 = vld [vmem:[%s227 + $0x1b8] sm:$0xf]
        %v453 = vld [vmem:[%s227 + $0x1bc] sm:$0xf]
        %v454 = vld [vmem:[%s227 + $0x1c0] sm:$0xf]
        %v455 = vld [vmem:[%s227 + $0x1c4] sm:$0xf]
        %v456 = vld [vmem:[%s227 + $0x1c8] sm:$0xf]
        %v457 = vld [vmem:[%s227 + $0x1cc] sm:$0xf]
        %v458 = vld [vmem:[%s227 + $0x1d0] sm:$0xf]
        %v459 = vld [vmem:[%s227 + $0x1d4] sm:$0xf]
        %v460 = vld [vmem:[%s227 + $0x1d8] sm:$0xf]
        %v461 = vld [vmem:[%s227 + $0x1dc] sm:$0xf]
        %v462 = vld [vmem:[%s227 + $0x1e0] sm:$0xf]
        %v463 = vld [vmem:[%s227 + $0x1e4] sm:$0xf]
        %v464 = vld [vmem:[%s227 + $0x1e8] sm:$0xf]
        %v465 = vld [vmem:[%s227 + $0x1ec] sm:$0xf]
        %v466 = vld [vmem:[%s227 + $0x1f0] sm:$0xf]
        %v467 = vld [vmem:[%s227 + $0x1f4] sm:$0xf]
        %v468 = vld [vmem:[%s227 + $0x1f8] sm:$0xf]
        %v469 = vld [vmem:[%s227 + $0x1fc] sm:$0xf]
        %v598 = vunpack.c.l.b16 %v342
        %v599 = vunpack.c.l.b16 %v343
        %v600 = vunpack.c.l.b16 %v344
        %v601 = vunpack.c.l.b16 %v345
        %v602 = vunpack.c.l.b16 %v346
        %v603 = vunpack.c.l.b16 %v347
        %v604 = vunpack.c.l.b16 %v348
        %v605 = vunpack.c.l.b16 %v349
        %v606 = vunpack.c.l.b16 %v350
        %v607 = vunpack.c.l.b16 %v351
        %v608 = vunpack.c.l.b16 %v352
        %v609 = vunpack.c.l.b16 %v353
        %v610 = vunpack.c.l.b16 %v354
        %v611 = vunpack.c.l.b16 %v355
        %v612 = vunpack.c.l.b16 %v356
        %v613 = vunpack.c.l.b16 %v357
        %v614 = vunpack.c.l.b16 %v358
        %v615 = vunpack.c.l.b16 %v359
        %v616 = vunpack.c.l.b16 %v360
        %v617 = vunpack.c.l.b16 %v361
        %v618 = vunpack.c.l.b16 %v362
        %v619 = vunpack.c.l.b16 %v363
        %v620 = vunpack.c.l.b16 %v364
        %v621 = vunpack.c.l.b16 %v365
        %v622 = vunpack.c.l.b16 %v366
        %v623 = vunpack.c.l.b16 %v367
        %v624 = vunpack.c.l.b16 %v368
        %v625 = vunpack.c.l.b16 %v369
        %v626 = vunpack.c.l.b16 %v370
        %v627 = vunpack.c.l.b16 %v371
        %v628 = vunpack.c.l.b16 %v372
        %v629 = vunpack.c.l.b16 %v373
        %v630 = vunpack.c.l.b16 %v374
        %v631 = vunpack.c.l.b16 %v375
        %v632 = vunpack.c.l.b16 %v376
        %v633 = vunpack.c.l.b16 %v377
        %v634 = vunpack.c.l.b16 %v378
        %v635 = vunpack.c.l.b16 %v379
        %v636 = vunpack.c.l.b16 %v380
        %v637 = vunpack.c.l.b16 %v381
        %v638 = vunpack.c.l.b16 %v382
        %v639 = vunpack.c.l.b16 %v383
        %v640 = vunpack.c.l.b16 %v384
        %v641 = vunpack.c.l.b16 %v385
        %v642 = vunpack.c.l.b16 %v386
        %v643 = vunpack.c.l.b16 %v387
        %v644 = vunpack.c.l.b16 %v388
        %v645 = vunpack.c.l.b16 %v389
        %v646 = vunpack.c.l.b16 %v390
        %v647 = vunpack.c.l.b16 %v391
        %v648 = vunpack.c.l.b16 %v392
        %v649 = vunpack.c.l.b16 %v393
        %v650 = vunpack.c.l.b16 %v394
        %v651 = vunpack.c.l.b16 %v395
        %v652 = vunpack.c.l.b16 %v396
        %v653 = vunpack.c.l.b16 %v397
        %v654 = vunpack.c.l.b16 %v398
        %v655 = vunpack.c.l.b16 %v399
        %v656 = vunpack.c.l.b16 %v400
        %v657 = vunpack.c.l.b16 %v401
        %v658 = vunpack.c.l.b16 %v402
        %v659 = vunpack.c.l.b16 %v403
        %v660 = vunpack.c.l.b16 %v404
        %v661 = vunpack.c.l.b16 %v405
        %v662 = vunpack.c.l.b16 %v406
        %v663 = vunpack.c.l.b16 %v407
        %v664 = vunpack.c.l.b16 %v408
        %v665 = vunpack.c.l.b16 %v409
        %v666 = vunpack.c.l.b16 %v410
        %v667 = vunpack.c.l.b16 %v411
        %v668 = vunpack.c.l.b16 %v412
        %v669 = vunpack.c.l.b16 %v413
        %v670 = vunpack.c.l.b16 %v414
        %v671 = vunpack.c.l.b16 %v415
        %v672 = vunpack.c.l.b16 %v416
        %v673 = vunpack.c.l.b16 %v417
        %v674 = vunpack.c.l.b16 %v418
        %v675 = vunpack.c.l.b16 %v419
        %v676 = vunpack.c.l.b16 %v420
        %v677 = vunpack.c.l.b16 %v421
        %v678 = vunpack.c.l.b16 %v422
        %v679 = vunpack.c.l.b16 %v423
        %v680 = vunpack.c.l.b16 %v424
        %v681 = vunpack.c.l.b16 %v425
        %v682 = vunpack.c.l.b16 %v426
        %v683 = vunpack.c.l.b16 %v427
        %v684 = vunpack.c.l.b16 %v428
        %v685 = vunpack.c.l.b16 %v429
        %v686 = vunpack.c.l.b16 %v430
        %v687 = vunpack.c.l.b16 %v431
        %v688 = vunpack.c.l.b16 %v432
        %v689 = vunpack.c.l.b16 %v433
        %v690 = vunpack.c.l.b16 %v434
        %v691 = vunpack.c.l.b16 %v435
        %v692 = vunpack.c.l.b16 %v436
        %v693 = vunpack.c.l.b16 %v437
        %v694 = vunpack.c.l.b16 %v438
        %v695 = vunpack.c.l.b16 %v439
        %v696 = vunpack.c.l.b16 %v440
        %v697 = vunpack.c.l.b16 %v441
        %v698 = vunpack.c.l.b16 %v442
        %v699 = vunpack.c.l.b16 %v443
        %v700 = vunpack.c.l.b16 %v444
        %v701 = vunpack.c.l.b16 %v445
        %v702 = vunpack.c.l.b16 %v446
        %v703 = vunpack.c.l.b16 %v447
        %v704 = vunpack.c.l.b16 %v448
        %v705 = vunpack.c.l.b16 %v449
        %v706 = vunpack.c.l.b16 %v450
        %v707 = vunpack.c.l.b16 %v451
        %v708 = vunpack.c.l.b16 %v452
        %v709 = vunpack.c.l.b16 %v453
        %v710 = vunpack.c.l.b16 %v454
        %v711 = vunpack.c.l.b16 %v455
        %v712 = vunpack.c.l.b16 %v456
        %v713 = vunpack.c.l.b16 %v457
        %v714 = vunpack.c.l.b16 %v458
        %v715 = vunpack.c.l.b16 %v459
        %v716 = vunpack.c.l.b16 %v460
        %v717 = vunpack.c.l.b16 %v461
        %v718 = vunpack.c.l.b16 %v462
        %v719 = vunpack.c.l.b16 %v463
        %v720 = vunpack.c.l.b16 %v464
        %v721 = vunpack.c.l.b16 %v465
        %v722 = vunpack.c.l.b16 %v466
        %v723 = vunpack.c.l.b16 %v467
        %v724 = vunpack.c.l.b16 %v468
        %v725 = vunpack.c.l.b16 %v469
        %v726 = vpack.c.b16 %v599, %v598
        %v727 = vpack.c.b16 %v601, %v600
        %v728 = vpack.c.b16 %v603, %v602
        %v729 = vpack.c.b16 %v605, %v604
        %v730 = vpack.c.b16 %v607, %v606
        %v731 = vpack.c.b16 %v609, %v608
        %v732 = vpack.c.b16 %v611, %v610
        %v733 = vpack.c.b16 %v613, %v612
        %v734 = vpack.c.b16 %v615, %v614
        %v735 = vpack.c.b16 %v617, %v616
        %v736 = vpack.c.b16 %v619, %v618
        %v737 = vpack.c.b16 %v621, %v620
        %v738 = vpack.c.b16 %v623, %v622
        %v739 = vpack.c.b16 %v625, %v624
        %v740 = vpack.c.b16 %v627, %v626
        %v741 = vpack.c.b16 %v629, %v628
        %v742 = vpack.c.b16 %v631, %v630
        %v743 = vpack.c.b16 %v633, %v632
        %v744 = vpack.c.b16 %v635, %v634
        %v745 = vpack.c.b16 %v637, %v636
        %v746 = vpack.c.b16 %v639, %v638
        %v747 = vpack.c.b16 %v641, %v640
        %v748 = vpack.c.b16 %v643, %v642
        %v749 = vpack.c.b16 %v645, %v644
        %v750 = vpack.c.b16 %v647, %v646
        %v751 = vpack.c.b16 %v649, %v648
        %v752 = vpack.c.b16 %v651, %v650
        %v753 = vpack.c.b16 %v653, %v652
        %v754 = vpack.c.b16 %v655, %v654
        %v755 = vpack.c.b16 %v657, %v656
        %v756 = vpack.c.b16 %v659, %v658
        %v757 = vpack.c.b16 %v661, %v660
        %v758 = vpack.c.b16 %v663, %v662
        %v759 = vpack.c.b16 %v665, %v664
        %v760 = vpack.c.b16 %v667, %v666
        %v761 = vpack.c.b16 %v669, %v668
        %v762 = vpack.c.b16 %v671, %v670
        %v763 = vpack.c.b16 %v673, %v672
        %v764 = vpack.c.b16 %v675, %v674
        %v765 = vpack.c.b16 %v677, %v676
        %v766 = vpack.c.b16 %v679, %v678
        %v767 = vpack.c.b16 %v681, %v680
        %v768 = vpack.c.b16 %v683, %v682
        %v769 = vpack.c.b16 %v685, %v684
        %v770 = vpack.c.b16 %v687, %v686
        %v771 = vpack.c.b16 %v689, %v688
        %v772 = vpack.c.b16 %v691, %v690
        %v773 = vpack.c.b16 %v693, %v692
        %v774 = vpack.c.b16 %v695, %v694
        %v775 = vpack.c.b16 %v697, %v696
        %v776 = vpack.c.b16 %v699, %v698
        %v777 = vpack.c.b16 %v701, %v700
        %v778 = vpack.c.b16 %v703, %v702
        %v779 = vpack.c.b16 %v705, %v704
        %v780 = vpack.c.b16 %v707, %v706
        %v781 = vpack.c.b16 %v709, %v708
        %v782 = vpack.c.b16 %v711, %v710
        %v783 = vpack.c.b16 %v713, %v712
        %v784 = vpack.c.b16 %v715, %v714
        %v785 = vpack.c.b16 %v717, %v716
        %v786 = vpack.c.b16 %v719, %v718
        %v787 = vpack.c.b16 %v721, %v720
        %v788 = vpack.c.b16 %v723, %v722
        %v789 = vpack.c.b16 %v725, %v724
        %854 = vmatprep.subr.bf16.mxu0 0
        %855 = vmatpush1.bf16.msra.mxu0 %v726
        %856 = vmatprep.subr.bf16.mxu0 0
        %857 = vmatpush1.bf16.msra.mxu0 %v727
        %858 = vmatprep.subr.bf16.mxu0 0
        %859 = vmatpush1.bf16.msra.mxu0 %v728
        %860 = vmatprep.subr.bf16.mxu0 0
        %861 = vmatpush1.bf16.msra.mxu0 %v729
        %862 = vmatprep.subr.bf16.mxu0 0
        %863 = vmatpush1.bf16.msra.mxu0 %v730
        %864 = vmatprep.subr.bf16.mxu0 0
        %865 = vmatpush1.bf16.msra.mxu0 %v731
        %866 = vmatprep.subr.bf16.mxu0 0
        %867 = vmatpush1.bf16.msra.mxu0 %v732
        %868 = vmatprep.subr.bf16.mxu0 0
        %869 = vmatpush1.bf16.msra.mxu0 %v733
        %870 = vmatprep.subr.bf16.mxu0 0
        %871 = vmatpush1.bf16.msra.mxu0 %v734
        %872 = vmatprep.subr.bf16.mxu0 0
        %873 = vmatpush1.bf16.msra.mxu0 %v735
        %874 = vmatprep.subr.bf16.mxu0 0
        %875 = vmatpush1.bf16.msra.mxu0 %v736
        %876 = vmatprep.subr.bf16.mxu0 0
        %877 = vmatpush1.bf16.msra.mxu0 %v737
        %878 = vmatprep.subr.bf16.mxu0 0
        %879 = vmatpush1.bf16.msra.mxu0 %v738
        %880 = vmatprep.subr.bf16.mxu0 0
        %881 = vmatpush1.bf16.msra.mxu0 %v739
        %882 = vmatprep.subr.bf16.mxu0 0
        %883 = vmatpush1.bf16.msra.mxu0 %v740
        %884 = vmatprep.subr.bf16.mxu0 0
        %885 = vmatpush1.bf16.msra.mxu0 %v741
        %886 = vmatprep.mubr.bf16.mxu0 %v335
        %887 = vmatmul.mubr.bf16.gmra.mrb[0].mxu0 %v334
        %v888 = vpop.f32.mrb[0].mxu0
        %v889 = vadd.f32 0.0, %v888
        %v890 = vpop.f32.mrb[0].mxu0
        %v891 = vpop.f32.mrb[0].mxu0
        %v892 = vpop.f32.mrb[0].mxu0
        %893 = vdwg.mxu0
        %894 = vmatprep.subr.bf16.mxu0 0
        %895 = vmatpush1.bf16.msra.mxu0 %v742
        %896 = vmatprep.subr.bf16.mxu0 0
        %897 = vmatpush1.bf16.msra.mxu0 %v743
        %898 = vmatprep.subr.bf16.mxu0 0
        %899 = vmatpush1.bf16.msra.mxu0 %v744
        %900 = vmatprep.subr.bf16.mxu0 0
        %901 = vmatpush1.bf16.msra.mxu0 %v745
        %902 = vmatprep.subr.bf16.mxu0 0
        %903 = vmatpush1.bf16.msra.mxu0 %v746
        %904 = vmatprep.subr.bf16.mxu0 0
        %905 = vmatpush1.bf16.msra.mxu0 %v747
        %906 = vmatprep.subr.bf16.mxu0 0
        %907 = vmatpush1.bf16.msra.mxu0 %v748
        %908 = vmatprep.subr.bf16.mxu0 0
        %909 = vmatpush1.bf16.msra.mxu0 %v749
        %910 = vmatprep.subr.bf16.mxu0 0
        %911 = vmatpush1.bf16.msra.mxu0 %v750
        %912 = vmatprep.subr.bf16.mxu0 0
        %913 = vmatpush1.bf16.msra.mxu0 %v751
        %914 = vmatprep.subr.bf16.mxu0 0
        %915 = vmatpush1.bf16.msra.mxu0 %v752
        %916 = vmatprep.subr.bf16.mxu0 0
        %917 = vmatpush1.bf16.msra.mxu0 %v753
        %918 = vmatprep.subr.bf16.mxu0 0
        %919 = vmatpush1.bf16.msra.mxu0 %v754
        %920 = vmatprep.subr.bf16.mxu0 0
        %921 = vmatpush1.bf16.msra.mxu0 %v755
        %922 = vmatprep.subr.bf16.mxu0 0
        %923 = vmatpush1.bf16.msra.mxu0 %v756
        %924 = vmatprep.subr.bf16.mxu0 0
        %925 = vmatpush1.bf16.msra.mxu0 %v757
        %926 = vmatprep.mubr.bf16.mxu0 %v337
        %927 = vmatmul.mubr.bf16.gmra.mrb[0].mxu0 %v336
        %v928 = vpop.f32.mrb[0].mxu0
        %v929 = vadd.f32 %v889, %v928
        %v930 = vpop.f32.mrb[0].mxu0
        %v931 = vpop.f32.mrb[0].mxu0
        %v932 = vpop.f32.mrb[0].mxu0
        %933 = vdwg.mxu0
        %934 = vmatprep.subr.bf16.mxu0 0
        %935 = vmatpush1.bf16.msra.mxu0 %v758
        %936 = vmatprep.subr.bf16.mxu0 0
        %937 = vmatpush1.bf16.msra.mxu0 %v759
        %938 = vmatprep.subr.bf16.mxu0 0
        %939 = vmatpush1.bf16.msra.mxu0 %v760
        %940 = vmatprep.subr.bf16.mxu0 0
        %941 = vmatpush1.bf16.msra.mxu0 %v761
        %942 = vmatprep.subr.bf16.mxu0 0
        %943 = vmatpush1.bf16.msra.mxu0 %v762
        %944 = vmatprep.subr.bf16.mxu0 0
        %945 = vmatpush1.bf16.msra.mxu0 %v763
        %946 = vmatprep.subr.bf16.mxu0 0
        %947 = vmatpush1.bf16.msra.mxu0 %v764
        %948 = vmatprep.subr.bf16.mxu0 0
        %949 = vmatpush1.bf16.msra.mxu0 %v765
        %950 = vmatprep.subr.bf16.mxu0 0
        %951 = vmatpush1.bf16.msra.mxu0 %v766
        %952 = vmatprep.subr.bf16.mxu0 0
        %953 = vmatpush1.bf16.msra.mxu0 %v767
        %954 = vmatprep.subr.bf16.mxu0 0
        %955 = vmatpush1.bf16.msra.mxu0 %v768
        %956 = vmatprep.subr.bf16.mxu0 0
        %957 = vmatpush1.bf16.msra.mxu0 %v769
        %958 = vmatprep.subr.bf16.mxu0 0
        %959 = vmatpush1.bf16.msra.mxu0 %v770
        %960 = vmatprep.subr.bf16.mxu0 0
        %961 = vmatpush1.bf16.msra.mxu0 %v771
        %962 = vmatprep.subr.bf16.mxu0 0
        %963 = vmatpush1.bf16.msra.mxu0 %v772
        %964 = vmatprep.subr.bf16.mxu0 0
        %965 = vmatpush1.bf16.msra.mxu0 %v773
        %966 = vmatprep.mubr.bf16.mxu0 %v339
        %967 = vmatmul.mubr.bf16.gmra.mrb[0].mxu0 %v338
        %v968 = vpop.f32.mrb[0].mxu0
        %v969 = vadd.f32 %v929, %v968
        %v970 = vpop.f32.mrb[0].mxu0
        %v971 = vpop.f32.mrb[0].mxu0
        %v972 = vpop.f32.mrb[0].mxu0
        %973 = vdwg.mxu0
        %974 = vmatprep.subr.bf16.mxu0 0
        %975 = vmatpush1.bf16.msra.mxu0 %v774
        %976 = vmatprep.subr.bf16.mxu0 0
        %977 = vmatpush1.bf16.msra.mxu0 %v775
        %978 = vmatprep.subr.bf16.mxu0 0
        %979 = vmatpush1.bf16.msra.mxu0 %v776
        %980 = vmatprep.subr.bf16.mxu0 0
        %981 = vmatpush1.bf16.msra.mxu0 %v777
        %982 = vmatprep.subr.bf16.mxu0 0
        %983 = vmatpush1.bf16.msra.mxu0 %v778
        %984 = vmatprep.subr.bf16.mxu0 0
        %985 = vmatpush1.bf16.msra.mxu0 %v779
        %986 = vmatprep.subr.bf16.mxu0 0
        %987 = vmatpush1.bf16.msra.mxu0 %v780
        %988 = vmatprep.subr.bf16.mxu0 0
        %989 = vmatpush1.bf16.msra.mxu0 %v781
        %990 = vmatprep.subr.bf16.mxu0 0
        %991 = vmatpush1.bf16.msra.mxu0 %v782
        %992 = vmatprep.subr.bf16.mxu0 0
        %993 = vmatpush1.bf16.msra.mxu0 %v783
        %994 = vmatprep.subr.bf16.mxu0 0
        %995 = vmatpush1.bf16.msra.mxu0 %v784
        %996 = vmatprep.subr.bf16.mxu0 0
        %997 = vmatpush1.bf16.msra.mxu0 %v785
        %998 = vmatprep.subr.bf16.mxu0 0
        %999 = vmatpush1.bf16.msra.mxu0 %v786
        %1000 = vmatprep.subr.bf16.mxu0 0
        %1001 = vmatpush1.bf16.msra.mxu0 %v787
        %1002 = vmatprep.subr.bf16.mxu0 0
        %1003 = vmatpush1.bf16.msra.mxu0 %v788
        %1004 = vmatprep.subr.bf16.mxu0 0
        %1005 = vmatpush1.bf16.msra.mxu0 %v789
        %1006 = vmatprep.mubr.bf16.mxu0 %v341
        %1007 = vmatmul.mubr.bf16.gmra.mrb[0].mxu0 %v340
        %v1008 = vpop.f32.mrb[0].mxu0
        %v1009 = vadd.f32 %v969, %v1008
        %v1010 = vpop.f32.mrb[0].mxu0
        %v1011 = vpop.f32.mrb[0].mxu0
        %v1012 = vpop.f32.mrb[0].mxu0
        %1013 = vdwg.mxu0
        %v1014 = vmul.f32 %v1009, 0.25
        %v1015 = vmax.f32 %v1009, %v1014
        %v1016 = vmul.f32 %v1015, %v1015
        %vm1017 = vcmask 1041408
        %v1018 = vsel %vm1017, %v1016, 0.0
        %1019 = vadd.xlane.f32.xlu0 %v1018
        %v1020 = vpop.xlane.xlu0 %1019
        %v1021 = vrsqrt.pop %v1020
        %v1022 = vmul.f32 %v1020, %v1021
        %vm1023 = vcmp.eq.f32.partialorder %v1020, inf
        %v1024 = vsel %vm1023, %v1020, %v1022
        %vm1025 = vcmp.eq.f32.partialorder %v1020, 0.0
        %v1026 = vand.u32 %v1020, 2147483648
        %v1027 = vsel %vm1025, %v1026, %v1024
        %v1028 = vadd.f32 %v1027, 1e-08
        %v1029 = vrcp.pop %v1028
        %v1030 = vmul.f32 %v1015, %v1029
        %1031 = vst [vmem:[%s282] sm:$0x3] %v1030
        %v1032 = vld [vmem:[%s236] sm:$0xf]
        %v1033 = vld [vmem:[%s236 + $0x4] sm:$0xf]
        %v1034 = vld [vmem:[%s236 + $0x8] sm:$0xf]
        %v1035 = vld [vmem:[%s236 + $0xc] sm:$0xf]
        %v1036 = vld [vmem:[%s236 + $0x10] sm:$0xf]
        %v1037 = vld [vmem:[%s236 + $0x14] sm:$0xf]
        %v1038 = vld [vmem:[%s236 + $0x18] sm:$0xf]
        %v1039 = vld [vmem:[%s236 + $0x1c] sm:$0xf]
        %v1040 = vld [vmem:[%s236 + $0x20] sm:$0xf]
        %v1041 = vld [vmem:[%s236 + $0x24] sm:$0xf]
        %v1042 = vld [vmem:[%s236 + $0x28] sm:$0xf]
        %v1043 = vld [vmem:[%s236 + $0x2c] sm:$0xf]
        %v1044 = vld [vmem:[%s236 + $0x30] sm:$0xf]
        %v1045 = vld [vmem:[%s236 + $0x34] sm:$0xf]
        %v1046 = vld [vmem:[%s236 + $0x38] sm:$0xf]
        %v1047 = vld [vmem:[%s236 + $0x3c] sm:$0xf]
        %v1048 = vld [vmem:[%s236 + $0x40] sm:$0xf]
        %v1049 = vld [vmem:[%s236 + $0x44] sm:$0xf]
        %v1050 = vld [vmem:[%s236 + $0x48] sm:$0xf]
        %v1051 = vld [vmem:[%s236 + $0x4c] sm:$0xf]
        %v1052 = vld [vmem:[%s236 + $0x50] sm:$0xf]
        %v1053 = vld [vmem:[%s236 + $0x54] sm:$0xf]
        %v1054 = vld [vmem:[%s236 + $0x58] sm:$0xf]
        %v1055 = vld [vmem:[%s236 + $0x5c] sm:$0xf]
        %v1056 = vld [vmem:[%s236 + $0x60] sm:$0xf]
        %v1057 = vld [vmem:[%s236 + $0x64] sm:$0xf]
        %v1058 = vld [vmem:[%s236 + $0x68] sm:$0xf]
        %v1059 = vld [vmem:[%s236 + $0x6c] sm:$0xf]
        %v1060 = vld [vmem:[%s236 + $0x70] sm:$0xf]
        %v1061 = vld [vmem:[%s236 + $0x74] sm:$0xf]
        %v1062 = vld [vmem:[%s236 + $0x78] sm:$0xf]
        %v1063 = vld [vmem:[%s236 + $0x7c] sm:$0xf]
        %v1064 = vld [vmem:[%s236 + $0x80] sm:$0xf]
        %v1065 = vld [vmem:[%s236 + $0x84] sm:$0xf]
        %v1066 = vld [vmem:[%s236 + $0x88] sm:$0xf]
        %v1067 = vld [vmem:[%s236 + $0x8c] sm:$0xf]
        %v1068 = vld [vmem:[%s236 + $0x90] sm:$0xf]
        %v1069 = vld [vmem:[%s236 + $0x94] sm:$0xf]
        %v1070 = vld [vmem:[%s236 + $0x98] sm:$0xf]
        %v1071 = vld [vmem:[%s236 + $0x9c] sm:$0xf]
        %v1072 = vld [vmem:[%s236 + $0xa0] sm:$0xf]
        %v1073 = vld [vmem:[%s236 + $0xa4] sm:$0xf]
        %v1074 = vld [vmem:[%s236 + $0xa8] sm:$0xf]
        %v1075 = vld [vmem:[%s236 + $0xac] sm:$0xf]
        %v1076 = vld [vmem:[%s236 + $0xb0] sm:$0xf]
        %v1077 = vld [vmem:[%s236 + $0xb4] sm:$0xf]
        %v1078 = vld [vmem:[%s236 + $0xb8] sm:$0xf]
        %v1079 = vld [vmem:[%s236 + $0xbc] sm:$0xf]
        %v1080 = vld [vmem:[%s236 + $0xc0] sm:$0xf]
        %v1081 = vld [vmem:[%s236 + $0xc4] sm:$0xf]
        %v1082 = vld [vmem:[%s236 + $0xc8] sm:$0xf]
        %v1083 = vld [vmem:[%s236 + $0xcc] sm:$0xf]
        %v1084 = vld [vmem:[%s236 + $0xd0] sm:$0xf]
        %v1085 = vld [vmem:[%s236 + $0xd4] sm:$0xf]
        %v1086 = vld [vmem:[%s236 + $0xd8] sm:$0xf]
        %v1087 = vld [vmem:[%s236 + $0xdc] sm:$0xf]
        %v1088 = vld [vmem:[%s236 + $0xe0] sm:$0xf]
        %v1089 = vld [vmem:[%s236 + $0xe4] sm:$0xf]
        %v1090 = vld [vmem:[%s236 + $0xe8] sm:$0xf]
        %v1091 = vld [vmem:[%s236 + $0xec] sm:$0xf]
        %v1092 = vld [vmem:[%s236 + $0xf0] sm:$0xf]
        %v1093 = vld [vmem:[%s236 + $0xf4] sm:$0xf]
        %v1094 = vld [vmem:[%s236 + $0xf8] sm:$0xf]
        %v1095 = vld [vmem:[%s236 + $0xfc] sm:$0xf]
        %v1096 = vld [vmem:[%s236 + $0x100] sm:$0xf]
        %v1097 = vld [vmem:[%s236 + $0x104] sm:$0xf]
        %v1098 = vld [vmem:[%s236 + $0x108] sm:$0xf]
        %v1099 = vld [vmem:[%s236 + $0x10c] sm:$0xf]
        %v1100 = vld [vmem:[%s236 + $0x110] sm:$0xf]
        %v1101 = vld [vmem:[%s236 + $0x114] sm:$0xf]
        %v1102 = vld [vmem:[%s236 + $0x118] sm:$0xf]
        %v1103 = vld [vmem:[%s236 + $0x11c] sm:$0xf]
        %v1104 = vld [vmem:[%s236 + $0x120] sm:$0xf]
        %v1105 = vld [vmem:[%s236 + $0x124] sm:$0xf]
        %v1106 = vld [vmem:[%s236 + $0x128] sm:$0xf]
        %v1107 = vld [vmem:[%s236 + $0x12c] sm:$0xf]
        %v1108 = vld [vmem:[%s236 + $0x130] sm:$0xf]
        %v1109 = vld [vmem:[%s236 + $0x134] sm:$0xf]
        %v1110 = vld [vmem:[%s236 + $0x138] sm:$0xf]
        %v1111 = vld [vmem:[%s236 + $0x13c] sm:$0xf]
        %v1112 = vld [vmem:[%s236 + $0x140] sm:$0xf]
        %v1113 = vld [vmem:[%s236 + $0x144] sm:$0xf]
        %v1114 = vld [vmem:[%s236 + $0x148] sm:$0xf]
        %v1115 = vld [vmem:[%s236 + $0x14c] sm:$0xf]
        %v1116 = vld [vmem:[%s236 + $0x150] sm:$0xf]
        %v1117 = vld [vmem:[%s236 + $0x154] sm:$0xf]
        %v1118 = vld [vmem:[%s236 + $0x158] sm:$0xf]
        %v1119 = vld [vmem:[%s236 + $0x15c] sm:$0xf]
        %v1120 = vld [vmem:[%s236 + $0x160] sm:$0xf]
        %v1121 = vld [vmem:[%s236 + $0x164] sm:$0xf]
        %v1122 = vld [vmem:[%s236 + $0x168] sm:$0xf]
        %v1123 = vld [vmem:[%s236 + $0x16c] sm:$0xf]
        %v1124 = vld [vmem:[%s236 + $0x170] sm:$0xf]
        %v1125 = vld [vmem:[%s236 + $0x174] sm:$0xf]
        %v1126 = vld [vmem:[%s236 + $0x178] sm:$0xf]
        %v1127 = vld [vmem:[%s236 + $0x17c] sm:$0xf]
        %v1128 = vld [vmem:[%s236 + $0x180] sm:$0xf]
        %v1129 = vld [vmem:[%s236 + $0x184] sm:$0xf]
        %v1130 = vld [vmem:[%s236 + $0x188] sm:$0xf]
        %v1131 = vld [vmem:[%s236 + $0x18c] sm:$0xf]
        %v1132 = vld [vmem:[%s236 + $0x190] sm:$0xf]
        %v1133 = vld [vmem:[%s236 + $0x194] sm:$0xf]
        %v1134 = vld [vmem:[%s236 + $0x198] sm:$0xf]
        %v1135 = vld [vmem:[%s236 + $0x19c] sm:$0xf]
        %v1136 = vld [vmem:[%s236 + $0x1a0] sm:$0xf]
        %v1137 = vld [vmem:[%s236 + $0x1a4] sm:$0xf]
        %v1138 = vld [vmem:[%s236 + $0x1a8] sm:$0xf]
        %v1139 = vld [vmem:[%s236 + $0x1ac] sm:$0xf]
        %v1140 = vld [vmem:[%s236 + $0x1b0] sm:$0xf]
        %v1141 = vld [vmem:[%s236 + $0x1b4] sm:$0xf]
        %v1142 = vld [vmem:[%s236 + $0x1b8] sm:$0xf]
        %v1143 = vld [vmem:[%s236 + $0x1bc] sm:$0xf]
        %v1144 = vld [vmem:[%s236 + $0x1c0] sm:$0xf]
        %v1145 = vld [vmem:[%s236 + $0x1c4] sm:$0xf]
        %v1146 = vld [vmem:[%s236 + $0x1c8] sm:$0xf]
        %v1147 = vld [vmem:[%s236 + $0x1cc] sm:$0xf]
        %v1148 = vld [vmem:[%s236 + $0x1d0] sm:$0xf]
        %v1149 = vld [vmem:[%s236 + $0x1d4] sm:$0xf]
        %v1150 = vld [vmem:[%s236 + $0x1d8] sm:$0xf]
        %v1151 = vld [vmem:[%s236 + $0x1dc] sm:$0xf]
        %v1152 = vld [vmem:[%s236 + $0x1e0] sm:$0xf]
        %v1153 = vld [vmem:[%s236 + $0x1e4] sm:$0xf]
        %v1154 = vld [vmem:[%s236 + $0x1e8] sm:$0xf]
        %v1155 = vld [vmem:[%s236 + $0x1ec] sm:$0xf]
        %v1156 = vld [vmem:[%s236 + $0x1f0] sm:$0xf]
        %v1157 = vld [vmem:[%s236 + $0x1f4] sm:$0xf]
        %v1158 = vld [vmem:[%s236 + $0x1f8] sm:$0xf]
        %v1159 = vld [vmem:[%s236 + $0x1fc] sm:$0xf]
        %v1288 = vunpack.c.l.b16 %v1032
        %v1289 = vunpack.c.l.b16 %v1033
        %v1290 = vunpack.c.l.b16 %v1034
        %v1291 = vunpack.c.l.b16 %v1035
        %v1292 = vunpack.c.l.b16 %v1036
        %v1293 = vunpack.c.l.b16 %v1037
        %v1294 = vunpack.c.l.b16 %v1038
        %v1295 = vunpack.c.l.b16 %v1039
        %v1296 = vunpack.c.l.b16 %v1040
        %v1297 = vunpack.c.l.b16 %v1041
        %v1298 = vunpack.c.l.b16 %v1042
        %v1299 = vunpack.c.l.b16 %v1043
        %v1300 = vunpack.c.l.b16 %v1044
        %v1301 = vunpack.c.l.b16 %v1045
        %v1302 = vunpack.c.l.b16 %v1046
        %v1303 = vunpack.c.l.b16 %v1047
        %v1304 = vunpack.c.l.b16 %v1048
        %v1305 = vunpack.c.l.b16 %v1049
        %v1306 = vunpack.c.l.b16 %v1050
        %v1307 = vunpack.c.l.b16 %v1051
        %v1308 = vunpack.c.l.b16 %v1052
        %v1309 = vunpack.c.l.b16 %v1053
        %v1310 = vunpack.c.l.b16 %v1054
        %v1311 = vunpack.c.l.b16 %v1055
        %v1312 = vunpack.c.l.b16 %v1056
        %v1313 = vunpack.c.l.b16 %v1057
        %v1314 = vunpack.c.l.b16 %v1058
        %v1315 = vunpack.c.l.b16 %v1059
        %v1316 = vunpack.c.l.b16 %v1060
        %v1317 = vunpack.c.l.b16 %v1061
        %v1318 = vunpack.c.l.b16 %v1062
        %v1319 = vunpack.c.l.b16 %v1063
        %v1320 = vunpack.c.l.b16 %v1064
        %v1321 = vunpack.c.l.b16 %v1065
        %v1322 = vunpack.c.l.b16 %v1066
        %v1323 = vunpack.c.l.b16 %v1067
        %v1324 = vunpack.c.l.b16 %v1068
        %v1325 = vunpack.c.l.b16 %v1069
        %v1326 = vunpack.c.l.b16 %v1070
        %v1327 = vunpack.c.l.b16 %v1071
        %v1328 = vunpack.c.l.b16 %v1072
        %v1329 = vunpack.c.l.b16 %v1073
        %v1330 = vunpack.c.l.b16 %v1074
        %v1331 = vunpack.c.l.b16 %v1075
        %v1332 = vunpack.c.l.b16 %v1076
        %v1333 = vunpack.c.l.b16 %v1077
        %v1334 = vunpack.c.l.b16 %v1078
        %v1335 = vunpack.c.l.b16 %v1079
        %v1336 = vunpack.c.l.b16 %v1080
        %v1337 = vunpack.c.l.b16 %v1081
        %v1338 = vunpack.c.l.b16 %v1082
        %v1339 = vunpack.c.l.b16 %v1083
        %v1340 = vunpack.c.l.b16 %v1084
        %v1341 = vunpack.c.l.b16 %v1085
        %v1342 = vunpack.c.l.b16 %v1086
        %v1343 = vunpack.c.l.b16 %v1087
        %v1344 = vunpack.c.l.b16 %v1088
        %v1345 = vunpack.c.l.b16 %v1089
        %v1346 = vunpack.c.l.b16 %v1090
        %v1347 = vunpack.c.l.b16 %v1091
        %v1348 = vunpack.c.l.b16 %v1092
        %v1349 = vunpack.c.l.b16 %v1093
        %v1350 = vunpack.c.l.b16 %v1094
        %v1351 = vunpack.c.l.b16 %v1095
        %v1352 = vunpack.c.l.b16 %v1096
        %v1353 = vunpack.c.l.b16 %v1097
        %v1354 = vunpack.c.l.b16 %v1098
        %v1355 = vunpack.c.l.b16 %v1099
        %v1356 = vunpack.c.l.b16 %v1100
        %v1357 = vunpack.c.l.b16 %v1101
        %v1358 = vunpack.c.l.b16 %v1102
        %v1359 = vunpack.c.l.b16 %v1103
        %v1360 = vunpack.c.l.b16 %v1104
        %v1361 = vunpack.c.l.b16 %v1105
        %v1362 = vunpack.c.l.b16 %v1106
        %v1363 = vunpack.c.l.b16 %v1107
        %v1364 = vunpack.c.l.b16 %v1108
        %v1365 = vunpack.c.l.b16 %v1109
        %v1366 = vunpack.c.l.b16 %v1110
        %v1367 = vunpack.c.l.b16 %v1111
        %v1368 = vunpack.c.l.b16 %v1112
        %v1369 = vunpack.c.l.b16 %v1113
        %v1370 = vunpack.c.l.b16 %v1114
        %v1371 = vunpack.c.l.b16 %v1115
        %v1372 = vunpack.c.l.b16 %v1116
        %v1373 = vunpack.c.l.b16 %v1117
        %v1374 = vunpack.c.l.b16 %v1118
        %v1375 = vunpack.c.l.b16 %v1119
        %v1376 = vunpack.c.l.b16 %v1120
        %v1377 = vunpack.c.l.b16 %v1121
        %v1378 = vunpack.c.l.b16 %v1122
        %v1379 = vunpack.c.l.b16 %v1123
        %v1380 = vunpack.c.l.b16 %v1124
        %v1381 = vunpack.c.l.b16 %v1125
        %v1382 = vunpack.c.l.b16 %v1126
        %v1383 = vunpack.c.l.b16 %v1127
        %v1384 = vunpack.c.l.b16 %v1128
        %v1385 = vunpack.c.l.b16 %v1129
        %v1386 = vunpack.c.l.b16 %v1130
        %v1387 = vunpack.c.l.b16 %v1131
        %v1388 = vunpack.c.l.b16 %v1132
        %v1389 = vunpack.c.l.b16 %v1133
        %v1390 = vunpack.c.l.b16 %v1134
        %v1391 = vunpack.c.l.b16 %v1135
        %v1392 = vunpack.c.l.b16 %v1136
        %v1393 = vunpack.c.l.b16 %v1137
        %v1394 = vunpack.c.l.b16 %v1138
        %v1395 = vunpack.c.l.b16 %v1139
        %v1396 = vunpack.c.l.b16 %v1140
        %v1397 = vunpack.c.l.b16 %v1141
        %v1398 = vunpack.c.l.b16 %v1142
        %v1399 = vunpack.c.l.b16 %v1143
        %v1400 = vunpack.c.l.b16 %v1144
        %v1401 = vunpack.c.l.b16 %v1145
        %v1402 = vunpack.c.l.b16 %v1146
        %v1403 = vunpack.c.l.b16 %v1147
        %v1404 = vunpack.c.l.b16 %v1148
        %v1405 = vunpack.c.l.b16 %v1149
        %v1406 = vunpack.c.l.b16 %v1150
        %v1407 = vunpack.c.l.b16 %v1151
        %v1408 = vunpack.c.l.b16 %v1152
        %v1409 = vunpack.c.l.b16 %v1153
        %v1410 = vunpack.c.l.b16 %v1154
        %v1411 = vunpack.c.l.b16 %v1155
        %v1412 = vunpack.c.l.b16 %v1156
        %v1413 = vunpack.c.l.b16 %v1157
        %v1414 = vunpack.c.l.b16 %v1158
        %v1415 = vunpack.c.l.b16 %v1159
        %v1416 = vpack.c.b16 %v1289, %v1288
        %v1417 = vpack.c.b16 %v1291, %v1290
        %v1418 = vpack.c.b16 %v1293, %v1292
        %v1419 = vpack.c.b16 %v1295, %v1294
        %v1420 = vpack.c.b16 %v1297, %v1296
        %v1421 = vpack.c.b16 %v1299, %v1298
        %v1422 = vpack.c.b16 %v1301, %v1300
        %v1423 = vpack.c.b16 %v1303, %v1302
        %v1424 = vpack.c.b16 %v1305, %v1304
        %v1425 = vpack.c.b16 %v1307, %v1306
        %v1426 = vpack.c.b16 %v1309, %v1308
        %v1427 = vpack.c.b16 %v1311, %v1310
        %v1428 = vpack.c.b16 %v1313, %v1312
        %v1429 = vpack.c.b16 %v1315, %v1314
        %v1430 = vpack.c.b16 %v1317, %v1316
        %v1431 = vpack.c.b16 %v1319, %v1318
        %v1432 = vpack.c.b16 %v1321, %v1320
        %v1433 = vpack.c.b16 %v1323, %v1322
        %v1434 = vpack.c.b16 %v1325, %v1324
        %v1435 = vpack.c.b16 %v1327, %v1326
        %v1436 = vpack.c.b16 %v1329, %v1328
        %v1437 = vpack.c.b16 %v1331, %v1330
        %v1438 = vpack.c.b16 %v1333, %v1332
        %v1439 = vpack.c.b16 %v1335, %v1334
        %v1440 = vpack.c.b16 %v1337, %v1336
        %v1441 = vpack.c.b16 %v1339, %v1338
        %v1442 = vpack.c.b16 %v1341, %v1340
        %v1443 = vpack.c.b16 %v1343, %v1342
        %v1444 = vpack.c.b16 %v1345, %v1344
        %v1445 = vpack.c.b16 %v1347, %v1346
        %v1446 = vpack.c.b16 %v1349, %v1348
        %v1447 = vpack.c.b16 %v1351, %v1350
        %v1448 = vpack.c.b16 %v1353, %v1352
        %v1449 = vpack.c.b16 %v1355, %v1354
        %v1450 = vpack.c.b16 %v1357, %v1356
        %v1451 = vpack.c.b16 %v1359, %v1358
        %v1452 = vpack.c.b16 %v1361, %v1360
        %v1453 = vpack.c.b16 %v1363, %v1362
        %v1454 = vpack.c.b16 %v1365, %v1364
        %v1455 = vpack.c.b16 %v1367, %v1366
        %v1456 = vpack.c.b16 %v1369, %v1368
        %v1457 = vpack.c.b16 %v1371, %v1370
        %v1458 = vpack.c.b16 %v1373, %v1372
        %v1459 = vpack.c.b16 %v1375, %v1374
        %v1460 = vpack.c.b16 %v1377, %v1376
        %v1461 = vpack.c.b16 %v1379, %v1378
        %v1462 = vpack.c.b16 %v1381, %v1380
        %v1463 = vpack.c.b16 %v1383, %v1382
        %v1464 = vpack.c.b16 %v1385, %v1384
        %v1465 = vpack.c.b16 %v1387, %v1386
        %v1466 = vpack.c.b16 %v1389, %v1388
        %v1467 = vpack.c.b16 %v1391, %v1390
        %v1468 = vpack.c.b16 %v1393, %v1392
        %v1469 = vpack.c.b16 %v1395, %v1394
        %v1470 = vpack.c.b16 %v1397, %v1396
        %v1471 = vpack.c.b16 %v1399, %v1398
        %v1472 = vpack.c.b16 %v1401, %v1400
        %v1473 = vpack.c.b16 %v1403, %v1402
        %v1474 = vpack.c.b16 %v1405, %v1404
        %v1475 = vpack.c.b16 %v1407, %v1406
        %v1476 = vpack.c.b16 %v1409, %v1408
        %v1477 = vpack.c.b16 %v1411, %v1410
        %v1478 = vpack.c.b16 %v1413, %v1412
        %v1479 = vpack.c.b16 %v1415, %v1414
        %1544 = vmatprep.subr.bf16.mxu0 0
        %1545 = vmatpush1.bf16.msra.mxu0 %v1416
        %1546 = vmatprep.subr.bf16.mxu0 0
        %1547 = vmatpush1.bf16.msra.mxu0 %v1417
        %1548 = vmatprep.subr.bf16.mxu0 0
        %1549 = vmatpush1.bf16.msra.mxu0 %v1418
        %1550 = vmatprep.subr.bf16.mxu0 0
        %1551 = vmatpush1.bf16.msra.mxu0 %v1419
        %1552 = vmatprep.subr.bf16.mxu0 0
        %1553 = vmatpush1.bf16.msra.mxu0 %v1420
        %1554 = vmatprep.subr.bf16.mxu0 0
        %1555 = vmatpush1.bf16.msra.mxu0 %v1421
        %1556 = vmatprep.subr.bf16.mxu0 0
        %1557 = vmatpush1.bf16.msra.mxu0 %v1422
        %1558 = vmatprep.subr.bf16.mxu0 0
        %1559 = vmatpush1.bf16.msra.mxu0 %v1423
        %1560 = vmatprep.subr.bf16.mxu0 0
        %1561 = vmatpush1.bf16.msra.mxu0 %v1424
        %1562 = vmatprep.subr.bf16.mxu0 0
        %1563 = vmatpush1.bf16.msra.mxu0 %v1425
        %1564 = vmatprep.subr.bf16.mxu0 0
        %1565 = vmatpush1.bf16.msra.mxu0 %v1426
        %1566 = vmatprep.subr.bf16.mxu0 0
        %1567 = vmatpush1.bf16.msra.mxu0 %v1427
        %1568 = vmatprep.subr.bf16.mxu0 0
        %1569 = vmatpush1.bf16.msra.mxu0 %v1428
        %1570 = vmatprep.subr.bf16.mxu0 0
        %1571 = vmatpush1.bf16.msra.mxu0 %v1429
        %1572 = vmatprep.subr.bf16.mxu0 0
        %1573 = vmatpush1.bf16.msra.mxu0 %v1430
        %1574 = vmatprep.subr.bf16.mxu0 0
        %1575 = vmatpush1.bf16.msra.mxu0 %v1431
        %1576 = vmatprep.mubr.bf16.mxu0 %v335
        %1577 = vmatmul.mubr.bf16.gmra.mrb[0].mxu0 %v334
        %v1578 = vpop.f32.mrb[0].mxu0
        %v1579 = vadd.f32 0.0, %v1578
        %v1580 = vpop.f32.mrb[0].mxu0
        %v1581 = vpop.f32.mrb[0].mxu0
        %v1582 = vpop.f32.mrb[0].mxu0
        %1583 = vdwg.mxu0
        %1584 = vmatprep.subr.bf16.mxu0 0
        %1585 = vmatpush1.bf16.msra.mxu0 %v1432
        %1586 = vmatprep.subr.bf16.mxu0 0
        %1587 = vmatpush1.bf16.msra.mxu0 %v1433
        %1588 = vmatprep.subr.bf16.mxu0 0
        %1589 = vmatpush1.bf16.msra.mxu0 %v1434
        %1590 = vmatprep.subr.bf16.mxu0 0
        %1591 = vmatpush1.bf16.msra.mxu0 %v1435
        %1592 = vmatprep.subr.bf16.mxu0 0
        %1593 = vmatpush1.bf16.msra.mxu0 %v1436
        %1594 = vmatprep.subr.bf16.mxu0 0
        %1595 = vmatpush1.bf16.msra.mxu0 %v1437
        %1596 = vmatprep.subr.bf16.mxu0 0
        %1597 = vmatpush1.bf16.msra.mxu0 %v1438
        %1598 = vmatprep.subr.bf16.mxu0 0
        %1599 = vmatpush1.bf16.msra.mxu0 %v1439
        %1600 = vmatprep.subr.bf16.mxu0 0
        %1601 = vmatpush1.bf16.msra.mxu0 %v1440
        %1602 = vmatprep.subr.bf16.mxu0 0
        %1603 = vmatpush1.bf16.msra.mxu0 %v1441
        %1604 = vmatprep.subr.bf16.mxu0 0
        %1605 = vmatpush1.bf16.msra.mxu0 %v1442
        %1606 = vmatprep.subr.bf16.mxu0 0
        %1607 = vmatpush1.bf16.msra.mxu0 %v1443
        %1608 = vmatprep.subr.bf16.mxu0 0
        %1609 = vmatpush1.bf16.msra.mxu0 %v1444
        %1610 = vmatprep.subr.bf16.mxu0 0
        %1611 = vmatpush1.bf16.msra.mxu0 %v1445
        %1612 = vmatprep.subr.bf16.mxu0 0
        %1613 = vmatpush1.bf16.msra.mxu0 %v1446
        %1614 = vmatprep.subr.bf16.mxu0 0
        %1615 = vmatpush1.bf16.msra.mxu0 %v1447
        %1616 = vmatprep.mubr.bf16.mxu0 %v337
        %1617 = vmatmul.mubr.bf16.gmra.mrb[0].mxu0 %v336
        %v1618 = vpop.f32.mrb[0].mxu0
        %v1619 = vadd.f32 %v1579, %v1618
        %v1620 = vpop.f32.mrb[0].mxu0
        %v1621 = vpop.f32.mrb[0].mxu0
        %v1622 = vpop.f32.mrb[0].mxu0
        %1623 = vdwg.mxu0
        %1624 = vmatprep.subr.bf16.mxu0 0
        %1625 = vmatpush1.bf16.msra.mxu0 %v1448
        %1626 = vmatprep.subr.bf16.mxu0 0
        %1627 = vmatpush1.bf16.msra.mxu0 %v1449
        %1628 = vmatprep.subr.bf16.mxu0 0
        %1629 = vmatpush1.bf16.msra.mxu0 %v1450
        %1630 = vmatprep.subr.bf16.mxu0 0
        %1631 = vmatpush1.bf16.msra.mxu0 %v1451
        %1632 = vmatprep.subr.bf16.mxu0 0
        %1633 = vmatpush1.bf16.msra.mxu0 %v1452
        %1634 = vmatprep.subr.bf16.mxu0 0
        %1635 = vmatpush1.bf16.msra.mxu0 %v1453
        %1636 = vmatprep.subr.bf16.mxu0 0
        %1637 = vmatpush1.bf16.msra.mxu0 %v1454
        %1638 = vmatprep.subr.bf16.mxu0 0
        %1639 = vmatpush1.bf16.msra.mxu0 %v1455
        %1640 = vmatprep.subr.bf16.mxu0 0
        %1641 = vmatpush1.bf16.msra.mxu0 %v1456
        %1642 = vmatprep.subr.bf16.mxu0 0
        %1643 = vmatpush1.bf16.msra.mxu0 %v1457
        %1644 = vmatprep.subr.bf16.mxu0 0
        %1645 = vmatpush1.bf16.msra.mxu0 %v1458
        %1646 = vmatprep.subr.bf16.mxu0 0
        %1647 = vmatpush1.bf16.msra.mxu0 %v1459
        %1648 = vmatprep.subr.bf16.mxu0 0
        %1649 = vmatpush1.bf16.msra.mxu0 %v1460
        %1650 = vmatprep.subr.bf16.mxu0 0
        %1651 = vmatpush1.bf16.msra.mxu0 %v1461
        %1652 = vmatprep.subr.bf16.mxu0 0
        %1653 = vmatpush1.bf16.msra.mxu0 %v1462
        %1654 = vmatprep.subr.bf16.mxu0 0
        %1655 = vmatpush1.bf16.msra.mxu0 %v1463
        %1656 = vmatprep.mubr.bf16.mxu0 %v339
        %1657 = vmatmul.mubr.bf16.gmra.mrb[0].mxu0 %v338
        %v1658 = vpop.f32.mrb[0].mxu0
        %v1659 = vadd.f32 %v1619, %v1658
        %v1660 = vpop.f32.mrb[0].mxu0
        %v1661 = vpop.f32.mrb[0].mxu0
        %v1662 = vpop.f32.mrb[0].mxu0
        %1663 = vdwg.mxu0
        %1664 = vmatprep.subr.bf16.mxu0 0
        %1665 = vmatpush1.bf16.msra.mxu0 %v1464
        %1666 = vmatprep.subr.bf16.mxu0 0
        %1667 = vmatpush1.bf16.msra.mxu0 %v1465
        %1668 = vmatprep.subr.bf16.mxu0 0
        %1669 = vmatpush1.bf16.msra.mxu0 %v1466
        %1670 = vmatprep.subr.bf16.mxu0 0
        %1671 = vmatpush1.bf16.msra.mxu0 %v1467
        %1672 = vmatprep.subr.bf16.mxu0 0
        %1673 = vmatpush1.bf16.msra.mxu0 %v1468
        %1674 = vmatprep.subr.bf16.mxu0 0
        %1675 = vmatpush1.bf16.msra.mxu0 %v1469
        %1676 = vmatprep.subr.bf16.mxu0 0
        %1677 = vmatpush1.bf16.msra.mxu0 %v1470
        %1678 = vmatprep.subr.bf16.mxu0 0
        %1679 = vmatpush1.bf16.msra.mxu0 %v1471
        %1680 = vmatprep.subr.bf16.mxu0 0
        %1681 = vmatpush1.bf16.msra.mxu0 %v1472
        %1682 = vmatprep.subr.bf16.mxu0 0
        %1683 = vmatpush1.bf16.msra.mxu0 %v1473
        %1684 = vmatprep.subr.bf16.mxu0 0
        %1685 = vmatpush1.bf16.msra.mxu0 %v1474
        %1686 = vmatprep.subr.bf16.mxu0 0
        %1687 = vmatpush1.bf16.msra.mxu0 %v1475
        %1688 = vmatprep.subr.bf16.mxu0 0
        %1689 = vmatpush1.bf16.msra.mxu0 %v1476
        %1690 = vmatprep.subr.bf16.mxu0 0
        %1691 = vmatpush1.bf16.msra.mxu0 %v1477
        %1692 = vmatprep.subr.bf16.mxu0 0
        %1693 = vmatpush1.bf16.msra.mxu0 %v1478
        %1694 = vmatprep.subr.bf16.mxu0 0
        %1695 = vmatpush1.bf16.msra.mxu0 %v1479
        %1696 = vmatprep.mubr.bf16.mxu0 %v341
        %1697 = vmatmul.mubr.bf16.gmra.mrb[0].mxu0 %v340
        %v1698 = vpop.f32.mrb[0].mxu0
        %v1699 = vadd.f32 %v1659, %v1698
        %v1700 = vpop.f32.mrb[0].mxu0
        %v1701 = vpop.f32.mrb[0].mxu0
        %v1702 = vpop.f32.mrb[0].mxu0
        %1703 = vdwg.mxu0
        %v1704 = vmul.f32 %v1699, 0.25
        %v1705 = vmax.f32 %v1699, %v1704
        %v1706 = vmul.f32 %v1705, %v1705
        %v1707 = vsel %vm1017, %v1706, 0.0
        %1708 = vadd.xlane.f32.xlu0 %v1707
        %v1709 = vpop.xlane.xlu0 %1708
        %v1710 = vrsqrt.pop %v1709
        %v1711 = vmul.f32 %v1709, %v1710
        %vm1712 = vcmp.eq.f32.partialorder %v1709, inf
        %v1713 = vsel %vm1712, %v1709, %v1711
        %vm1714 = vcmp.eq.f32.partialorder %v1709, 0.0
        %v1715 = vand.u32 %v1709, 2147483648
        %v1716 = vsel %vm1714, %v1715, %v1713
        %v1717 = vadd.f32 %v1716, 1e-08
        %v1718 = vrcp.pop %v1717
        %v1719 = vmul.f32 %v1705, %v1718
        %1720 = vst [vmem:[%s286] sm:$0x3] %v1719
        %p1721 = scmp.lt.s32.totalorder %s22, 7
        %s1722 = scalar_select %p1721, %s22, 7
        %s1723 = smul.addr %s1722, 2
        %s1724 = scalar_lea.vmem %s3, %s1723
        %p1725 = scmp.lt.s32.totalorder %s22, 7
        %s1726 = scalar_select %p1725, %s22, 7
        %s1727 = smul.addr %s1726, 2
        %s1728 = scalar_lea.vmem %s4, %s1727
        // Predicated region
        $region41: #{nonlocal_net_forward.3} parent=31 // pred_check
          %p1729 = pneg %p118
        $region42: #{nonlocal_net_forward.3} parent=31 // pred_check_branch
          %1731 = sbr.rel (%p1729) target = $region44
        $region43: #{nonlocal_net_forward.3} parent=31 // pred_region
          _
        $region44: #{nonlocal_net_forward.3} parent=31 // pred_fallthru
          _
        // Predicated region
        $region45: #{nonlocal_net_forward.3} parent=31 // pred_check
          %p1732 = pneg %p144
        $region46: #{nonlocal_net_forward.3} parent=31 // pred_check_branch
          %1734 = sbr.rel (%p1732) target = $region48
        $region47: #{nonlocal_net_forward.3} parent=31 // pred_region
          _
        $region48: #{nonlocal_net_forward.3} parent=31 // pred_fallthru
          _
      $region32: #{nonlocal_net_forward.3} parent=5 // pred_fallthru
        _
      %p1735 = scmp.le.s32.totalorder 2, %s17
      // Predicated region
      $region49: #{nonlocal_net_forward.3} parent=5 // pred_check
        %p1736 = pneg %p1735
      $region50: #{nonlocal_net_forward.3} parent=5 // pred_check_branch
        %1738 = sbr.rel (%p1736) target = $region52
      $region51: #{nonlocal_net_forward.3} parent=5 // pred_region
        %s1739 = ssub.s32 %s17, 2
        // Predicated region
        $region53: #{nonlocal_net_forward.3} parent=51 // pred_check
          %p1740 = pneg %p124
        $region54: #{nonlocal_net_forward.3} parent=51 // pred_check_branch
          %1742 = sbr.rel (%p1740) target = $region56
        $region55: #{nonlocal_net_forward.3} parent=51 // pred_region
          %p1743 = scmp.lt.s32.totalorder %s23, 7
          %s1744 = scalar_select %p1743, %s23, 7
          %s1745 = smul.addr %s1744, 2
          %s1746 = scalar_lea.vmem %s3, %s1745
        $region56: #{nonlocal_net_forward.3} parent=51 // pred_fallthru
          _
        // Predicated region
        $region57: #{nonlocal_net_forward.3} parent=51 // pred_check
          %p1747 = pneg %p150
        $region58: #{nonlocal_net_forward.3} parent=51 // pred_check_branch
          %1749 = sbr.rel (%p1747) target = $region60
        $region59: #{nonlocal_net_forward.3} parent=51 // pred_region
          %p1750 = scmp.lt.s32.totalorder %s23, 7
          %s1751 = scalar_select %p1750, %s23, 7
          %s1752 = smul.addr %s1751, 2
          %s1753 = scalar_lea.vmem %s4, %s1752
        $region60: #{nonlocal_net_forward.3} parent=51 // pred_fallthru
          _
      $region52: #{nonlocal_net_forward.3} parent=5 // pred_fallthru
        _
    $region6: #{nonlocal_net_forward.3} parent=1 // loop_footer
      %s21 = sadd.s32 1, %s17
    $region7: #{nonlocal_net_forward.3} parent=1 // loop_footer_branch
      %16 = sbr.rel target = $region3
    $region8: #{nonlocal_net_forward.3} parent=1 // loop_exit
      _
    %1754 = vsyncpa [#allocation3], 1
    %s1755 = scalar_lea.sflag [#allocation3], 1
    %1756 = vsyncpa %s1755, 1
    %1757 = vsyncpa [#allocation5], 1
    %s1758 = scalar_lea.sflag [#allocation5], 1
    %1759 = vsyncpa %s1758, 1

// kernel: nonlocal_net_forward.5
$region0: #{nonlocal_net_forward.5}
  #allocation0 [shape = 'u32[]', space=smem, size = 0x4, offset = 0x4, fixed_abs, tag = 'smem constant byte address 0x4 - core index']
  #allocation1 [shape = 'u32[144,128]{1,0:T(1,128)}', space=vmem, size = 0x12000, scoped, tag = 'internal scratch']
  %s0 = inlined_call_operand.vmem [shape: f32[8,2,128], index: 0, kind: input, shape index: {}]
  %s1 = inlined_call_operand.vmem [shape: f32[8,2,1024], index: 1, kind: input, shape index: {}]
  %s2 = inlined_call_operand.vmem [shape: bf16[8,128,1024], index: 2, kind: input, shape index: {}]
  %s3 = inlined_call_operand.vmem [shape: f32[8,1,1024], index: 3, kind: input, shape index: {}]
  %s4 = inlined_call_operand.hbm [shape: bf16[8,1024,512], index: 4, kind: input, shape index: {}]
  %s5 = inlined_call_operand.vmem [shape: f32[8,2,512], index: 5, kind: output, shape index: {}]
  %s6 = sld [smem:[#allocation0]]
  $region57: #{nonlocal_net_forward.5} parent=0
    _
  %s8 = ssub.s32 1, %s6
  %s9 = scalar_select 0, %s8, %s6
  $region1: #{nonlocal_net_forward.5} parent=0
    #allocation2 [shape = 'u8[2097152]{0}', space=vmem, size = 0x200000, scoped, tag = 'input window, operand 4']
    #allocation3 [shape = 's32[2]{0}', space=sflag, size = 0x8, scoped, tag = 'scoped memory for nonlocal_net_forward.5']
    %10 = vsyncpa [#allocation3], 0
    %s11 = scalar_lea.sflag [#allocation3], 1
    %12 = vsyncpa %s11, 0
    loop: start=0, step=1, limit=10
    $region2: #{nonlocal_net_forward.5} parent=1 // loop_pre_header
      _
    $region3: #{nonlocal_net_forward.5} parent=1 // loop_header
      %s14 = sphi 0, %s18
      %p15 = scmp.ge.s32.totalorder %s14, 10
      %s24 = sphi 0, %s26
      %s27 = sphi 0, %s24
      %s28 = sphi 0, %s27
      %s44 = sphi 0, %s28
      %s50 = sphi 0, %s52
      %s53 = sphi 0, %s50
      %s54 = sphi 0, %s53
      %s70 = sphi 0, %s54
      %s76 = sphi 0, %s78
      %s79 = sphi 0, %s76
      %s80 = sphi 0, %s79
      %s96 = sphi 0, %s80
      %s102 = sphi 0, %s104
      %s105 = sphi 0, %s102
      %s106 = sphi 0, %s105
      %s122 = sphi 0, %s106
      %s128 = sphi 0, %s130
      %s131 = sphi 0, %s128
      %s132 = sphi 0, %s131
      %s148 = sphi 0, %s132
      %s154 = sphi 0, %s156
      %s157 = sphi 0, %s154
      %s158 = sphi 0, %s157
      %s174 = sphi 0, %s158
    $region4: #{nonlocal_net_forward.5} parent=1 // loop_header_branch
      %17 = sbr.rel (%p15) target = $region8
    $region5: #{nonlocal_net_forward.5} parent=1 // loop_body
      %s19 = ssub.s32 %s14, 1
      %s20 = ssub.s32 %s14, 2
      %s21 = sadd.s32 %s14, 1
      %s22 = ssub.s32 %s14, %s21
      %p23 = scmp.eq.s32.totalorder %s22, 0
      %s25 = sadd.s32 %s24, 1
      %s26 = scalar_select %p23, %s24, %s25
      %p29 = pneg %p23
      %p30 = scmp.eq.s32.totalorder %s14, 7
      %p31 = por %p29, %p30
      %p32 = scmp.ne.s32.totalorder %s24, %s27
      %p33 = scmp.eq.s32.totalorder %s14, 0
      %p34 = por %p32, %p33
      %p35 = scmp.ne.s32.totalorder %s24, %s27
      %p36 = scmp.eq.s32.totalorder %s19, 7
      %p37 = por %p35, %p36
      %p38 = scmp.ne.s32.totalorder %s27, %s28
      %p39 = scmp.eq.s32.totalorder %s19, 0
      %p40 = por %p38, %p39
      %p41 = scmp.ne.s32.totalorder %s27, %s28
      %p42 = scmp.eq.s32.totalorder %s20, 7
      %p43 = por %p41, %p42
      %p45 = scmp.ne.s32.totalorder %s28, %s44
      %p46 = scmp.eq.s32.totalorder %s20, 0
      %p47 = por %p45, %p46
      %s48 = ssub.s32 %s14, %s21
      %p49 = scmp.eq.s32.totalorder %s48, 0
      %s51 = sadd.s32 %s50, 1
      %s52 = scalar_select %p49, %s50, %s51
      %p55 = pneg %p49
      %p56 = scmp.eq.s32.totalorder %s14, 7
      %p57 = por %p55, %p56
      %p58 = scmp.ne.s32.totalorder %s50, %s53
      %p59 = scmp.eq.s32.totalorder %s14, 0
      %p60 = por %p58, %p59
      %p61 = scmp.ne.s32.totalorder %s50, %s53
      %p62 = scmp.eq.s32.totalorder %s19, 7
      %p63 = por %p61, %p62
      %p64 = scmp.ne.s32.totalorder %s53, %s54
      %p65 = scmp.eq.s32.totalorder %s19, 0
      %p66 = por %p64, %p65
      %p67 = scmp.ne.s32.totalorder %s53, %s54
      %p68 = scmp.eq.s32.totalorder %s20, 7
      %p69 = por %p67, %p68
      %p71 = scmp.ne.s32.totalorder %s54, %s70
      %p72 = scmp.eq.s32.totalorder %s20, 0
      %p73 = por %p71, %p72
      %s74 = ssub.s32 %s14, %s21
      %p75 = scmp.eq.s32.totalorder %s74, 0
      %s77 = sadd.s32 %s76, 1
      %s78 = scalar_select %p75, %s76, %s77
      %p81 = pneg %p75
      %p82 = scmp.eq.s32.totalorder %s14, 7
      %p83 = por %p81, %p82
      %p84 = scmp.ne.s32.totalorder %s76, %s79
      %p85 = scmp.eq.s32.totalorder %s14, 0
      %p86 = por %p84, %p85
      %p87 = scmp.ne.s32.totalorder %s76, %s79
      %p88 = scmp.eq.s32.totalorder %s19, 7
      %p89 = por %p87, %p88
      %p90 = scmp.ne.s32.totalorder %s79, %s80
      %p91 = scmp.eq.s32.totalorder %s19, 0
      %p92 = por %p90, %p91
      %p93 = scmp.ne.s32.totalorder %s79, %s80
      %p94 = scmp.eq.s32.totalorder %s20, 7
      %p95 = por %p93, %p94
      %p97 = scmp.ne.s32.totalorder %s80, %s96
      %p98 = scmp.eq.s32.totalorder %s20, 0
      %p99 = por %p97, %p98
      %s100 = ssub.s32 %s14, %s21
      %p101 = scmp.eq.s32.totalorder %s100, 0
      %s103 = sadd.s32 %s102, 1
      %s104 = scalar_select %p101, %s102, %s103
      %p107 = pneg %p101
      %p108 = scmp.eq.s32.totalorder %s14, 7
      %p109 = por %p107, %p108
      %p110 = scmp.ne.s32.totalorder %s102, %s105
      %p111 = scmp.eq.s32.totalorder %s14, 0
      %p112 = por %p110, %p111
      %p113 = scmp.ne.s32.totalorder %s102, %s105
      %p114 = scmp.eq.s32.totalorder %s19, 7
      %p115 = por %p113, %p114
      %p116 = scmp.ne.s32.totalorder %s105, %s106
      %p117 = scmp.eq.s32.totalorder %s19, 0
      %p118 = por %p116, %p117
      %p119 = scmp.ne.s32.totalorder %s105, %s106
      %p120 = scmp.eq.s32.totalorder %s20, 7
      %p121 = por %p119, %p120
      %p123 = scmp.ne.s32.totalorder %s106, %s122
      %p124 = scmp.eq.s32.totalorder %s20, 0
      %p125 = por %p123, %p124
      %s126 = ssub.s32 %s14, %s21
      %p127 = scmp.eq.s32.totalorder %s126, 0
      %s129 = sadd.s32 %s128, 1
      %s130 = scalar_select %p127, %s128, %s129
      %p133 = pneg %p127
      %p134 = scmp.eq.s32.totalorder %s14, 7
      %p135 = por %p133, %p134
      %p136 = scmp.ne.s32.totalorder %s128, %s131
      %p137 = scmp.eq.s32.totalorder %s14, 0
      %p138 = por %p136, %p137
      %p139 = scmp.ne.s32.totalorder %s128, %s131
      %p140 = scmp.eq.s32.totalorder %s19, 7
      %p141 = por %p139, %p140
      %p142 = scmp.ne.s32.totalorder %s131, %s132
      %p143 = scmp.eq.s32.totalorder %s19, 0
      %p144 = por %p142, %p143
      %p145 = scmp.ne.s32.totalorder %s131, %s132
      %p146 = scmp.eq.s32.totalorder %s20, 7
      %p147 = por %p145, %p146
      %p149 = scmp.ne.s32.totalorder %s132, %s148
      %p150 = scmp.eq.s32.totalorder %s20, 0
      %p151 = por %p149, %p150
      %s152 = ssub.s32 %s14, %s21
      %p153 = scmp.eq.s32.totalorder %s152, 0
      %s155 = sadd.s32 %s154, 1
      %s156 = scalar_select %p153, %s154, %s155
      %p159 = pneg %p153
      %p160 = scmp.eq.s32.totalorder %s14, 7
      %p161 = por %p159, %p160
      %p162 = scmp.ne.s32.totalorder %s154, %s157
      %p163 = scmp.eq.s32.totalorder %s14, 0
      %p164 = por %p162, %p163
      %p165 = scmp.ne.s32.totalorder %s154, %s157
      %p166 = scmp.eq.s32.totalorder %s19, 7
      %p167 = por %p165, %p166
      %p168 = scmp.ne.s32.totalorder %s157, %s158
      %p169 = scmp.eq.s32.totalorder %s19, 0
      %p170 = por %p168, %p169
      %p171 = scmp.ne.s32.totalorder %s157, %s158
      %p172 = scmp.eq.s32.totalorder %s20, 7
      %p173 = por %p171, %p172
      %p175 = scmp.ne.s32.totalorder %s158, %s174
      %p176 = scmp.eq.s32.totalorder %s20, 0
      %p177 = por %p175, %p176
      %p178 = scmp.le.s32.totalorder 1, %s14
      %p179 = scmp.lt.s32.totalorder %s14, 9
      %p180 = pnand %p178, %p179
      %p181 = pneg %p180
      // Predicated region
      $region9: #{nonlocal_net_forward.5} parent=5 // pred_check
        _
      $region10: #{nonlocal_net_forward.5} parent=5 // pred_check_branch
        %183 = sbr.rel (%p180) target = $region12
      $region11: #{nonlocal_net_forward.5} parent=5 // pred_region
        %s184 = ssub.s32 %s14, 1
      $region12: #{nonlocal_net_forward.5} parent=5 // pred_fallthru
        _
      %p185 = scmp.lt.s32.totalorder %s14, 8
      // Predicated region
      $region13: #{nonlocal_net_forward.5} parent=5 // pred_check
        %p186 = pneg %p185
      $region14: #{nonlocal_net_forward.5} parent=5 // pred_check_branch
        %188 = sbr.rel (%p186) target = $region16
      $region15: #{nonlocal_net_forward.5} parent=5 // pred_region
        // Predicated region
        $region17: #{nonlocal_net_forward.5} parent=15 // pred_check
          %p189 = pneg %p34
        $region18: #{nonlocal_net_forward.5} parent=15 // pred_check_branch
          %191 = sbr.rel (%p189) target = $region20
        $region19: #{nonlocal_net_forward.5} parent=15 // pred_region
          %p192 = scmp.lt.s32.totalorder %s14, 7
          %s193 = scalar_select %p192, %s14, 7
          %s194 = smul.addr %s193, 2
          %s195 = scalar_lea.vmem %s0, %s194
        $region20: #{nonlocal_net_forward.5} parent=15 // pred_fallthru
          _
        // Predicated region
        $region21: #{nonlocal_net_forward.5} parent=15 // pred_check
          %p196 = pneg %p60
        $region22: #{nonlocal_net_forward.5} parent=15 // pred_check_branch
          %198 = sbr.rel (%p196) target = $region24
        $region23: #{nonlocal_net_forward.5} parent=15 // pred_region
          %p199 = scmp.lt.s32.totalorder %s14, 7
          %s200 = scalar_select %p199, %s14, 7
          %s201 = smul.addr %s200, 8
          %s202 = smul.addr %s201, 2
          %s203 = scalar_lea.vmem %s1, %s202
        $region24: #{nonlocal_net_forward.5} parent=15 // pred_fallthru
          _
        // Predicated region
        $region25: #{nonlocal_net_forward.5} parent=15 // pred_check
          %p204 = pneg %p86
        $region26: #{nonlocal_net_forward.5} parent=15 // pred_check_branch
          %206 = sbr.rel (%p204) target = $region28
        $region27: #{nonlocal_net_forward.5} parent=15 // pred_region
          %p207 = scmp.lt.s32.totalorder %s14, 7
          %s208 = scalar_select %p207, %s14, 7
          %s209 = smul.addr %s208, 128
          %s210 = smul.addr %s209, 4
          %s211 = scalar_lea.vmem %s2, %s210
        $region28: #{nonlocal_net_forward.5} parent=15 // pred_fallthru
          _
        // Predicated region
        $region29: #{nonlocal_net_forward.5} parent=15 // pred_check
          %p212 = pneg %p112
        $region30: #{nonlocal_net_forward.5} parent=15 // pred_check_branch
          %214 = sbr.rel (%p212) target = $region32
        $region31: #{nonlocal_net_forward.5} parent=15 // pred_region
          %p215 = scmp.lt.s32.totalorder %s14, 7
          %s216 = scalar_select %p215, %s14, 7
          %s217 = smul.addr %s216, 8
          %s218 = scalar_lea.vmem %s3, %s217
        $region32: #{nonlocal_net_forward.5} parent=15 // pred_fallthru
          _
        // Predicated region
        $region33: #{nonlocal_net_forward.5} parent=15 // pred_check
          %p219 = pneg %p138
        $region34: #{nonlocal_net_forward.5} parent=15 // pred_check_branch
          %221 = sbr.rel (%p219) target = $region36
        $region35: #{nonlocal_net_forward.5} parent=15 // pred_region
          %s222 = sand.u32 %s128, 1
          %s223 = scalar_lea.sflag [#allocation3], %s222
          %s224 = sand.u32 %s128, 1
          %s225 = smul.addr %s224, 2048
          %s226 = scalar_lea.vmem [#allocation2], %s225
          %s228 = ssub.s32 32768, 32768
          %229 = vsyncadd %s223, %s228
          %s230 = smul.addr %s14, 512
          %s231 = smul.addr %s230, 64
          %s232 = scalar_lea.hbm %s4, %s231
          %s233 = sshll.u32 %s226, 4
          %s234 = int_to_ptr.vmem [resolvable:$true] %s233
          %239 = dma.hbm_to_vmem [thread:$0]  %s232, 32768, %s234, %s223, 256, 256, 16
        $region36: #{nonlocal_net_forward.5} parent=15 // pred_fallthru
          _
      $region16: #{nonlocal_net_forward.5} parent=5 // pred_fallthru
        _
      %p240 = scmp.le.s32.totalorder 1, %s14
      %p241 = scmp.lt.s32.totalorder %s14, 9
      %p242 = pnand %p240, %p241
      %p243 = pneg %p242
      // Predicated region
      $region37: #{nonlocal_net_forward.5} parent=5 // pred_check
        _
      $region38: #{nonlocal_net_forward.5} parent=5 // pred_check_branch
        %245 = sbr.rel (%p242) target = $region40
      $region39: #{nonlocal_net_forward.5} parent=5 // pred_region
        %s246 = ssub.s32 %s14, 1
        %s247 = sand.u32 %s131, 1
        %s248 = scalar_lea.sflag [#allocation3], %s247
        %s249 = sand.u32 %s131, 1
        %s250 = smul.addr %s249, 2048
        %s251 = scalar_lea.vmem [#allocation2], %s250
        // Predicated region
        $region41: #{nonlocal_net_forward.5} parent=39 // pred_check
          %p252 = pneg %p144
        $region42: #{nonlocal_net_forward.5} parent=39 // pred_check_branch
          %254 = sbr.rel (%p252) target = $region44
        $region43: #{nonlocal_net_forward.5} parent=39 // pred_region
          %255 = dma.done %s248, 32768
        $region44: #{nonlocal_net_forward.5} parent=39 // pred_fallthru
          _
        %p256 = scmp.lt.s32.totalorder %s19, 7
        %s257 = scalar_select %p256, %s19, 7
        %s258 = smul.addr %s257, 2
        %s259 = scalar_lea.vmem %s0, %s258
        %p260 = pneg %p40
        %p261 = pneg %p37
        %p262 = scmp.lt.s32.totalorder %s19, 7
        %s263 = scalar_select %p262, %s19, 7
        %s264 = smul.addr %s263, 8
        %s265 = smul.addr %s264, 2
        %s266 = scalar_lea.vmem %s1, %s265
        %p267 = pneg %p66
        %p268 = pneg %p63
        %p269 = scmp.lt.s32.totalorder %s19, 7
        %s270 = scalar_select %p269, %s19, 7
        %s271 = smul.addr %s270, 128
        %s272 = smul.addr %s271, 4
        %s273 = scalar_lea.vmem %s2, %s272
        %p274 = pneg %p92
        %p275 = pneg %p89
        %p276 = scmp.lt.s32.totalorder %s19, 7
        %s277 = scalar_select %p276, %s19, 7
        %s278 = smul.addr %s277, 8
        %s279 = scalar_lea.vmem %s3, %s278
        %p280 = pneg %p118
        %p281 = pneg %p115
        %s282 = sand.u32 %s131, 1
        %s283 = scalar_lea.sflag [#allocation3], %s282
        %s284 = sand.u32 %s131, 1
        %s285 = smul.addr %s284, 2048
        %s286 = scalar_lea.vmem [#allocation2], %s285
        %p287 = pneg %p144
        %p288 = pneg %p141
        %p289 = pneg %p170
        %p290 = pneg %p167
        %p291 = scmp.lt.s32.totalorder %s19, 7
        %s292 = scalar_select %p291, %s19, 7
        %s293 = smul.addr %s292, 4
        %s294 = smul.addr %s293, 2
        %s295 = scalar_lea.vmem %s5, %s294
        %p296 = scmp.lt.s32.totalorder %s19, 7
        %s297 = scalar_select %p296, %s19, 7
        %s298 = smul.addr %s297, 2
        %s299 = scalar_lea.vmem %s0, %s298
        %p300 = scmp.lt.s32.totalorder %s19, 7
        %s301 = scalar_select %p300, %s19, 7
        %s302 = smul.addr %s301, 8
        %s303 = smul.addr %s302, 2
        %s304 = scalar_lea.vmem %s1, %s303
        %p305 = scmp.lt.s32.totalorder %s19, 7
        %s306 = scalar_select %p305, %s19, 7
        %s307 = smul.addr %s306, 128
        %s308 = smul.addr %s307, 4
        %s309 = scalar_lea.vmem %s2, %s308
        %p310 = scmp.lt.s32.totalorder %s19, 7
        %s311 = scalar_select %p310, %s19, 7
        %s312 = smul.addr %s311, 8
        %s313 = scalar_lea.vmem %s3, %s312
        %p314 = scmp.lt.s32.totalorder %s19, 7
        %s315 = scalar_select %p314, %s19, 7
        %s316 = smul.addr %s315, 4
        %s317 = smul.addr %s316, 2
        %s318 = scalar_lea.vmem %s5, %s317
        %v320 = vld [vmem:[%s299] sm:$0x3]
        %v321 = vpack.c.bf16 %v320, %v320
        %v322 = vld [vmem:[%s309] sm:$0xff]
        %v323 = vld [vmem:[%s309 + $0x8] sm:$0xff]
        %v324 = vld [vmem:[%s309 + $0x10] sm:$0xff]
        %v325 = vld [vmem:[%s309 + $0x18] sm:$0xff]
        %v326 = vld [vmem:[%s309 + $0x20] sm:$0xff]
        %v327 = vld [vmem:[%s309 + $0x28] sm:$0xff]
        %v328 = vld [vmem:[%s309 + $0x30] sm:$0xff]
        %v329 = vld [vmem:[%s309 + $0x38] sm:$0xff]
        %v330 = vld [vmem:[%s309 + $0x40] sm:$0xff]
        %v331 = vld [vmem:[%s309 + $0x48] sm:$0xff]
        %v332 = vld [vmem:[%s309 + $0x50] sm:$0xff]
        %v333 = vld [vmem:[%s309 + $0x58] sm:$0xff]
        %v334 = vld [vmem:[%s309 + $0x60] sm:$0xff]
        %v335 = vld [vmem:[%s309 + $0x68] sm:$0xff]
        %v336 = vld [vmem:[%s309 + $0x70] sm:$0xff]
        %v337 = vld [vmem:[%s309 + $0x78] sm:$0xff]
        %v338 = vld [vmem:[%s309 + $0x80] sm:$0xff]
        %v339 = vld [vmem:[%s309 + $0x88] sm:$0xff]
        %v340 = vld [vmem:[%s309 + $0x90] sm:$0xff]
        %v341 = vld [vmem:[%s309 + $0x98] sm:$0xff]
        %v342 = vld [vmem:[%s309 + $0xa0] sm:$0xff]
        %v343 = vld [vmem:[%s309 + $0xa8] sm:$0xff]
        %v344 = vld [vmem:[%s309 + $0xb0] sm:$0xff]
        %v345 = vld [vmem:[%s309 + $0xb8] sm:$0xff]
        %v346 = vld [vmem:[%s309 + $0xc0] sm:$0xff]
        %v347 = vld [vmem:[%s309 + $0xc8] sm:$0xff]
        %v348 = vld [vmem:[%s309 + $0xd0] sm:$0xff]
        %v349 = vld [vmem:[%s309 + $0xd8] sm:$0xff]
        %v350 = vld [vmem:[%s309 + $0xe0] sm:$0xff]
        %v351 = vld [vmem:[%s309 + $0xe8] sm:$0xff]
        %v352 = vld [vmem:[%s309 + $0xf0] sm:$0xff]
        %v353 = vld [vmem:[%s309 + $0xf8] sm:$0xff]
        %v354 = vld [vmem:[%s309 + $0x100] sm:$0xff]
        %v355 = vld [vmem:[%s309 + $0x108] sm:$0xff]
        %v356 = vld [vmem:[%s309 + $0x110] sm:$0xff]
        %v357 = vld [vmem:[%s309 + $0x118] sm:$0xff]
        %v358 = vld [vmem:[%s309 + $0x120] sm:$0xff]
        %v359 = vld [vmem:[%s309 + $0x128] sm:$0xff]
        %v360 = vld [vmem:[%s309 + $0x130] sm:$0xff]
        %v361 = vld [vmem:[%s309 + $0x138] sm:$0xff]
        %v362 = vld [vmem:[%s309 + $0x140] sm:$0xff]
        %v363 = vld [vmem:[%s309 + $0x148] sm:$0xff]
        %v364 = vld [vmem:[%s309 + $0x150] sm:$0xff]
        %v365 = vld [vmem:[%s309 + $0x158] sm:$0xff]
        %v366 = vld [vmem:[%s309 + $0x160] sm:$0xff]
        %v367 = vld [vmem:[%s309 + $0x168] sm:$0xff]
        %v368 = vld [vmem:[%s309 + $0x170] sm:$0xff]
        %v369 = vld [vmem:[%s309 + $0x178] sm:$0xff]
        %v370 = vld [vmem:[%s309 + $0x180] sm:$0xff]
        %v371 = vld [vmem:[%s309 + $0x188] sm:$0xff]
        %v372 = vld [vmem:[%s309 + $0x190] sm:$0xff]
        %v373 = vld [vmem:[%s309 + $0x198] sm:$0xff]
        %v374 = vld [vmem:[%s309 + $0x1a0] sm:$0xff]
        %v375 = vld [vmem:[%s309 + $0x1a8] sm:$0xff]
        %v376 = vld [vmem:[%s309 + $0x1b0] sm:$0xff]
        %v377 = vld [vmem:[%s309 + $0x1b8] sm:$0xff]
        %v378 = vld [vmem:[%s309 + $0x1c0] sm:$0xff]
        %v379 = vld [vmem:[%s309 + $0x1c8] sm:$0xff]
        %v380 = vld [vmem:[%s309 + $0x1d0] sm:$0xff]
        %v381 = vld [vmem:[%s309 + $0x1d8] sm:$0xff]
        %v382 = vld [vmem:[%s309 + $0x1e0] sm:$0xff]
        %v383 = vld [vmem:[%s309 + $0x1e8] sm:$0xff]
        %v384 = vld [vmem:[%s309 + $0x1f0] sm:$0xff]
        %v385 = vld [vmem:[%s309 + $0x1f8] sm:$0xff]
        %v386 = vld [vmem:[%s313] sm:$0xff]
        %v388 = vlaneseq
        %v389 = vshrl.u32 %v388, 7
        %v390 = vsub.s32 0, %v389
        %v391 = vrot.slane %v386, %v390
        %v392 = vlaneseq
        %v393 = vshrl.u32 %v392, 7
        %v394 = vsub.s32 1, %v393
        %v395 = vrot.slane %v386, %v394
        %v396 = vlaneseq
        %v397 = vshrl.u32 %v396, 7
        %v398 = vsub.s32 2, %v397
        %v399 = vrot.slane %v386, %v398
        %v400 = vlaneseq
        %v401 = vshrl.u32 %v400, 7
        %v402 = vsub.s32 3, %v401
        %v403 = vrot.slane %v386, %v402
        %v404 = vlaneseq
        %v405 = vshrl.u32 %v404, 7
        %v406 = vsub.s32 4, %v405
        %v407 = vrot.slane %v386, %v406
        %v408 = vlaneseq
        %v409 = vshrl.u32 %v408, 7
        %v410 = vsub.s32 5, %v409
        %v411 = vrot.slane %v386, %v410
        %v412 = vlaneseq
        %v413 = vshrl.u32 %v412, 7
        %v414 = vsub.s32 6, %v413
        %v415 = vrot.slane %v386, %v414
        %v416 = vlaneseq
        %v417 = vshrl.u32 %v416, 7
        %v418 = vsub.s32 7, %v417
        %v419 = vrot.slane %v386, %v418
        %v492 = vunpack.c.l.b16 %v322
        %v493 = vunpack.c.h.b16 %v322
        %v494 = vunpack.c.l.b16 %v323
        %v495 = vunpack.c.h.b16 %v323
        %v496 = vunpack.c.l.b16 %v324
        %v497 = vunpack.c.h.b16 %v324
        %v498 = vunpack.c.l.b16 %v325
        %v499 = vunpack.c.h.b16 %v325
        %v500 = vunpack.c.l.b16 %v326
        %v501 = vunpack.c.h.b16 %v326
        %v502 = vunpack.c.l.b16 %v327
        %v503 = vunpack.c.h.b16 %v327
        %v504 = vunpack.c.l.b16 %v328
        %v505 = vunpack.c.h.b16 %v328
        %v506 = vunpack.c.l.b16 %v329
        %v507 = vunpack.c.h.b16 %v329
        %v508 = vunpack.c.l.b16 %v330
        %v509 = vunpack.c.h.b16 %v330
        %v510 = vunpack.c.l.b16 %v331
        %v511 = vunpack.c.h.b16 %v331
        %v512 = vunpack.c.l.b16 %v332
        %v513 = vunpack.c.h.b16 %v332
        %v514 = vunpack.c.l.b16 %v333
        %v515 = vunpack.c.h.b16 %v333
        %v516 = vunpack.c.l.b16 %v334
        %v517 = vunpack.c.h.b16 %v334
        %v518 = vunpack.c.l.b16 %v335
        %v519 = vunpack.c.h.b16 %v335
        %v520 = vunpack.c.l.b16 %v336
        %v521 = vunpack.c.h.b16 %v336
        %v522 = vunpack.c.l.b16 %v337
        %v523 = vunpack.c.h.b16 %v337
        %v524 = vunpack.c.l.b16 %v338
        %v525 = vunpack.c.h.b16 %v338
        %v526 = vunpack.c.l.b16 %v339
        %v527 = vunpack.c.h.b16 %v339
        %v528 = vunpack.c.l.b16 %v340
        %v529 = vunpack.c.h.b16 %v340
        %v530 = vunpack.c.l.b16 %v341
        %v531 = vunpack.c.h.b16 %v341
        %v532 = vunpack.c.l.b16 %v342
        %v533 = vunpack.c.h.b16 %v342
        %v534 = vunpack.c.l.b16 %v343
        %v535 = vunpack.c.h.b16 %v343
        %v536 = vunpack.c.l.b16 %v344
        %v537 = vunpack.c.h.b16 %v344
        %v538 = vunpack.c.l.b16 %v345
        %v539 = vunpack.c.h.b16 %v345
        %v540 = vunpack.c.l.b16 %v346
        %v541 = vunpack.c.h.b16 %v346
        %v542 = vunpack.c.l.b16 %v347
        %v543 = vunpack.c.h.b16 %v347
        %v544 = vunpack.c.l.b16 %v348
        %v545 = vunpack.c.h.b16 %v348
        %v546 = vunpack.c.l.b16 %v349
        %v547 = vunpack.c.h.b16 %v349
        %v548 = vunpack.c.l.b16 %v350
        %v549 = vunpack.c.h.b16 %v350
        %v550 = vunpack.c.l.b16 %v351
        %v551 = vunpack.c.h.b16 %v351
        %v552 = vunpack.c.l.b16 %v352
        %v553 = vunpack.c.h.b16 %v352
        %v554 = vunpack.c.l.b16 %v353
        %v555 = vunpack.c.h.b16 %v353
        %v556 = vunpack.c.l.b16 %v354
        %v557 = vunpack.c.h.b16 %v354
        %v558 = vunpack.c.l.b16 %v355
        %v559 = vunpack.c.h.b16 %v355
        %v560 = vunpack.c.l.b16 %v356
        %v561 = vunpack.c.h.b16 %v356
        %v562 = vunpack.c.l.b16 %v357
        %v563 = vunpack.c.h.b16 %v357
        %v564 = vunpack.c.l.b16 %v358
        %v565 = vunpack.c.h.b16 %v358
        %v566 = vunpack.c.l.b16 %v359
        %v567 = vunpack.c.h.b16 %v359
        %v568 = vunpack.c.l.b16 %v360
        %v569 = vunpack.c.h.b16 %v360
        %v570 = vunpack.c.l.b16 %v361
        %v571 = vunpack.c.h.b16 %v361
        %v572 = vunpack.c.l.b16 %v362
        %v573 = vunpack.c.h.b16 %v362
        %v574 = vunpack.c.l.b16 %v363
        %v575 = vunpack.c.h.b16 %v363
        %v576 = vunpack.c.l.b16 %v364
        %v577 = vunpack.c.h.b16 %v364
        %v578 = vunpack.c.l.b16 %v365
        %v579 = vunpack.c.h.b16 %v365
        %v580 = vunpack.c.l.b16 %v366
        %v581 = vunpack.c.h.b16 %v366
        %v582 = vunpack.c.l.b16 %v367
        %v583 = vunpack.c.h.b16 %v367
        %v584 = vunpack.c.l.b16 %v368
        %v585 = vunpack.c.h.b16 %v368
        %v586 = vunpack.c.l.b16 %v369
        %v587 = vunpack.c.h.b16 %v369
        %v588 = vunpack.c.l.b16 %v370
        %v589 = vunpack.c.h.b16 %v370
        %v590 = vunpack.c.l.b16 %v371
        %v591 = vunpack.c.h.b16 %v371
        %v592 = vunpack.c.l.b16 %v372
        %v593 = vunpack.c.h.b16 %v372
        %v594 = vunpack.c.l.b16 %v373
        %v595 = vunpack.c.h.b16 %v373
        %v596 = vunpack.c.l.b16 %v374
        %v597 = vunpack.c.h.b16 %v374
        %v598 = vunpack.c.l.b16 %v375
        %v599 = vunpack.c.h.b16 %v375
        %v600 = vunpack.c.l.b16 %v376
        %v601 = vunpack.c.h.b16 %v376
        %v602 = vunpack.c.l.b16 %v377
        %v603 = vunpack.c.h.b16 %v377
        %v604 = vunpack.c.l.b16 %v378
        %v605 = vunpack.c.h.b16 %v378
        %v606 = vunpack.c.l.b16 %v379
        %v607 = vunpack.c.h.b16 %v379
        %v608 = vunpack.c.l.b16 %v380
        %v609 = vunpack.c.h.b16 %v380
        %v610 = vunpack.c.l.b16 %v381
        %v611 = vunpack.c.h.b16 %v381
        %v612 = vunpack.c.l.b16 %v382
        %v613 = vunpack.c.h.b16 %v382
        %v614 = vunpack.c.l.b16 %v383
        %v615 = vunpack.c.h.b16 %v383
        %v616 = vunpack.c.l.b16 %v384
        %v617 = vunpack.c.h.b16 %v384
        %v618 = vunpack.c.l.b16 %v385
        %v619 = vunpack.c.h.b16 %v385
        %v620 = vpack.c.b16 %v500, %v492
        %v621 = vpack.c.b16 %v501, %v493
        %v622 = vpack.c.b16 %v502, %v494
        %v623 = vpack.c.b16 %v503, %v495
        %v624 = vpack.c.b16 %v504, %v496
        %v625 = vpack.c.b16 %v505, %v497
        %v626 = vpack.c.b16 %v506, %v498
        %v627 = vpack.c.b16 %v507, %v499
        %v628 = vpack.c.b16 %v516, %v508
        %v629 = vpack.c.b16 %v517, %v509
        %v630 = vpack.c.b16 %v518, %v510
        %v631 = vpack.c.b16 %v519, %v511
        %v632 = vpack.c.b16 %v520, %v512
        %v633 = vpack.c.b16 %v521, %v513
        %v634 = vpack.c.b16 %v522, %v514
        %v635 = vpack.c.b16 %v523, %v515
        %v636 = vpack.c.b16 %v532, %v524
        %v637 = vpack.c.b16 %v533, %v525
        %v638 = vpack.c.b16 %v534, %v526
        %v639 = vpack.c.b16 %v535, %v527
        %v640 = vpack.c.b16 %v536, %v528
        %v641 = vpack.c.b16 %v537, %v529
        %v642 = vpack.c.b16 %v538, %v530
        %v643 = vpack.c.b16 %v539, %v531
        %v644 = vpack.c.b16 %v548, %v540
        %v645 = vpack.c.b16 %v549, %v541
        %v646 = vpack.c.b16 %v550, %v542
        %v647 = vpack.c.b16 %v551, %v543
        %v648 = vpack.c.b16 %v552, %v544
        %v649 = vpack.c.b16 %v553, %v545
        %v650 = vpack.c.b16 %v554, %v546
        %v651 = vpack.c.b16 %v555, %v547
        %v652 = vpack.c.b16 %v564, %v556
        %v653 = vpack.c.b16 %v565, %v557
        %v654 = vpack.c.b16 %v566, %v558
        %v655 = vpack.c.b16 %v567, %v559
        %v656 = vpack.c.b16 %v568, %v560
        %v657 = vpack.c.b16 %v569, %v561
        %v658 = vpack.c.b16 %v570, %v562
        %v659 = vpack.c.b16 %v571, %v563
        %v660 = vpack.c.b16 %v580, %v572
        %v661 = vpack.c.b16 %v581, %v573
        %v662 = vpack.c.b16 %v582, %v574
        %v663 = vpack.c.b16 %v583, %v575
        %v664 = vpack.c.b16 %v584, %v576
        %v665 = vpack.c.b16 %v585, %v577
        %v666 = vpack.c.b16 %v586, %v578
        %v667 = vpack.c.b16 %v587, %v579
        %v668 = vpack.c.b16 %v596, %v588
        %v669 = vpack.c.b16 %v597, %v589
        %v670 = vpack.c.b16 %v598, %v590
        %v671 = vpack.c.b16 %v599, %v591
        %v672 = vpack.c.b16 %v600, %v592
        %v673 = vpack.c.b16 %v601, %v593
        %v674 = vpack.c.b16 %v602, %v594
        %v675 = vpack.c.b16 %v603, %v595
        %v676 = vpack.c.b16 %v612, %v604
        %v677 = vpack.c.b16 %v613, %v605
        %v678 = vpack.c.b16 %v614, %v606
        %v679 = vpack.c.b16 %v615, %v607
        %v680 = vpack.c.b16 %v616, %v608
        %v681 = vpack.c.b16 %v617, %v609
        %v682 = vpack.c.b16 %v618, %v610
        %v683 = vpack.c.b16 %v619, %v611
        %748 = vmatprep.subr.bf16.mxu0 %v621
        %749 = vmatpush1.bf16.msra.mxu0 %v620
        %750 = vmatprep.subr.bf16.mxu0 %v629
        %751 = vmatpush1.bf16.msra.mxu0 %v628
        %752 = vmatprep.subr.bf16.mxu0 %v637
        %753 = vmatpush1.bf16.msra.mxu0 %v636
        %754 = vmatprep.subr.bf16.mxu0 %v645
        %755 = vmatpush1.bf16.msra.mxu0 %v644
        %756 = vmatprep.subr.bf16.mxu0 %v653
        %757 = vmatpush1.bf16.msra.mxu0 %v652
        %758 = vmatprep.subr.bf16.mxu0 %v661
        %759 = vmatpush1.bf16.msra.mxu0 %v660
        %760 = vmatprep.subr.bf16.mxu0 %v669
        %761 = vmatpush1.bf16.msra.mxu0 %v668
        %762 = vmatprep.subr.bf16.mxu0 %v677
        %763 = vmatpush1.bf16.msra.mxu0 %v676
        %764 = vmatprep.subr.bf16.mxu0 0
        %765 = vmatpush1.bf16.msra.mxu0 0
        %766 = vmatprep.subr.bf16.mxu0 0
        %767 = vmatpush1.bf16.msra.mxu0 0
        %768 = vmatprep.subr.bf16.mxu0 0
        %769 = vmatpush1.bf16.msra.mxu0 0
        %770 = vmatprep.subr.bf16.mxu0 0
        %771 = vmatpush1.bf16.msra.mxu0 0
        %772 = vmatprep.subr.bf16.mxu0 0
        %773 = vmatpush1.bf16.msra.mxu0 0
        %774 = vmatprep.subr.bf16.mxu0 0
        %775 = vmatpush1.bf16.msra.mxu0 0
        %776 = vmatprep.subr.bf16.mxu0 0
        %777 = vmatpush1.bf16.msra.mxu0 0
        %778 = vmatprep.subr.bf16.mxu0 0
        %779 = vmatpush1.bf16.msra.mxu0 0
        %780 = vmatprep.mubr.bf16.mxu0 0
        %781 = vmatmul.mubr.bf16.gmra.mrb[0].mxu0 %v321
        %v782 = vpop.f32.mrb[0].mxu0
        %v783 = vadd.f32 %v391, %v782
        %v784 = vpop.f32.mrb[0].mxu0
        %v785 = vadd.f32 %v395, %v784
        %v786 = vpop.f32.mrb[0].mxu0
        %v787 = vpop.f32.mrb[0].mxu0
        %788 = vdwg.mxu0
        %789 = vmatprep.subr.bf16.mxu0 %v623
        %790 = vmatpush1.bf16.msra.mxu0 %v622
        %791 = vmatprep.subr.bf16.mxu0 %v631
        %792 = vmatpush1.bf16.msra.mxu0 %v630
        %793 = vmatprep.subr.bf16.mxu0 %v639
        %794 = vmatpush1.bf16.msra.mxu0 %v638
        %795 = vmatprep.subr.bf16.mxu0 %v647
        %796 = vmatpush1.bf16.msra.mxu0 %v646
        %797 = vmatprep.subr.bf16.mxu0 %v655
        %798 = vmatpush1.bf16.msra.mxu0 %v654
        %799 = vmatprep.subr.bf16.mxu0 %v663
        %800 = vmatpush1.bf16.msra.mxu0 %v662
        %801 = vmatprep.subr.bf16.mxu0 %v671
        %802 = vmatpush1.bf16.msra.mxu0 %v670
        %803 = vmatprep.subr.bf16.mxu0 %v679
        %804 = vmatpush1.bf16.msra.mxu0 %v678
        %805 = vmatprep.subr.bf16.mxu0 0
        %806 = vmatpush1.bf16.msra.mxu0 0
        %807 = vmatprep.subr.bf16.mxu0 0
        %808 = vmatpush1.bf16.msra.mxu0 0
        %809 = vmatprep.subr.bf16.mxu0 0
        %810 = vmatpush1.bf16.msra.mxu0 0
        %811 = vmatprep.subr.bf16.mxu0 0
        %812 = vmatpush1.bf16.msra.mxu0 0
        %813 = vmatprep.subr.bf16.mxu0 0
        %814 = vmatpush1.bf16.msra.mxu0 0
        %815 = vmatprep.subr.bf16.mxu0 0
        %816 = vmatpush1.bf16.msra.mxu0 0
        %817 = vmatprep.subr.bf16.mxu0 0
        %818 = vmatpush1.bf16.msra.mxu0 0
        %819 = vmatprep.subr.bf16.mxu0 0
        %820 = vmatpush1.bf16.msra.mxu0 0
        %821 = vmatprep.mubr.bf16.mxu0 0
        %822 = vmatmul.mubr.bf16.gmra.mrb[0].mxu0 %v321
        %v823 = vpop.f32.mrb[0].mxu0
        %v824 = vadd.f32 %v399, %v823
        %v825 = vpop.f32.mrb[0].mxu0
        %v826 = vadd.f32 %v403, %v825
        %v827 = vpop.f32.mrb[0].mxu0
        %v828 = vpop.f32.mrb[0].mxu0
        %829 = vdwg.mxu0
        %830 = vmatprep.subr.bf16.mxu0 %v625
        %831 = vmatpush1.bf16.msra.mxu0 %v624
        %832 = vmatprep.subr.bf16.mxu0 %v633
        %833 = vmatpush1.bf16.msra.mxu0 %v632
        %834 = vmatprep.subr.bf16.mxu0 %v641
        %835 = vmatpush1.bf16.msra.mxu0 %v640
        %836 = vmatprep.subr.bf16.mxu0 %v649
        %837 = vmatpush1.bf16.msra.mxu0 %v648
        %838 = vmatprep.subr.bf16.mxu0 %v657
        %839 = vmatpush1.bf16.msra.mxu0 %v656
        %840 = vmatprep.subr.bf16.mxu0 %v665
        %841 = vmatpush1.bf16.msra.mxu0 %v664
        %842 = vmatprep.subr.bf16.mxu0 %v673
        %843 = vmatpush1.bf16.msra.mxu0 %v672
        %844 = vmatprep.subr.bf16.mxu0 %v681
        %845 = vmatpush1.bf16.msra.mxu0 %v680
        %846 = vmatprep.subr.bf16.mxu0 0
        %847 = vmatpush1.bf16.msra.mxu0 0
        %848 = vmatprep.subr.bf16.mxu0 0
        %849 = vmatpush1.bf16.msra.mxu0 0
        %850 = vmatprep.subr.bf16.mxu0 0
        %851 = vmatpush1.bf16.msra.mxu0 0
        %852 = vmatprep.subr.bf16.mxu0 0
        %853 = vmatpush1.bf16.msra.mxu0 0
        %854 = vmatprep.subr.bf16.mxu0 0
        %855 = vmatpush1.bf16.msra.mxu0 0
        %856 = vmatprep.subr.bf16.mxu0 0
        %857 = vmatpush1.bf16.msra.mxu0 0
        %858 = vmatprep.subr.bf16.mxu0 0
        %859 = vmatpush1.bf16.msra.mxu0 0
        %860 = vmatprep.subr.bf16.mxu0 0
        %861 = vmatpush1.bf16.msra.mxu0 0
        %862 = vmatprep.mubr.bf16.mxu0 0
        %863 = vmatmul.mubr.bf16.gmra.mrb[0].mxu0 %v321
        %v864 = vpop.f32.mrb[0].mxu0
        %v865 = vadd.f32 %v407, %v864
        %v866 = vpop.f32.mrb[0].mxu0
        %v867 = vadd.f32 %v411, %v866
        %v868 = vpop.f32.mrb[0].mxu0
        %v869 = vpop.f32.mrb[0].mxu0
        %870 = vdwg.mxu0
        %871 = vmatprep.subr.bf16.mxu0 %v627
        %872 = vmatpush1.bf16.msra.mxu0 %v626
        %873 = vmatprep.subr.bf16.mxu0 %v635
        %874 = vmatpush1.bf16.msra.mxu0 %v634
        %875 = vmatprep.subr.bf16.mxu0 %v643
        %876 = vmatpush1.bf16.msra.mxu0 %v642
        %877 = vmatprep.subr.bf16.mxu0 %v651
        %878 = vmatpush1.bf16.msra.mxu0 %v650
        %879 = vmatprep.subr.bf16.mxu0 %v659
        %880 = vmatpush1.bf16.msra.mxu0 %v658
        %881 = vmatprep.subr.bf16.mxu0 %v667
        %882 = vmatpush1.bf16.msra.mxu0 %v666
        %883 = vmatprep.subr.bf16.mxu0 %v675
        %884 = vmatpush1.bf16.msra.mxu0 %v674
        %885 = vmatprep.subr.bf16.mxu0 %v683
        %886 = vmatpush1.bf16.msra.mxu0 %v682
        %887 = vmatprep.subr.bf16.mxu0 0
        %888 = vmatpush1.bf16.msra.mxu0 0
        %889 = vmatprep.subr.bf16.mxu0 0
        %890 = vmatpush1.bf16.msra.mxu0 0
        %891 = vmatprep.subr.bf16.mxu0 0
        %892 = vmatpush1.bf16.msra.mxu0 0
        %893 = vmatprep.subr.bf16.mxu0 0
        %894 = vmatpush1.bf16.msra.mxu0 0
        %895 = vmatprep.subr.bf16.mxu0 0
        %896 = vmatpush1.bf16.msra.mxu0 0
        %897 = vmatprep.subr.bf16.mxu0 0
        %898 = vmatpush1.bf16.msra.mxu0 0
        %899 = vmatprep.subr.bf16.mxu0 0
        %900 = vmatpush1.bf16.msra.mxu0 0
        %901 = vmatprep.subr.bf16.mxu0 0
        %902 = vmatpush1.bf16.msra.mxu0 0
        %903 = vmatprep.mubr.bf16.mxu0 0
        %904 = vmatmul.mubr.bf16.gmra.mrb[0].mxu0 %v321
        %v905 = vpop.f32.mrb[0].mxu0
        %v906 = vadd.f32 %v415, %v905
        %v907 = vpop.f32.mrb[0].mxu0
        %v908 = vadd.f32 %v419, %v907
        %v909 = vpop.f32.mrb[0].mxu0
        %v910 = vpop.f32.mrb[0].mxu0
        %911 = vdwg.mxu0
        %v912 = vmul.f32 %v783, 0.25
        %v913 = vmul.f32 %v785, 0.25
        %v914 = vmul.f32 %v824, 0.25
        %v915 = vmul.f32 %v826, 0.25
        %v916 = vmul.f32 %v865, 0.25
        %v917 = vmul.f32 %v867, 0.25
        %v918 = vmul.f32 %v906, 0.25
        %v919 = vmul.f32 %v908, 0.25
        %v920 = vmax.f32 %v783, %v912
        %v921 = vmax.f32 %v785, %v913
        %v922 = vmax.f32 %v824, %v914
        %v923 = vmax.f32 %v826, %v915
        %v924 = vmax.f32 %v865, %v916
        %v925 = vmax.f32 %v867, %v917
        %v926 = vmax.f32 %v906, %v918
        %v927 = vmax.f32 %v908, %v919
        %v928 = vld [vmem:[%s304] sm:$0xff]
        %v929 = vld [vmem:[%s304 + $0x8] sm:$0xff]
        %v938 = vcombine.low %v920, %v921
        %v939 = vcombine.low %v922, %v923
        %v941 = vunpack.c.l.s4 1983009808
        %v942 = vunpack.c.0.s8 %v941
        %v943 = vlaneseq
        %v944 = vshrl.u32 %v943, 7
        %v945 = vsub.s32 %v942, %v944
        %v946 = vrot.slane %v938, %v945
        %v948 = vunpack.c.l.s4 1983009808
        %v949 = vunpack.c.0.s8 %v948
        %v950 = vlaneseq
        %v951 = vshrl.u32 %v950, 7
        %v952 = vsub.s32 %v949, %v951
        %v953 = vrot.slane %v939, %v952
        %v954 = vcombine.low %v946, %v953
        %v955 = vcombine.low %v924, %v925
        %v956 = vcombine.low %v926, %v927
        %v958 = vunpack.c.l.s4 1983009808
        %v959 = vunpack.c.0.s8 %v958
        %v960 = vlaneseq
        %v961 = vshrl.u32 %v960, 7
        %v962 = vsub.s32 %v959, %v961
        %v963 = vrot.slane %v955, %v962
        %v965 = vunpack.c.l.s4 1983009808
        %v966 = vunpack.c.0.s8 %v965
        %v967 = vlaneseq
        %v968 = vshrl.u32 %v967, 7
        %v969 = vsub.s32 %v966, %v968
        %v970 = vrot.slane %v956, %v969
        %v971 = vcombine.low %v963, %v970
        %v974 = vadd.f32 %v928, %v954
        %v975 = vadd.f32 %v929, %v971
        %v978 = vcombine.high %v974, %v974
        %v980 = vunpack.c.l.s4 1983009808
        %v981 = vunpack.c.0.s8 %v980
        %v982 = vlaneseq
        %v983 = vshrl.u32 %v982, 7
        %v984 = vsub.s32 %v981, %v983
        %v985 = vrot.slane %v974, %v984
        %v987 = vunpack.c.l.s4 1983009808
        %v988 = vunpack.c.0.s8 %v987
        %v989 = vlaneseq
        %v990 = vshrl.u32 %v989, 7
        %v991 = vsub.s32 %v988, %v990
        %v992 = vrot.slane %v978, %v991
        %v993 = vcombine.high %v985, %v985
        %v994 = vcombine.high %v992, %v992
        %v995 = vcombine.high %v975, %v975
        %v997 = vunpack.c.l.s4 1983009808
        %v998 = vunpack.c.0.s8 %v997
        %v999 = vlaneseq
        %v1000 = vshrl.u32 %v999, 7
        %v1001 = vsub.s32 %v998, %v1000
        %v1002 = vrot.slane %v975, %v1001
        %v1004 = vunpack.c.l.s4 1983009808
        %v1005 = vunpack.c.0.s8 %v1004
        %v1006 = vlaneseq
        %v1007 = vshrl.u32 %v1006, 7
        %v1008 = vsub.s32 %v1005, %v1007
        %v1009 = vrot.slane %v995, %v1008
        %v1010 = vcombine.high %v1002, %v1002
        %v1011 = vcombine.high %v1009, %v1009
        %v1020 = vpack.c.bf16 %v985, %v985
        %v1021 = vpack.c.bf16 %v993, %v993
        %v1022 = vpack.c.bf16 %v992, %v992
        %v1023 = vpack.c.bf16 %v994, %v994
        %v1024 = vpack.c.bf16 %v1002, %v1002
        %v1025 = vpack.c.bf16 %v1010, %v1010
        %v1026 = vpack.c.bf16 %v1009, %v1009
        %v1027 = vpack.c.bf16 %v1011, %v1011
        %v1028 = vld [vmem:[%s251] sm:$0xff]
        %v1029 = vld [vmem:[%s251 + $0x8] sm:$0xff]
        %v1030 = vld [vmem:[%s251 + $0x10] sm:$0xff]
        %v1031 = vld [vmem:[%s251 + $0x18] sm:$0xff]
        %v1032 = vld [vmem:[%s251 + $0x20] sm:$0xff]
        %v1033 = vld [vmem:[%s251 + $0x28] sm:$0xff]
        %v1034 = vld [vmem:[%s251 + $0x30] sm:$0xff]
        %v1035 = vld [vmem:[%s251 + $0x38] sm:$0xff]
        %v1036 = vld [vmem:[%s251 + $0x40] sm:$0xff]
        %v1037 = vld [vmem:[%s251 + $0x48] sm:$0xff]
        %v1038 = vld [vmem:[%s251 + $0x50] sm:$0xff]
        %v1039 = vld [vmem:[%s251 + $0x58] sm:$0xff]
        %v1040 = vld [vmem:[%s251 + $0x60] sm:$0xff]
        %v1041 = vld [vmem:[%s251 + $0x68] sm:$0xff]
        %v1042 = vld [vmem:[%s251 + $0x70] sm:$0xff]
        %v1043 = vld [vmem:[%s251 + $0x78] sm:$0xff]
        %v1044 = vld [vmem:[%s251 + $0x80] sm:$0xff]
        %v1045 = vld [vmem:[%s251 + $0x88] sm:$0xff]
        %v1046 = vld [vmem:[%s251 + $0x90] sm:$0xff]
        %v1047 = vld [vmem:[%s251 + $0x98] sm:$0xff]
        %v1048 = vld [vmem:[%s251 + $0xa0] sm:$0xff]
        %v1049 = vld [vmem:[%s251 + $0xa8] sm:$0xff]
        %v1050 = vld [vmem:[%s251 + $0xb0] sm:$0xff]
        %v1051 = vld [vmem:[%s251 + $0xb8] sm:$0xff]
        %v1052 = vld [vmem:[%s251 + $0xc0] sm:$0xff]
        %v1053 = vld [vmem:[%s251 + $0xc8] sm:$0xff]
        %v1054 = vld [vmem:[%s251 + $0xd0] sm:$0xff]
        %v1055 = vld [vmem:[%s251 + $0xd8] sm:$0xff]
        %v1056 = vld [vmem:[%s251 + $0xe0] sm:$0xff]
        %v1057 = vld [vmem:[%s251 + $0xe8] sm:$0xff]
        %v1058 = vld [vmem:[%s251 + $0xf0] sm:$0xff]
        %v1059 = vld [vmem:[%s251 + $0xf8] sm:$0xff]
        %v1060 = vld [vmem:[%s251 + $0x100] sm:$0xff]
        %v1061 = vld [vmem:[%s251 + $0x108] sm:$0xff]
        %v1062 = vld [vmem:[%s251 + $0x110] sm:$0xff]
        %v1063 = vld [vmem:[%s251 + $0x118] sm:$0xff]
        %v1064 = vld [vmem:[%s251 + $0x120] sm:$0xff]
        %v1065 = vld [vmem:[%s251 + $0x128] sm:$0xff]
        %v1066 = vld [vmem:[%s251 + $0x130] sm:$0xff]
        %v1067 = vld [vmem:[%s251 + $0x138] sm:$0xff]
        %v1068 = vld [vmem:[%s251 + $0x140] sm:$0xff]
        %v1069 = vld [vmem:[%s251 + $0x148] sm:$0xff]
        %v1070 = vld [vmem:[%s251 + $0x150] sm:$0xff]
        %v1071 = vld [vmem:[%s251 + $0x158] sm:$0xff]
        %v1072 = vld [vmem:[%s251 + $0x160] sm:$0xff]
        %v1073 = vld [vmem:[%s251 + $0x168] sm:$0xff]
        %v1074 = vld [vmem:[%s251 + $0x170] sm:$0xff]
        %v1075 = vld [vmem:[%s251 + $0x178] sm:$0xff]
        %v1076 = vld [vmem:[%s251 + $0x180] sm:$0xff]
        %v1077 = vld [vmem:[%s251 + $0x188] sm:$0xff]
        %v1078 = vld [vmem:[%s251 + $0x190] sm:$0xff]
        %v1079 = vld [vmem:[%s251 + $0x198] sm:$0xff]
        %v1080 = vld [vmem:[%s251 + $0x1a0] sm:$0xff]
        %v1081 = vld [vmem:[%s251 + $0x1a8] sm:$0xff]
        %v1082 = vld [vmem:[%s251 + $0x1b0] sm:$0xff]
        %v1083 = vld [vmem:[%s251 + $0x1b8] sm:$0xff]
        %v1084 = vld [vmem:[%s251 + $0x1c0] sm:$0xff]
        %v1085 = vld [vmem:[%s251 + $0x1c8] sm:$0xff]
        %v1086 = vld [vmem:[%s251 + $0x1d0] sm:$0xff]
        %v1087 = vld [vmem:[%s251 + $0x1d8] sm:$0xff]
        %v1088 = vld [vmem:[%s251 + $0x1e0] sm:$0xff]
        %v1089 = vld [vmem:[%s251 + $0x1e8] sm:$0xff]
        %v1090 = vld [vmem:[%s251 + $0x1f0] sm:$0xff]
        %v1091 = vld [vmem:[%s251 + $0x1f8] sm:$0xff]
        %v1092 = vld [vmem:[%s251 + $0x200] sm:$0xff]
        %v1093 = vld [vmem:[%s251 + $0x208] sm:$0xff]
        %v1094 = vld [vmem:[%s251 + $0x210] sm:$0xff]
        %v1095 = vld [vmem:[%s251 + $0x218] sm:$0xff]
        %v1096 = vld [vmem:[%s251 + $0x220] sm:$0xff]
        %v1097 = vld [vmem:[%s251 + $0x228] sm:$0xff]
        %v1098 = vld [vmem:[%s251 + $0x230] sm:$0xff]
        %v1099 = vld [vmem:[%s251 + $0x238] sm:$0xff]
        %v1100 = vld [vmem:[%s251 + $0x240] sm:$0xff]
        %v1101 = vld [vmem:[%s251 + $0x248] sm:$0xff]
        %v1102 = vld [vmem:[%s251 + $0x250] sm:$0xff]
        %v1103 = vld [vmem:[%s251 + $0x258] sm:$0xff]
        %v1104 = vld [vmem:[%s251 + $0x260] sm:$0xff]
        %v1105 = vld [vmem:[%s251 + $0x268] sm:$0xff]
        %v1106 = vld [vmem:[%s251 + $0x270] sm:$0xff]
        %v1107 = vld [vmem:[%s251 + $0x278] sm:$0xff]
        %v1108 = vld [vmem:[%s251 + $0x280] sm:$0xff]
        %v1109 = vld [vmem:[%s251 + $0x288] sm:$0xff]
        %v1110 = vld [vmem:[%s251 + $0x290] sm:$0xff]
        %v1111 = vld [vmem:[%s251 + $0x298] sm:$0xff]
        %v1112 = vld [vmem:[%s251 + $0x2a0] sm:$0xff]
        %v1113 = vld [vmem:[%s251 + $0x2a8] sm:$0xff]
        %v1114 = vld [vmem:[%s251 + $0x2b0] sm:$0xff]
        %v1115 = vld [vmem:[%s251 + $0x2b8] sm:$0xff]
        %v1116 = vld [vmem:[%s251 + $0x2c0] sm:$0xff]
        %v1117 = vld [vmem:[%s251 + $0x2c8] sm:$0xff]
        %v1118 = vld [vmem:[%s251 + $0x2d0] sm:$0xff]
        %v1119 = vld [vmem:[%s251 + $0x2d8] sm:$0xff]
        %v1120 = vld [vmem:[%s251 + $0x2e0] sm:$0xff]
        %v1121 = vld [vmem:[%s251 + $0x2e8] sm:$0xff]
        %v1122 = vld [vmem:[%s251 + $0x2f0] sm:$0xff]
        %v1123 = vld [vmem:[%s251 + $0x2f8] sm:$0xff]
        %v1124 = vld [vmem:[%s251 + $0x300] sm:$0xff]
        %v1125 = vld [vmem:[%s251 + $0x308] sm:$0xff]
        %v1126 = vld [vmem:[%s251 + $0x310] sm:$0xff]
        %v1127 = vld [vmem:[%s251 + $0x318] sm:$0xff]
        %v1128 = vld [vmem:[%s251 + $0x320] sm:$0xff]
        %v1129 = vld [vmem:[%s251 + $0x328] sm:$0xff]
        %v1130 = vld [vmem:[%s251 + $0x330] sm:$0xff]
        %v1131 = vld [vmem:[%s251 + $0x338] sm:$0xff]
        %v1132 = vld [vmem:[%s251 + $0x340] sm:$0xff]
        %v1133 = vld [vmem:[%s251 + $0x348] sm:$0xff]
        %v1134 = vld [vmem:[%s251 + $0x350] sm:$0xff]
        %v1135 = vld [vmem:[%s251 + $0x358] sm:$0xff]
        %v1136 = vld [vmem:[%s251 + $0x360] sm:$0xff]
        %v1137 = vld [vmem:[%s251 + $0x368] sm:$0xff]
        %v1138 = vld [vmem:[%s251 + $0x370] sm:$0xff]
        %v1139 = vld [vmem:[%s251 + $0x378] sm:$0xff]
        %v1140 = vld [vmem:[%s251 + $0x380] sm:$0xff]
        %v1141 = vld [vmem:[%s251 + $0x388] sm:$0xff]
        %v1142 = vld [vmem:[%s251 + $0x390] sm:$0xff]
        %v1143 = vld [vmem:[%s251 + $0x398] sm:$0xff]
        %v1144 = vld [vmem:[%s251 + $0x3a0] sm:$0xff]
        %v1145 = vld [vmem:[%s251 + $0x3a8] sm:$0xff]
        %v1146 = vld [vmem:[%s251 + $0x3b0] sm:$0xff]
        %v1147 = vld [vmem:[%s251 + $0x3b8] sm:$0xff]
        %v1148 = vld [vmem:[%s251 + $0x3c0] sm:$0xff]
        %v1149 = vld [vmem:[%s251 + $0x3c8] sm:$0xff]
        %v1150 = vld [vmem:[%s251 + $0x3d0] sm:$0xff]
        %v1151 = vld [vmem:[%s251 + $0x3d8] sm:$0xff]
        %v1152 = vld [vmem:[%s251 + $0x3e0] sm:$0xff]
        %v1153 = vld [vmem:[%s251 + $0x3e8] sm:$0xff]
        %v1154 = vld [vmem:[%s251 + $0x3f0] sm:$0xff]
        %v1155 = vld [vmem:[%s251 + $0x3f8] sm:$0xff]
        %v1156 = vld [vmem:[%s251 + $0x400] sm:$0xff]
        %v1157 = vld [vmem:[%s251 + $0x408] sm:$0xff]
        %v1158 = vld [vmem:[%s251 + $0x410] sm:$0xff]
        %v1159 = vld [vmem:[%s251 + $0x418] sm:$0xff]
        %v1160 = vld [vmem:[%s251 + $0x420] sm:$0xff]
        %v1161 = vld [vmem:[%s251 + $0x428] sm:$0xff]
        %v1162 = vld [vmem:[%s251 + $0x430] sm:$0xff]
        %v1163 = vld [vmem:[%s251 + $0x438] sm:$0xff]
        %v1164 = vld [vmem:[%s251 + $0x440] sm:$0xff]
        %v1165 = vld [vmem:[%s251 + $0x448] sm:$0xff]
        %v1166 = vld [vmem:[%s251 + $0x450] sm:$0xff]
        %v1167 = vld [vmem:[%s251 + $0x458] sm:$0xff]
        %v1168 = vld [vmem:[%s251 + $0x460] sm:$0xff]
        %v1169 = vld [vmem:[%s251 + $0x468] sm:$0xff]
        %v1170 = vld [vmem:[%s251 + $0x470] sm:$0xff]
        %v1171 = vld [vmem:[%s251 + $0x478] sm:$0xff]
        %v1172 = vld [vmem:[%s251 + $0x480] sm:$0xff]
        %v1173 = vld [vmem:[%s251 + $0x488] sm:$0xff]
        %v1174 = vld [vmem:[%s251 + $0x490] sm:$0xff]
        %v1175 = vld [vmem:[%s251 + $0x498] sm:$0xff]
        %v1176 = vld [vmem:[%s251 + $0x4a0] sm:$0xff]
        %v1177 = vld [vmem:[%s251 + $0x4a8] sm:$0xff]
        %v1178 = vld [vmem:[%s251 + $0x4b0] sm:$0xff]
        %v1179 = vld [vmem:[%s251 + $0x4b8] sm:$0xff]
        %v1180 = vld [vmem:[%s251 + $0x4c0] sm:$0xff]
        %v1181 = vld [vmem:[%s251 + $0x4c8] sm:$0xff]
        %v1182 = vld [vmem:[%s251 + $0x4d0] sm:$0xff]
        %v1183 = vld [vmem:[%s251 + $0x4d8] sm:$0xff]
        %v1184 = vld [vmem:[%s251 + $0x4e0] sm:$0xff]
        %v1185 = vld [vmem:[%s251 + $0x4e8] sm:$0xff]
        %v1186 = vld [vmem:[%s251 + $0x4f0] sm:$0xff]
        %v1187 = vld [vmem:[%s251 + $0x4f8] sm:$0xff]
        %v1188 = vld [vmem:[%s251 + $0x500] sm:$0xff]
        %v1189 = vld [vmem:[%s251 + $0x508] sm:$0xff]
        %v1190 = vld [vmem:[%s251 + $0x510] sm:$0xff]
        %v1191 = vld [vmem:[%s251 + $0x518] sm:$0xff]
        %v1192 = vld [vmem:[%s251 + $0x520] sm:$0xff]
        %v1193 = vld [vmem:[%s251 + $0x528] sm:$0xff]
        %v1194 = vld [vmem:[%s251 + $0x530] sm:$0xff]
        %v1195 = vld [vmem:[%s251 + $0x538] sm:$0xff]
        %v1196 = vld [vmem:[%s251 + $0x540] sm:$0xff]
        %v1197 = vld [vmem:[%s251 + $0x548] sm:$0xff]
        %v1198 = vld [vmem:[%s251 + $0x550] sm:$0xff]
        %v1199 = vld [vmem:[%s251 + $0x558] sm:$0xff]
        %v1200 = vld [vmem:[%s251 + $0x560] sm:$0xff]
        %v1201 = vld [vmem:[%s251 + $0x568] sm:$0xff]
        %v1202 = vld [vmem:[%s251 + $0x570] sm:$0xff]
        %v1203 = vld [vmem:[%s251 + $0x578] sm:$0xff]
        %v1204 = vld [vmem:[%s251 + $0x580] sm:$0xff]
        %v1205 = vld [vmem:[%s251 + $0x588] sm:$0xff]
        %v1206 = vld [vmem:[%s251 + $0x590] sm:$0xff]
        %v1207 = vld [vmem:[%s251 + $0x598] sm:$0xff]
        %v1208 = vld [vmem:[%s251 + $0x5a0] sm:$0xff]
        %v1209 = vld [vmem:[%s251 + $0x5a8] sm:$0xff]
        %v1210 = vld [vmem:[%s251 + $0x5b0] sm:$0xff]
        %v1211 = vld [vmem:[%s251 + $0x5b8] sm:$0xff]
        %v1212 = vld [vmem:[%s251 + $0x5c0] sm:$0xff]
        %v1213 = vld [vmem:[%s251 + $0x5c8] sm:$0xff]
        %v1214 = vld [vmem:[%s251 + $0x5d0] sm:$0xff]
        %v1215 = vld [vmem:[%s251 + $0x5d8] sm:$0xff]
        %v1216 = vld [vmem:[%s251 + $0x5e0] sm:$0xff]
        %v1217 = vld [vmem:[%s251 + $0x5e8] sm:$0xff]
        %v1218 = vld [vmem:[%s251 + $0x5f0] sm:$0xff]
        %v1219 = vld [vmem:[%s251 + $0x5f8] sm:$0xff]
        %v1220 = vld [vmem:[%s251 + $0x600] sm:$0xff]
        %v1221 = vld [vmem:[%s251 + $0x608] sm:$0xff]
        %v1222 = vld [vmem:[%s251 + $0x610] sm:$0xff]
        %v1223 = vld [vmem:[%s251 + $0x618] sm:$0xff]
        %v1224 = vld [vmem:[%s251 + $0x620] sm:$0xff]
        %v1225 = vld [vmem:[%s251 + $0x628] sm:$0xff]
        %v1226 = vld [vmem:[%s251 + $0x630] sm:$0xff]
        %v1227 = vld [vmem:[%s251 + $0x638] sm:$0xff]
        %v1228 = vld [vmem:[%s251 + $0x640] sm:$0xff]
        %v1229 = vld [vmem:[%s251 + $0x648] sm:$0xff]
        %v1230 = vld [vmem:[%s251 + $0x650] sm:$0xff]
        %v1231 = vld [vmem:[%s251 + $0x658] sm:$0xff]
        %v1232 = vld [vmem:[%s251 + $0x660] sm:$0xff]
        %v1233 = vld [vmem:[%s251 + $0x668] sm:$0xff]
        %v1234 = vld [vmem:[%s251 + $0x670] sm:$0xff]
        %v1235 = vld [vmem:[%s251 + $0x678] sm:$0xff]
        %v1236 = vld [vmem:[%s251 + $0x680] sm:$0xff]
        %v1237 = vld [vmem:[%s251 + $0x688] sm:$0xff]
        %v1238 = vld [vmem:[%s251 + $0x690] sm:$0xff]
        %v1239 = vld [vmem:[%s251 + $0x698] sm:$0xff]
        %v1240 = vld [vmem:[%s251 + $0x6a0] sm:$0xff]
        %v1241 = vld [vmem:[%s251 + $0x6a8] sm:$0xff]
        %v1242 = vld [vmem:[%s251 + $0x6b0] sm:$0xff]
        %v1243 = vld [vmem:[%s251 + $0x6b8] sm:$0xff]
        %v1244 = vld [vmem:[%s251 + $0x6c0] sm:$0xff]
        %v1245 = vld [vmem:[%s251 + $0x6c8] sm:$0xff]
        %v1246 = vld [vmem:[%s251 + $0x6d0] sm:$0xff]
        %v1247 = vld [vmem:[%s251 + $0x6d8] sm:$0xff]
        %v1248 = vld [vmem:[%s251 + $0x6e0] sm:$0xff]
        %v1249 = vld [vmem:[%s251 + $0x6e8] sm:$0xff]
        %v1250 = vld [vmem:[%s251 + $0x6f0] sm:$0xff]
        %v1251 = vld [vmem:[%s251 + $0x6f8] sm:$0xff]
        %v1252 = vld [vmem:[%s251 + $0x700] sm:$0xff]
        %v1253 = vld [vmem:[%s251 + $0x708] sm:$0xff]
        %v1254 = vld [vmem:[%s251 + $0x710] sm:$0xff]
        %v1255 = vld [vmem:[%s251 + $0x718] sm:$0xff]
        %v1256 = vld [vmem:[%s251 + $0x720] sm:$0xff]
        %v1257 = vld [vmem:[%s251 + $0x728] sm:$0xff]
        %v1258 = vld [vmem:[%s251 + $0x730] sm:$0xff]
        %v1259 = vld [vmem:[%s251 + $0x738] sm:$0xff]
        %v1260 = vld [vmem:[%s251 + $0x740] sm:$0xff]
        %v1261 = vld [vmem:[%s251 + $0x748] sm:$0xff]
        %v1262 = vld [vmem:[%s251 + $0x750] sm:$0xff]
        %v1263 = vld [vmem:[%s251 + $0x758] sm:$0xff]
        %v1264 = vld [vmem:[%s251 + $0x760] sm:$0xff]
        %v1265 = vld [vmem:[%s251 + $0x768] sm:$0xff]
        %v1266 = vld [vmem:[%s251 + $0x770] sm:$0xff]
        %v1267 = vld [vmem:[%s251 + $0x778] sm:$0xff]
        %v1268 = vld [vmem:[%s251 + $0x780] sm:$0xff]
        %v1269 = vld [vmem:[%s251 + $0x788] sm:$0xff]
        %v1270 = vld [vmem:[%s251 + $0x790] sm:$0xff]
        %v1271 = vld [vmem:[%s251 + $0x798] sm:$0xff]
        %v1272 = vld [vmem:[%s251 + $0x7a0] sm:$0xff]
        %v1273 = vld [vmem:[%s251 + $0x7a8] sm:$0xff]
        %v1274 = vld [vmem:[%s251 + $0x7b0] sm:$0xff]
        %v1275 = vld [vmem:[%s251 + $0x7b8] sm:$0xff]
        %v1276 = vld [vmem:[%s251 + $0x7c0] sm:$0xff]
        %v1277 = vld [vmem:[%s251 + $0x7c8] sm:$0xff]
        %v1278 = vld [vmem:[%s251 + $0x7d0] sm:$0xff]
        %v1279 = vld [vmem:[%s251 + $0x7d8] sm:$0xff]
        %v1280 = vld [vmem:[%s251 + $0x7e0] sm:$0xff]
        %v1281 = vld [vmem:[%s251 + $0x7e8] sm:$0xff]
        %v1282 = vld [vmem:[%s251 + $0x7f0] sm:$0xff]
        %v1283 = vld [vmem:[%s251 + $0x7f8] sm:$0xff]
        %v1540 = vunpack.c.l.b16 %v1028
        %v1541 = vunpack.c.h.b16 %v1028
        %v1542 = vunpack.c.l.b16 %v1029
        %v1543 = vunpack.c.h.b16 %v1029
        %v1544 = vunpack.c.l.b16 %v1030
        %v1545 = vunpack.c.h.b16 %v1030
        %v1546 = vunpack.c.l.b16 %v1031
        %v1547 = vunpack.c.h.b16 %v1031
        %v1548 = vunpack.c.l.b16 %v1032
        %v1549 = vunpack.c.h.b16 %v1032
        %v1550 = vunpack.c.l.b16 %v1033
        %v1551 = vunpack.c.h.b16 %v1033
        %v1552 = vunpack.c.l.b16 %v1034
        %v1553 = vunpack.c.h.b16 %v1034
        %v1554 = vunpack.c.l.b16 %v1035
        %v1555 = vunpack.c.h.b16 %v1035
        %v1556 = vunpack.c.l.b16 %v1036
        %v1557 = vunpack.c.h.b16 %v1036
        %v1558 = vunpack.c.l.b16 %v1037
        %v1559 = vunpack.c.h.b16 %v1037
        %v1560 = vunpack.c.l.b16 %v1038
        %v1561 = vunpack.c.h.b16 %v1038
        %v1562 = vunpack.c.l.b16 %v1039
        %v1563 = vunpack.c.h.b16 %v1039
        %v1564 = vunpack.c.l.b16 %v1040
        %v1565 = vunpack.c.h.b16 %v1040
        %v1566 = vunpack.c.l.b16 %v1041
        %v1567 = vunpack.c.h.b16 %v1041
        %v1568 = vunpack.c.l.b16 %v1042
        %v1569 = vunpack.c.h.b16 %v1042
        %v1570 = vunpack.c.l.b16 %v1043
        %v1571 = vunpack.c.h.b16 %v1043
        %v1572 = vunpack.c.l.b16 %v1044
        %v1573 = vunpack.c.h.b16 %v1044
        %v1574 = vunpack.c.l.b16 %v1045
        %v1575 = vunpack.c.h.b16 %v1045
        %v1576 = vunpack.c.l.b16 %v1046
        %v1577 = vunpack.c.h.b16 %v1046
        %v1578 = vunpack.c.l.b16 %v1047
        %v1579 = vunpack.c.h.b16 %v1047
        %v1580 = vunpack.c.l.b16 %v1048
        %v1581 = vunpack.c.h.b16 %v1048
        %v1582 = vunpack.c.l.b16 %v1049
        %v1583 = vunpack.c.h.b16 %v1049
        %v1584 = vunpack.c.l.b16 %v1050
        %v1585 = vunpack.c.h.b16 %v1050
        %v1586 = vunpack.c.l.b16 %v1051
        %v1587 = vunpack.c.h.b16 %v1051
        %v1588 = vunpack.c.l.b16 %v1052
        %v1589 = vunpack.c.h.b16 %v1052
        %v1590 = vunpack.c.l.b16 %v1053
        %v1591 = vunpack.c.h.b16 %v1053
        %v1592 = vunpack.c.l.b16 %v1054
        %v1593 = vunpack.c.h.b16 %v1054
        %v1594 = vunpack.c.l.b16 %v1055
        %v1595 = vunpack.c.h.b16 %v1055
        %v1596 = vunpack.c.l.b16 %v1056
        %v1597 = vunpack.c.h.b16 %v1056
        %v1598 = vunpack.c.l.b16 %v1057
        %v1599 = vunpack.c.h.b16 %v1057
        %v1600 = vunpack.c.l.b16 %v1058
        %v1601 = vunpack.c.h.b16 %v1058
        %v1602 = vunpack.c.l.b16 %v1059
        %v1603 = vunpack.c.h.b16 %v1059
        %v1604 = vunpack.c.l.b16 %v1060
        %v1605 = vunpack.c.h.b16 %v1060
        %v1606 = vunpack.c.l.b16 %v1061
        %v1607 = vunpack.c.h.b16 %v1061
        %v1608 = vunpack.c.l.b16 %v1062
        %v1609 = vunpack.c.h.b16 %v1062
        %v1610 = vunpack.c.l.b16 %v1063
        %v1611 = vunpack.c.h.b16 %v1063
        %v1612 = vunpack.c.l.b16 %v1064
        %v1613 = vunpack.c.h.b16 %v1064
        %v1614 = vunpack.c.l.b16 %v1065
        %v1615 = vunpack.c.h.b16 %v1065
        %v1616 = vunpack.c.l.b16 %v1066
        %v1617 = vunpack.c.h.b16 %v1066
        %v1618 = vunpack.c.l.b16 %v1067
        %v1619 = vunpack.c.h.b16 %v1067
        %v1620 = vunpack.c.l.b16 %v1068
        %v1621 = vunpack.c.h.b16 %v1068
        %v1622 = vunpack.c.l.b16 %v1069
        %v1623 = vunpack.c.h.b16 %v1069
        %v1624 = vunpack.c.l.b16 %v1070
        %v1625 = vunpack.c.h.b16 %v1070
        %v1626 = vunpack.c.l.b16 %v1071
        %v1627 = vunpack.c.h.b16 %v1071
        %v1628 = vunpack.c.l.b16 %v1072
        %v1629 = vunpack.c.h.b16 %v1072
        %v1630 = vunpack.c.l.b16 %v1073
        %v1631 = vunpack.c.h.b16 %v1073
        %v1632 = vunpack.c.l.b16 %v1074
        %v1633 = vunpack.c.h.b16 %v1074
        %v1634 = vunpack.c.l.b16 %v1075
        %v1635 = vunpack.c.h.b16 %v1075
        %v1636 = vunpack.c.l.b16 %v1076
        %v1637 = vunpack.c.h.b16 %v1076
        %v1638 = vunpack.c.l.b16 %v1077
        %v1639 = vunpack.c.h.b16 %v1077
        %v1640 = vunpack.c.l.b16 %v1078
        %v1641 = vunpack.c.h.b16 %v1078
        %v1642 = vunpack.c.l.b16 %v1079
        %v1643 = vunpack.c.h.b16 %v1079
        %v1644 = vunpack.c.l.b16 %v1080
        %v1645 = vunpack.c.h.b16 %v1080
        %v1646 = vunpack.c.l.b16 %v1081
        %v1647 = vunpack.c.h.b16 %v1081
        %v1648 = vunpack.c.l.b16 %v1082
        %v1649 = vunpack.c.h.b16 %v1082
        %v1650 = vunpack.c.l.b16 %v1083
        %v1651 = vunpack.c.h.b16 %v1083
        %v1652 = vunpack.c.l.b16 %v1084
        %v1653 = vunpack.c.h.b16 %v1084
        %v1654 = vunpack.c.l.b16 %v1085
        %v1655 = vunpack.c.h.b16 %v1085
        %v1656 = vunpack.c.l.b16 %v1086
        %v1657 = vunpack.c.h.b16 %v1086
        %v1658 = vunpack.c.l.b16 %v1087
        %v1659 = vunpack.c.h.b16 %v1087
        %v1660 = vunpack.c.l.b16 %v1088
        %v1661 = vunpack.c.h.b16 %v1088
        %v1662 = vunpack.c.l.b16 %v1089
        %v1663 = vunpack.c.h.b16 %v1089
        %v1664 = vunpack.c.l.b16 %v1090
        %v1665 = vunpack.c.h.b16 %v1090
        %v1666 = vunpack.c.l.b16 %v1091
        %v1667 = vunpack.c.h.b16 %v1091
        %v1668 = vunpack.c.l.b16 %v1092
        %v1669 = vunpack.c.h.b16 %v1092
        %v1670 = vunpack.c.l.b16 %v1093
        %v1671 = vunpack.c.h.b16 %v1093
        %v1672 = vunpack.c.l.b16 %v1094
        %v1673 = vunpack.c.h.b16 %v1094
        %v1674 = vunpack.c.l.b16 %v1095
        %v1675 = vunpack.c.h.b16 %v1095
        %v1676 = vunpack.c.l.b16 %v1096
        %v1677 = vunpack.c.h.b16 %v1096
        %v1678 = vunpack.c.l.b16 %v1097
        %v1679 = vunpack.c.h.b16 %v1097
        %v1680 = vunpack.c.l.b16 %v1098
        %v1681 = vunpack.c.h.b16 %v1098
        %v1682 = vunpack.c.l.b16 %v1099
        %v1683 = vunpack.c.h.b16 %v1099
        %v1684 = vunpack.c.l.b16 %v1100
        %v1685 = vunpack.c.h.b16 %v1100
        %v1686 = vunpack.c.l.b16 %v1101
        %v1687 = vunpack.c.h.b16 %v1101
        %v1688 = vunpack.c.l.b16 %v1102
        %v1689 = vunpack.c.h.b16 %v1102
        %v1690 = vunpack.c.l.b16 %v1103
        %v1691 = vunpack.c.h.b16 %v1103
        %v1692 = vunpack.c.l.b16 %v1104
        %v1693 = vunpack.c.h.b16 %v1104
        %v1694 = vunpack.c.l.b16 %v1105
        %v1695 = vunpack.c.h.b16 %v1105
        %v1696 = vunpack.c.l.b16 %v1106
        %v1697 = vunpack.c.h.b16 %v1106
        %v1698 = vunpack.c.l.b16 %v1107
        %v1699 = vunpack.c.h.b16 %v1107
        %v1700 = vunpack.c.l.b16 %v1108
        %v1701 = vunpack.c.h.b16 %v1108
        %v1702 = vunpack.c.l.b16 %v1109
        %v1703 = vunpack.c.h.b16 %v1109
        %v1704 = vunpack.c.l.b16 %v1110
        %v1705 = vunpack.c.h.b16 %v1110
        %v1706 = vunpack.c.l.b16 %v1111
        %v1707 = vunpack.c.h.b16 %v1111
        %v1708 = vunpack.c.l.b16 %v1112
        %v1709 = vunpack.c.h.b16 %v1112
        %v1710 = vunpack.c.l.b16 %v1113
        %v1711 = vunpack.c.h.b16 %v1113
        %v1712 = vunpack.c.l.b16 %v1114
        %v1713 = vunpack.c.h.b16 %v1114
        %v1714 = vunpack.c.l.b16 %v1115
        %v1715 = vunpack.c.h.b16 %v1115
        %v1716 = vunpack.c.l.b16 %v1116
        %v1717 = vunpack.c.h.b16 %v1116
        %v1718 = vunpack.c.l.b16 %v1117
        %v1719 = vunpack.c.h.b16 %v1117
        %v1720 = vunpack.c.l.b16 %v1118
        %v1721 = vunpack.c.h.b16 %v1118
        %v1722 = vunpack.c.l.b16 %v1119
        %v1723 = vunpack.c.h.b16 %v1119
        %v1724 = vunpack.c.l.b16 %v1120
        %v1725 = vunpack.c.h.b16 %v1120
        %v1726 = vunpack.c.l.b16 %v1121
        %v1727 = vunpack.c.h.b16 %v1121
        %v1728 = vunpack.c.l.b16 %v1122
        %v1729 = vunpack.c.h.b16 %v1122
        %v1730 = vunpack.c.l.b16 %v1123
        %v1731 = vunpack.c.h.b16 %v1123
        %v1732 = vunpack.c.l.b16 %v1124
        %v1733 = vunpack.c.h.b16 %v1124
        %v1734 = vunpack.c.l.b16 %v1125
        %v1735 = vunpack.c.h.b16 %v1125
        %v1736 = vunpack.c.l.b16 %v1126
        %v1737 = vunpack.c.h.b16 %v1126
        %v1738 = vunpack.c.l.b16 %v1127
        %v1739 = vunpack.c.h.b16 %v1127
        %v1740 = vunpack.c.l.b16 %v1128
        %v1741 = vunpack.c.h.b16 %v1128
        %v1742 = vunpack.c.l.b16 %v1129
        %v1743 = vunpack.c.h.b16 %v1129
        %v1744 = vunpack.c.l.b16 %v1130
        %v1745 = vunpack.c.h.b16 %v1130
        %v1746 = vunpack.c.l.b16 %v1131
        %v1747 = vunpack.c.h.b16 %v1131
        %v1748 = vunpack.c.l.b16 %v1132
        %v1749 = vunpack.c.h.b16 %v1132
        %v1750 = vunpack.c.l.b16 %v1133
        %v1751 = vunpack.c.h.b16 %v1133
        %v1752 = vunpack.c.l.b16 %v1134
        %v1753 = vunpack.c.h.b16 %v1134
        %v1754 = vunpack.c.l.b16 %v1135
        %v1755 = vunpack.c.h.b16 %v1135
        %v1756 = vunpack.c.l.b16 %v1136
        %v1757 = vunpack.c.h.b16 %v1136
        %v1758 = vunpack.c.l.b16 %v1137
        %v1759 = vunpack.c.h.b16 %v1137
        %v1760 = vunpack.c.l.b16 %v1138
        %v1761 = vunpack.c.h.b16 %v1138
        %v1762 = vunpack.c.l.b16 %v1139
        %v1763 = vunpack.c.h.b16 %v1139
        %v1764 = vunpack.c.l.b16 %v1140
        %v1765 = vunpack.c.h.b16 %v1140
        %v1766 = vunpack.c.l.b16 %v1141
        %v1767 = vunpack.c.h.b16 %v1141
        %v1768 = vunpack.c.l.b16 %v1142
        %v1769 = vunpack.c.h.b16 %v1142
        %v1770 = vunpack.c.l.b16 %v1143
        %v1771 = vunpack.c.h.b16 %v1143
        %v1772 = vunpack.c.l.b16 %v1144
        %v1773 = vunpack.c.h.b16 %v1144
        %v1774 = vunpack.c.l.b16 %v1145
        %v1775 = vunpack.c.h.b16 %v1145
        %v1776 = vunpack.c.l.b16 %v1146
        %v1777 = vunpack.c.h.b16 %v1146
        %v1778 = vunpack.c.l.b16 %v1147
        %v1779 = vunpack.c.h.b16 %v1147
        %v1780 = vunpack.c.l.b16 %v1148
        %v1781 = vunpack.c.h.b16 %v1148
        %v1782 = vunpack.c.l.b16 %v1149
        %v1783 = vunpack.c.h.b16 %v1149
        %v1784 = vunpack.c.l.b16 %v1150
        %v1785 = vunpack.c.h.b16 %v1150
        %v1786 = vunpack.c.l.b16 %v1151
        %v1787 = vunpack.c.h.b16 %v1151
        %v1788 = vunpack.c.l.b16 %v1152
        %v1789 = vunpack.c.h.b16 %v1152
        %v1790 = vunpack.c.l.b16 %v1153
        %v1791 = vunpack.c.h.b16 %v1153
        %v1792 = vunpack.c.l.b16 %v1154
        %v1793 = vunpack.c.h.b16 %v1154
        %v1794 = vunpack.c.l.b16 %v1155
        %v1795 = vunpack.c.h.b16 %v1155
        %v1796 = vunpack.c.l.b16 %v1156
        %v1797 = vunpack.c.h.b16 %v1156
        %v1798 = vunpack.c.l.b16 %v1157
        %v1799 = vunpack.c.h.b16 %v1157
        %v1800 = vunpack.c.l.b16 %v1158
        %v1801 = vunpack.c.h.b16 %v1158
        %v1802 = vunpack.c.l.b16 %v1159
        %v1803 = vunpack.c.h.b16 %v1159
        %v1804 = vunpack.c.l.b16 %v1160
        %v1805 = vunpack.c.h.b16 %v1160
        %v1806 = vunpack.c.l.b16 %v1161
        %v1807 = vunpack.c.h.b16 %v1161
        %v1808 = vunpack.c.l.b16 %v1162
        %v1809 = vunpack.c.h.b16 %v1162
        %v1810 = vunpack.c.l.b16 %v1163
        %v1811 = vunpack.c.h.b16 %v1163
        %v1812 = vunpack.c.l.b16 %v1164
        %v1813 = vunpack.c.h.b16 %v1164
        %v1814 = vunpack.c.l.b16 %v1165
        %v1815 = vunpack.c.h.b16 %v1165
        %v1816 = vunpack.c.l.b16 %v1166
        %v1817 = vunpack.c.h.b16 %v1166
        %v1818 = vunpack.c.l.b16 %v1167
        %v1819 = vunpack.c.h.b16 %v1167
        %v1820 = vunpack.c.l.b16 %v1168
        %v1821 = vunpack.c.h.b16 %v1168
        %v1822 = vunpack.c.l.b16 %v1169
        %v1823 = vunpack.c.h.b16 %v1169
        %v1824 = vunpack.c.l.b16 %v1170
        %v1825 = vunpack.c.h.b16 %v1170
        %v1826 = vunpack.c.l.b16 %v1171
        %v1827 = vunpack.c.h.b16 %v1171
        %v1828 = vunpack.c.l.b16 %v1172
        %v1829 = vunpack.c.h.b16 %v1172
        %v1830 = vunpack.c.l.b16 %v1173
        %v1831 = vunpack.c.h.b16 %v1173
        %v1832 = vunpack.c.l.b16 %v1174
        %v1833 = vunpack.c.h.b16 %v1174
        %v1834 = vunpack.c.l.b16 %v1175
        %v1835 = vunpack.c.h.b16 %v1175
        %v1836 = vunpack.c.l.b16 %v1176
        %v1837 = vunpack.c.h.b16 %v1176
        %v1838 = vunpack.c.l.b16 %v1177
        %v1839 = vunpack.c.h.b16 %v1177
        %v1840 = vunpack.c.l.b16 %v1178
        %v1841 = vunpack.c.h.b16 %v1178
        %v1842 = vunpack.c.l.b16 %v1179
        %v1843 = vunpack.c.h.b16 %v1179
        %v1844 = vunpack.c.l.b16 %v1180
        %v1845 = vunpack.c.h.b16 %v1180
        %v1846 = vunpack.c.l.b16 %v1181
        %v1847 = vunpack.c.h.b16 %v1181
        %v1848 = vunpack.c.l.b16 %v1182
        %v1849 = vunpack.c.h.b16 %v1182
        %v1850 = vunpack.c.l.b16 %v1183
        %v1851 = vunpack.c.h.b16 %v1183
        %v1852 = vunpack.c.l.b16 %v1184
        %v1853 = vunpack.c.h.b16 %v1184
        %v1854 = vunpack.c.l.b16 %v1185
        %v1855 = vunpack.c.h.b16 %v1185
        %v1856 = vunpack.c.l.b16 %v1186
        %v1857 = vunpack.c.h.b16 %v1186
        %v1858 = vunpack.c.l.b16 %v1187
        %v1859 = vunpack.c.h.b16 %v1187
        %v1860 = vunpack.c.l.b16 %v1188
        %v1861 = vunpack.c.h.b16 %v1188
        %v1862 = vunpack.c.l.b16 %v1189
        %v1863 = vunpack.c.h.b16 %v1189
        %v1864 = vunpack.c.l.b16 %v1190
        %v1865 = vunpack.c.h.b16 %v1190
        %v1866 = vunpack.c.l.b16 %v1191
        %v1867 = vunpack.c.h.b16 %v1191
        %v1868 = vunpack.c.l.b16 %v1192
        %v1869 = vunpack.c.h.b16 %v1192
        %v1870 = vunpack.c.l.b16 %v1193
        %v1871 = vunpack.c.h.b16 %v1193
        %v1872 = vunpack.c.l.b16 %v1194
        %v1873 = vunpack.c.h.b16 %v1194
        %v1874 = vunpack.c.l.b16 %v1195
        %v1875 = vunpack.c.h.b16 %v1195
        %v1876 = vunpack.c.l.b16 %v1196
        %v1877 = vunpack.c.h.b16 %v1196
        %v1878 = vunpack.c.l.b16 %v1197
        %v1879 = vunpack.c.h.b16 %v1197
        %v1880 = vunpack.c.l.b16 %v1198
        %v1881 = vunpack.c.h.b16 %v1198
        %v1882 = vunpack.c.l.b16 %v1199
        %v1883 = vunpack.c.h.b16 %v1199
        %v1884 = vunpack.c.l.b16 %v1200
        %v1885 = vunpack.c.h.b16 %v1200
        %v1886 = vunpack.c.l.b16 %v1201
        %v1887 = vunpack.c.h.b16 %v1201
        %v1888 = vunpack.c.l.b16 %v1202
        %v1889 = vunpack.c.h.b16 %v1202
        %v1890 = vunpack.c.l.b16 %v1203
        %v1891 = vunpack.c.h.b16 %v1203
        %v1892 = vunpack.c.l.b16 %v1204
        %v1893 = vunpack.c.h.b16 %v1204
        %v1894 = vunpack.c.l.b16 %v1205
        %v1895 = vunpack.c.h.b16 %v1205
        %v1896 = vunpack.c.l.b16 %v1206
        %v1897 = vunpack.c.h.b16 %v1206
        %v1898 = vunpack.c.l.b16 %v1207
        %v1899 = vunpack.c.h.b16 %v1207
        %v1900 = vunpack.c.l.b16 %v1208
        %v1901 = vunpack.c.h.b16 %v1208
        %v1902 = vunpack.c.l.b16 %v1209
        %v1903 = vunpack.c.h.b16 %v1209
        %v1904 = vunpack.c.l.b16 %v1210
        %v1905 = vunpack.c.h.b16 %v1210
        %v1906 = vunpack.c.l.b16 %v1211
        %v1907 = vunpack.c.h.b16 %v1211
        %v1908 = vunpack.c.l.b16 %v1212
        %v1909 = vunpack.c.h.b16 %v1212
        %v1910 = vunpack.c.l.b16 %v1213
        %v1911 = vunpack.c.h.b16 %v1213
        %v1912 = vunpack.c.l.b16 %v1214
        %v1913 = vunpack.c.h.b16 %v1214
        %v1914 = vunpack.c.l.b16 %v1215
        %v1915 = vunpack.c.h.b16 %v1215
        %v1916 = vunpack.c.l.b16 %v1216
        %v1917 = vunpack.c.h.b16 %v1216
        %v1918 = vunpack.c.l.b16 %v1217
        %v1919 = vunpack.c.h.b16 %v1217
        %v1920 = vunpack.c.l.b16 %v1218
        %v1921 = vunpack.c.h.b16 %v1218
        %v1922 = vunpack.c.l.b16 %v1219
        %v1923 = vunpack.c.h.b16 %v1219
        %v1924 = vunpack.c.l.b16 %v1220
        %v1925 = vunpack.c.h.b16 %v1220
        %v1926 = vunpack.c.l.b16 %v1221
        %v1927 = vunpack.c.h.b16 %v1221
        %v1928 = vunpack.c.l.b16 %v1222
        %v1929 = vunpack.c.h.b16 %v1222
        %v1930 = vunpack.c.l.b16 %v1223
        %v1931 = vunpack.c.h.b16 %v1223
        %v1932 = vunpack.c.l.b16 %v1224
        %v1933 = vunpack.c.h.b16 %v1224
        %v1934 = vunpack.c.l.b16 %v1225
        %v1935 = vunpack.c.h.b16 %v1225
        %v1936 = vunpack.c.l.b16 %v1226
        %v1937 = vunpack.c.h.b16 %v1226
        %v1938 = vunpack.c.l.b16 %v1227
        %v1939 = vunpack.c.h.b16 %v1227
        %v1940 = vunpack.c.l.b16 %v1228
        %v1941 = vunpack.c.h.b16 %v1228
        %v1942 = vunpack.c.l.b16 %v1229
        %v1943 = vunpack.c.h.b16 %v1229
        %v1944 = vunpack.c.l.b16 %v1230
        %v1945 = vunpack.c.h.b16 %v1230
        %v1946 = vunpack.c.l.b16 %v1231
        %v1947 = vunpack.c.h.b16 %v1231
        %v1948 = vunpack.c.l.b16 %v1232
        %v1949 = vunpack.c.h.b16 %v1232
        %v1950 = vunpack.c.l.b16 %v1233
        %v1951 = vunpack.c.h.b16 %v1233
        %v1952 = vunpack.c.l.b16 %v1234
        %v1953 = vunpack.c.h.b16 %v1234
        %v1954 = vunpack.c.l.b16 %v1235
        %v1955 = vunpack.c.h.b16 %v1235
        %v1956 = vunpack.c.l.b16 %v1236
        %v1957 = vunpack.c.h.b16 %v1236
        %v1958 = vunpack.c.l.b16 %v1237
        %v1959 = vunpack.c.h.b16 %v1237
        %v1960 = vunpack.c.l.b16 %v1238
        %v1961 = vunpack.c.h.b16 %v1238
        %v1962 = vunpack.c.l.b16 %v1239
        %v1963 = vunpack.c.h.b16 %v1239
        %v1964 = vunpack.c.l.b16 %v1240
        %v1965 = vunpack.c.h.b16 %v1240
        %v1966 = vunpack.c.l.b16 %v1241
        %v1967 = vunpack.c.h.b16 %v1241
        %v1968 = vunpack.c.l.b16 %v1242
        %v1969 = vunpack.c.h.b16 %v1242
        %v1970 = vunpack.c.l.b16 %v1243
        %v1971 = vunpack.c.h.b16 %v1243
        %v1972 = vunpack.c.l.b16 %v1244
        %v1973 = vunpack.c.h.b16 %v1244
        %v1974 = vunpack.c.l.b16 %v1245
        %v1975 = vunpack.c.h.b16 %v1245
        %v1976 = vunpack.c.l.b16 %v1246
        %v1977 = vunpack.c.h.b16 %v1246
        %v1978 = vunpack.c.l.b16 %v1247
        %v1979 = vunpack.c.h.b16 %v1247
        %v1980 = vunpack.c.l.b16 %v1248
        %v1981 = vunpack.c.h.b16 %v1248
        %v1982 = vunpack.c.l.b16 %v1249
        %v1983 = vunpack.c.h.b16 %v1249
        %v1984 = vunpack.c.l.b16 %v1250
        %v1985 = vunpack.c.h.b16 %v1250
        %v1986 = vunpack.c.l.b16 %v1251
        %v1987 = vunpack.c.h.b16 %v1251
        %v1988 = vunpack.c.l.b16 %v1252
        %v1989 = vunpack.c.h.b16 %v1252
        %v1990 = vunpack.c.l.b16 %v1253
        %v1991 = vunpack.c.h.b16 %v1253
        %v1992 = vunpack.c.l.b16 %v1254
        %v1993 = vunpack.c.h.b16 %v1254
        %v1994 = vunpack.c.l.b16 %v1255
        %v1995 = vunpack.c.h.b16 %v1255
        %v1996 = vunpack.c.l.b16 %v1256
        %v1997 = vunpack.c.h.b16 %v1256
        %v1998 = vunpack.c.l.b16 %v1257
        %v1999 = vunpack.c.h.b16 %v1257
        %v2000 = vunpack.c.l.b16 %v1258
        %v2001 = vunpack.c.h.b16 %v1258
        %v2002 = vunpack.c.l.b16 %v1259
        %v2003 = vunpack.c.h.b16 %v1259
        %v2004 = vunpack.c.l.b16 %v1260
        %v2005 = vunpack.c.h.b16 %v1260
        %v2006 = vunpack.c.l.b16 %v1261
        %v2007 = vunpack.c.h.b16 %v1261
        %v2008 = vunpack.c.l.b16 %v1262
        %v2009 = vunpack.c.h.b16 %v1262
        %v2010 = vunpack.c.l.b16 %v1263
        %v2011 = vunpack.c.h.b16 %v1263
        %v2012 = vunpack.c.l.b16 %v1264
        %v2013 = vunpack.c.h.b16 %v1264
        %v2014 = vunpack.c.l.b16 %v1265
        %v2015 = vunpack.c.h.b16 %v1265
        %v2016 = vunpack.c.l.b16 %v1266
        %v2017 = vunpack.c.h.b16 %v1266
        %v2018 = vunpack.c.l.b16 %v1267
        %v2019 = vunpack.c.h.b16 %v1267
        %v2020 = vunpack.c.l.b16 %v1268
        %v2021 = vunpack.c.h.b16 %v1268
        %v2022 = vunpack.c.l.b16 %v1269
        %v2023 = vunpack.c.h.b16 %v1269
        %v2024 = vunpack.c.l.b16 %v1270
        %v2025 = vunpack.c.h.b16 %v1270
        %v2026 = vunpack.c.l.b16 %v1271
        %v2027 = vunpack.c.h.b16 %v1271
        %v2028 = vunpack.c.l.b16 %v1272
        %v2029 = vunpack.c.h.b16 %v1272
        %v2030 = vunpack.c.l.b16 %v1273
        %v2031 = vunpack.c.h.b16 %v1273
        %v2032 = vunpack.c.l.b16 %v1274
        %v2033 = vunpack.c.h.b16 %v1274
        %v2034 = vunpack.c.l.b16 %v1275
        %v2035 = vunpack.c.h.b16 %v1275
        %v2036 = vunpack.c.l.b16 %v1276
        %v2037 = vunpack.c.h.b16 %v1276
        %v2038 = vunpack.c.l.b16 %v1277
        %v2039 = vunpack.c.h.b16 %v1277
        %v2040 = vunpack.c.l.b16 %v1278
        %v2041 = vunpack.c.h.b16 %v1278
        %v2042 = vunpack.c.l.b16 %v1279
        %v2043 = vunpack.c.h.b16 %v1279
        %v2044 = vunpack.c.l.b16 %v1280
        %v2045 = vunpack.c.h.b16 %v1280
        %v2046 = vunpack.c.l.b16 %v1281
        %v2047 = vunpack.c.h.b16 %v1281
        %v2048 = vunpack.c.l.b16 %v1282
        %v2049 = vunpack.c.h.b16 %v1282
        %v2050 = vunpack.c.l.b16 %v1283
        %v2051 = vunpack.c.h.b16 %v1283
        %v2052 = vpack.c.b16 %v1544, %v1540
        %v2053 = vpack.c.b16 %v1545, %v1541
        %v2054 = vpack.c.b16 %v1546, %v1542
        %v2055 = vpack.c.b16 %v1547, %v1543
        %v2056 = vpack.c.b16 %v1552, %v1548
        %v2057 = vpack.c.b16 %v1553, %v1549
        %v2058 = vpack.c.b16 %v1554, %v1550
        %v2059 = vpack.c.b16 %v1555, %v1551
        %v2060 = vpack.c.b16 %v1560, %v1556
        %v2061 = vpack.c.b16 %v1561, %v1557
        %v2062 = vpack.c.b16 %v1562, %v1558
        %v2063 = vpack.c.b16 %v1563, %v1559
        %v2064 = vpack.c.b16 %v1568, %v1564
        %v2065 = vpack.c.b16 %v1569, %v1565
        %v2066 = vpack.c.b16 %v1570, %v1566
        %v2067 = vpack.c.b16 %v1571, %v1567
        %v2068 = vpack.c.b16 %v1576, %v1572
        %v2069 = vpack.c.b16 %v1577, %v1573
        %v2070 = vpack.c.b16 %v1578, %v1574
        %v2071 = vpack.c.b16 %v1579, %v1575
        %v2072 = vpack.c.b16 %v1584, %v1580
        %v2073 = vpack.c.b16 %v1585, %v1581
        %v2074 = vpack.c.b16 %v1586, %v1582
        %v2075 = vpack.c.b16 %v1587, %v1583
        %v2076 = vpack.c.b16 %v1592, %v1588
        %v2077 = vpack.c.b16 %v1593, %v1589
        %v2078 = vpack.c.b16 %v1594, %v1590
        %v2079 = vpack.c.b16 %v1595, %v1591
        %v2080 = vpack.c.b16 %v1600, %v1596
        %v2081 = vpack.c.b16 %v1601, %v1597
        %v2082 = vpack.c.b16 %v1602, %v1598
        %v2083 = vpack.c.b16 %v1603, %v1599
        %v2084 = vpack.c.b16 %v1608, %v1604
        %v2085 = vpack.c.b16 %v1609, %v1605
        %v2086 = vpack.c.b16 %v1610, %v1606
        %v2087 = vpack.c.b16 %v1611, %v1607
        %v2088 = vpack.c.b16 %v1616, %v1612
        %v2089 = vpack.c.b16 %v1617, %v1613
        %v2090 = vpack.c.b16 %v1618, %v1614
        %v2091 = vpack.c.b16 %v1619, %v1615
        %v2092 = vpack.c.b16 %v1624, %v1620
        %v2093 = vpack.c.b16 %v1625, %v1621
        %v2094 = vpack.c.b16 %v1626, %v1622
        %v2095 = vpack.c.b16 %v1627, %v1623
        %v2096 = vpack.c.b16 %v1632, %v1628
        %v2097 = vpack.c.b16 %v1633, %v1629
        %v2098 = vpack.c.b16 %v1634, %v1630
        %v2099 = vpack.c.b16 %v1635, %v1631
        %v2100 = vpack.c.b16 %v1640, %v1636
        %v2101 = vpack.c.b16 %v1641, %v1637
        %v2102 = vpack.c.b16 %v1642, %v1638
        %v2103 = vpack.c.b16 %v1643, %v1639
        %v2104 = vpack.c.b16 %v1648, %v1644
        %v2105 = vpack.c.b16 %v1649, %v1645
        %v2106 = vpack.c.b16 %v1650, %v1646
        %v2107 = vpack.c.b16 %v1651, %v1647
        %v2108 = vpack.c.b16 %v1656, %v1652
        %v2109 = vpack.c.b16 %v1657, %v1653
        %v2110 = vpack.c.b16 %v1658, %v1654
        %v2111 = vpack.c.b16 %v1659, %v1655
        %v2112 = vpack.c.b16 %v1664, %v1660
        %v2113 = vpack.c.b16 %v1665, %v1661
        %v2114 = vpack.c.b16 %v1666, %v1662
        %v2115 = vpack.c.b16 %v1667, %v1663
        %v2116 = vpack.c.b16 %v1672, %v1668
        %v2117 = vpack.c.b16 %v1673, %v1669
        %v2118 = vpack.c.b16 %v1674, %v1670
        %v2119 = vpack.c.b16 %v1675, %v1671
        %v2120 = vpack.c.b16 %v1680, %v1676
        %v2121 = vpack.c.b16 %v1681, %v1677
        %v2122 = vpack.c.b16 %v1682, %v1678
        %v2123 = vpack.c.b16 %v1683, %v1679
        %v2124 = vpack.c.b16 %v1688, %v1684
        %v2125 = vpack.c.b16 %v1689, %v1685
        %v2126 = vpack.c.b16 %v1690, %v1686
        %v2127 = vpack.c.b16 %v1691, %v1687
        %v2128 = vpack.c.b16 %v1696, %v1692
        %v2129 = vpack.c.b16 %v1697, %v1693
        %v2130 = vpack.c.b16 %v1698, %v1694
        %v2131 = vpack.c.b16 %v1699, %v1695
        %v2132 = vpack.c.b16 %v1704, %v1700
        %v2133 = vpack.c.b16 %v1705, %v1701
        %v2134 = vpack.c.b16 %v1706, %v1702
        %v2135 = vpack.c.b16 %v1707, %v1703
        %v2136 = vpack.c.b16 %v1712, %v1708
        %v2137 = vpack.c.b16 %v1713, %v1709
        %v2138 = vpack.c.b16 %v1714, %v1710
        %v2139 = vpack.c.b16 %v1715, %v1711
        %v2140 = vpack.c.b16 %v1720, %v1716
        %v2141 = vpack.c.b16 %v1721, %v1717
        %v2142 = vpack.c.b16 %v1722, %v1718
        %v2143 = vpack.c.b16 %v1723, %v1719
        %v2144 = vpack.c.b16 %v1728, %v1724
        %v2145 = vpack.c.b16 %v1729, %v1725
        %v2146 = vpack.c.b16 %v1730, %v1726
        %v2147 = vpack.c.b16 %v1731, %v1727
        %v2148 = vpack.c.b16 %v1736, %v1732
        %v2149 = vpack.c.b16 %v1737, %v1733
        %v2150 = vpack.c.b16 %v1738, %v1734
        %v2151 = vpack.c.b16 %v1739, %v1735
        %v2152 = vpack.c.b16 %v1744, %v1740
        %v2153 = vpack.c.b16 %v1745, %v1741
        %v2154 = vpack.c.b16 %v1746, %v1742
        %v2155 = vpack.c.b16 %v1747, %v1743
        %v2156 = vpack.c.b16 %v1752, %v1748
        %v2157 = vpack.c.b16 %v1753, %v1749
        %v2158 = vpack.c.b16 %v1754, %v1750
        %v2159 = vpack.c.b16 %v1755, %v1751
        %v2160 = vpack.c.b16 %v1760, %v1756
        %v2161 = vpack.c.b16 %v1761, %v1757
        %v2162 = vpack.c.b16 %v1762, %v1758
        %v2163 = vpack.c.b16 %v1763, %v1759
        %v2164 = vpack.c.b16 %v1768, %v1764
        %v2165 = vpack.c.b16 %v1769, %v1765
        %v2166 = vpack.c.b16 %v1770, %v1766
        %v2167 = vpack.c.b16 %v1771, %v1767
        %v2168 = vpack.c.b16 %v1776, %v1772
        %v2169 = vpack.c.b16 %v1777, %v1773
        %v2170 = vpack.c.b16 %v1778, %v1774
        %v2171 = vpack.c.b16 %v1779, %v1775
        %v2172 = vpack.c.b16 %v1784, %v1780
        %v2173 = vpack.c.b16 %v1785, %v1781
        %v2174 = vpack.c.b16 %v1786, %v1782
        %v2175 = vpack.c.b16 %v1787, %v1783
        %v2176 = vpack.c.b16 %v1792, %v1788
        %v2177 = vpack.c.b16 %v1793, %v1789
        %v2178 = vpack.c.b16 %v1794, %v1790
        %v2179 = vpack.c.b16 %v1795, %v1791
        %v2180 = vpack.c.b16 %v1800, %v1796
        %v2181 = vpack.c.b16 %v1801, %v1797
        %v2182 = vpack.c.b16 %v1802, %v1798
        %v2183 = vpack.c.b16 %v1803, %v1799
        %v2184 = vpack.c.b16 %v1808, %v1804
        %v2185 = vpack.c.b16 %v1809, %v1805
        %v2186 = vpack.c.b16 %v1810, %v1806
        %v2187 = vpack.c.b16 %v1811, %v1807
        %v2188 = vpack.c.b16 %v1816, %v1812
        %v2189 = vpack.c.b16 %v1817, %v1813
        %v2190 = vpack.c.b16 %v1818, %v1814
        %v2191 = vpack.c.b16 %v1819, %v1815
        %v2192 = vpack.c.b16 %v1824, %v1820
        %v2193 = vpack.c.b16 %v1825, %v1821
        %v2194 = vpack.c.b16 %v1826, %v1822
        %v2195 = vpack.c.b16 %v1827, %v1823
        %v2196 = vpack.c.b16 %v1832, %v1828
        %v2197 = vpack.c.b16 %v1833, %v1829
        %v2198 = vpack.c.b16 %v1834, %v1830
        %v2199 = vpack.c.b16 %v1835, %v1831
        %v2200 = vpack.c.b16 %v1840, %v1836
        %v2201 = vpack.c.b16 %v1841, %v1837
        %v2202 = vpack.c.b16 %v1842, %v1838
        %v2203 = vpack.c.b16 %v1843, %v1839
        %v2204 = vpack.c.b16 %v1848, %v1844
        %v2205 = vpack.c.b16 %v1849, %v1845
        %v2206 = vpack.c.b16 %v1850, %v1846
        %v2207 = vpack.c.b16 %v1851, %v1847
        %v2208 = vpack.c.b16 %v1856, %v1852
        %v2209 = vpack.c.b16 %v1857, %v1853
        %v2210 = vpack.c.b16 %v1858, %v1854
        %v2211 = vpack.c.b16 %v1859, %v1855
        %v2212 = vpack.c.b16 %v1864, %v1860
        %v2213 = vpack.c.b16 %v1865, %v1861
        %v2214 = vpack.c.b16 %v1866, %v1862
        %v2215 = vpack.c.b16 %v1867, %v1863
        %v2216 = vpack.c.b16 %v1872, %v1868
        %v2217 = vpack.c.b16 %v1873, %v1869
        %v2218 = vpack.c.b16 %v1874, %v1870
        %v2219 = vpack.c.b16 %v1875, %v1871
        %v2220 = vpack.c.b16 %v1880, %v1876
        %v2221 = vpack.c.b16 %v1881, %v1877
        %v2222 = vpack.c.b16 %v1882, %v1878
        %v2223 = vpack.c.b16 %v1883, %v1879
        %v2224 = vpack.c.b16 %v1888, %v1884
        %v2225 = vpack.c.b16 %v1889, %v1885
        %v2226 = vpack.c.b16 %v1890, %v1886
        %v2227 = vpack.c.b16 %v1891, %v1887
        %v2228 = vpack.c.b16 %v1896, %v1892
        %v2229 = vpack.c.b16 %v1897, %v1893
        %v2230 = vpack.c.b16 %v1898, %v1894
        %v2231 = vpack.c.b16 %v1899, %v1895
        %v2232 = vpack.c.b16 %v1904, %v1900
        %v2233 = vpack.c.b16 %v1905, %v1901
        %v2234 = vpack.c.b16 %v1906, %v1902
        %v2235 = vpack.c.b16 %v1907, %v1903
        %v2236 = vpack.c.b16 %v1912, %v1908
        %v2237 = vpack.c.b16 %v1913, %v1909
        %v2238 = vpack.c.b16 %v1914, %v1910
        %v2239 = vpack.c.b16 %v1915, %v1911
        %v2240 = vpack.c.b16 %v1920, %v1916
        %v2241 = vpack.c.b16 %v1921, %v1917
        %v2242 = vpack.c.b16 %v1922, %v1918
        %v2243 = vpack.c.b16 %v1923, %v1919
        %v2244 = vpack.c.b16 %v1928, %v1924
        %v2245 = vpack.c.b16 %v1929, %v1925
        %v2246 = vpack.c.b16 %v1930, %v1926
        %v2247 = vpack.c.b16 %v1931, %v1927
        %v2248 = vpack.c.b16 %v1936, %v1932
        %v2249 = vpack.c.b16 %v1937, %v1933
        %v2250 = vpack.c.b16 %v1938, %v1934
        %v2251 = vpack.c.b16 %v1939, %v1935
        %v2252 = vpack.c.b16 %v1944, %v1940
        %v2253 = vpack.c.b16 %v1945, %v1941
        %v2254 = vpack.c.b16 %v1946, %v1942
        %v2255 = vpack.c.b16 %v1947, %v1943
        %v2256 = vpack.c.b16 %v1952, %v1948
        %v2257 = vpack.c.b16 %v1953, %v1949
        %v2258 = vpack.c.b16 %v1954, %v1950
        %v2259 = vpack.c.b16 %v1955, %v1951
        %v2260 = vpack.c.b16 %v1960, %v1956
        %v2261 = vpack.c.b16 %v1961, %v1957
        %v2262 = vpack.c.b16 %v1962, %v1958
        %v2263 = vpack.c.b16 %v1963, %v1959
        %v2264 = vpack.c.b16 %v1968, %v1964
        %v2265 = vpack.c.b16 %v1969, %v1965
        %v2266 = vpack.c.b16 %v1970, %v1966
        %v2267 = vpack.c.b16 %v1971, %v1967
        %v2268 = vpack.c.b16 %v1976, %v1972
        %v2269 = vpack.c.b16 %v1977, %v1973
        %v2270 = vpack.c.b16 %v1978, %v1974
        %v2271 = vpack.c.b16 %v1979, %v1975
        %v2272 = vpack.c.b16 %v1984, %v1980
        %v2273 = vpack.c.b16 %v1985, %v1981
        %v2274 = vpack.c.b16 %v1986, %v1982
        %v2275 = vpack.c.b16 %v1987, %v1983
        %v2276 = vpack.c.b16 %v1992, %v1988
        %v2277 = vpack.c.b16 %v1993, %v1989
        %v2278 = vpack.c.b16 %v1994, %v1990
        %v2279 = vpack.c.b16 %v1995, %v1991
        %v2280 = vpack.c.b16 %v2000, %v1996
        %v2281 = vpack.c.b16 %v2001, %v1997
        %v2282 = vpack.c.b16 %v2002, %v1998
        %v2283 = vpack.c.b16 %v2003, %v1999
        %v2284 = vpack.c.b16 %v2008, %v2004
        %v2285 = vpack.c.b16 %v2009, %v2005
        %v2286 = vpack.c.b16 %v2010, %v2006
        %v2287 = vpack.c.b16 %v2011, %v2007
        %v2288 = vpack.c.b16 %v2016, %v2012
        %v2289 = vpack.c.b16 %v2017, %v2013
        %v2290 = vpack.c.b16 %v2018, %v2014
        %v2291 = vpack.c.b16 %v2019, %v2015
        %v2292 = vpack.c.b16 %v2024, %v2020
        %v2293 = vpack.c.b16 %v2025, %v2021
        %v2294 = vpack.c.b16 %v2026, %v2022
        %v2295 = vpack.c.b16 %v2027, %v2023
        %v2296 = vpack.c.b16 %v2032, %v2028
        %v2297 = vpack.c.b16 %v2033, %v2029
        %v2298 = vpack.c.b16 %v2034, %v2030
        %v2299 = vpack.c.b16 %v2035, %v2031
        %v2300 = vpack.c.b16 %v2040, %v2036
        %v2301 = vpack.c.b16 %v2041, %v2037
        %v2302 = vpack.c.b16 %v2042, %v2038
        %v2303 = vpack.c.b16 %v2043, %v2039
        %v2304 = vpack.c.b16 %v2048, %v2044
        %v2305 = vpack.c.b16 %v2049, %v2045
        %v2306 = vpack.c.b16 %v2050, %v2046
        %v2307 = vpack.c.b16 %v2051, %v2047
        %2564 = vmatprep.subr.bf16.mxu0 %v2053
        %2565 = vmatpush1.bf16.msra.mxu0 %v2052
        %2566 = vmatprep.subr.bf16.mxu0 %v2057
        %2567 = vmatpush1.bf16.msra.mxu0 %v2056
        %2568 = vmatprep.subr.bf16.mxu0 %v2061
        %2569 = vmatpush1.bf16.msra.mxu0 %v2060
        %2570 = vmatprep.subr.bf16.mxu0 %v2065
        %2571 = vmatpush1.bf16.msra.mxu0 %v2064
        %2572 = vmatprep.subr.bf16.mxu0 %v2069
        %2573 = vmatpush1.bf16.msra.mxu0 %v2068
        %2574 = vmatprep.subr.bf16.mxu0 %v2073
        %2575 = vmatpush1.bf16.msra.mxu0 %v2072
        %2576 = vmatprep.subr.bf16.mxu0 %v2077
        %2577 = vmatpush1.bf16.msra.mxu0 %v2076
        %2578 = vmatprep.subr.bf16.mxu0 %v2081
        %2579 = vmatpush1.bf16.msra.mxu0 %v2080
        %2580 = vmatprep.subr.bf16.mxu0 %v2085
        %2581 = vmatpush1.bf16.msra.mxu0 %v2084
        %2582 = vmatprep.subr.bf16.mxu0 %v2089
        %2583 = vmatpush1.bf16.msra.mxu0 %v2088
        %2584 = vmatprep.subr.bf16.mxu0 %v2093
        %2585 = vmatpush1.bf16.msra.mxu0 %v2092
        %2586 = vmatprep.subr.bf16.mxu0 %v2097
        %2587 = vmatpush1.bf16.msra.mxu0 %v2096
        %2588 = vmatprep.subr.bf16.mxu0 %v2101
        %2589 = vmatpush1.bf16.msra.mxu0 %v2100
        %2590 = vmatprep.subr.bf16.mxu0 %v2105
        %2591 = vmatpush1.bf16.msra.mxu0 %v2104
        %2592 = vmatprep.subr.bf16.mxu0 %v2109
        %2593 = vmatpush1.bf16.msra.mxu0 %v2108
        %2594 = vmatprep.subr.bf16.mxu0 %v2113
        %2595 = vmatpush1.bf16.msra.mxu0 %v2112
        %2596 = vmatprep.mubr.bf16.mxu0 %v1021
        %2597 = vmatmul.mubr.bf16.gmra.mrb[0].mxu0 %v1020
        %v2598 = vpop.f32.mrb[0].mxu0
        %v2599 = vadd.f32 0.0, %v2598
        %v2600 = vpop.f32.mrb[0].mxu0
        %v2601 = vadd.f32 0.0, %v2600
        %v2602 = vpop.f32.mrb[0].mxu0
        %v2603 = vpop.f32.mrb[0].mxu0
        %2604 = vdwg.mxu0
        %2605 = vmatprep.subr.bf16.mxu0 %v2117
        %2606 = vmatpush1.bf16.msra.mxu0 %v2116
        %2607 = vmatprep.subr.bf16.mxu0 %v2121
        %2608 = vmatpush1.bf16.msra.mxu0 %v2120
        %2609 = vmatprep.subr.bf16.mxu0 %v2125
        %2610 = vmatpush1.bf16.msra.mxu0 %v2124
        %2611 = vmatprep.subr.bf16.mxu0 %v2129
        %2612 = vmatpush1.bf16.msra.mxu0 %v2128
        %2613 = vmatprep.subr.bf16.mxu0 %v2133
        %2614 = vmatpush1.bf16.msra.mxu0 %v2132
        %2615 = vmatprep.subr.bf16.mxu0 %v2137
        %2616 = vmatpush1.bf16.msra.mxu0 %v2136
        %2617 = vmatprep.subr.bf16.mxu0 %v2141
        %2618 = vmatpush1.bf16.msra.mxu0 %v2140
        %2619 = vmatprep.subr.bf16.mxu0 %v2145
        %2620 = vmatpush1.bf16.msra.mxu0 %v2144
        %2621 = vmatprep.subr.bf16.mxu0 %v2149
        %2622 = vmatpush1.bf16.msra.mxu0 %v2148
        %2623 = vmatprep.subr.bf16.mxu0 %v2153
        %2624 = vmatpush1.bf16.msra.mxu0 %v2152
        %2625 = vmatprep.subr.bf16.mxu0 %v2157
        %2626 = vmatpush1.bf16.msra.mxu0 %v2156
        %2627 = vmatprep.subr.bf16.mxu0 %v2161
        %2628 = vmatpush1.bf16.msra.mxu0 %v2160
        %2629 = vmatprep.subr.bf16.mxu0 %v2165
        %2630 = vmatpush1.bf16.msra.mxu0 %v2164
        %2631 = vmatprep.subr.bf16.mxu0 %v2169
        %2632 = vmatpush1.bf16.msra.mxu0 %v2168
        %2633 = vmatprep.subr.bf16.mxu0 %v2173
        %2634 = vmatpush1.bf16.msra.mxu0 %v2172
        %2635 = vmatprep.subr.bf16.mxu0 %v2177
        %2636 = vmatpush1.bf16.msra.mxu0 %v2176
        %2637 = vmatprep.mubr.bf16.mxu0 %v1023
        %2638 = vmatmul.mubr.bf16.gmra.mrb[0].mxu0 %v1022
        %v2639 = vpop.f32.mrb[0].mxu0
        %v2640 = vadd.f32 %v2599, %v2639
        %v2641 = vpop.f32.mrb[0].mxu0
        %v2642 = vadd.f32 %v2601, %v2641
        %v2643 = vpop.f32.mrb[0].mxu0
        %v2644 = vpop.f32.mrb[0].mxu0
        %2645 = vdwg.mxu0
        %2646 = vmatprep.subr.bf16.mxu0 %v2181
        %2647 = vmatpush1.bf16.msra.mxu0 %v2180
        %2648 = vmatprep.subr.bf16.mxu0 %v2185
        %2649 = vmatpush1.bf16.msra.mxu0 %v2184
        %2650 = vmatprep.subr.bf16.mxu0 %v2189
        %2651 = vmatpush1.bf16.msra.mxu0 %v2188
        %2652 = vmatprep.subr.bf16.mxu0 %v2193
        %2653 = vmatpush1.bf16.msra.mxu0 %v2192
        %2654 = vmatprep.subr.bf16.mxu0 %v2197
        %2655 = vmatpush1.bf16.msra.mxu0 %v2196
        %2656 = vmatprep.subr.bf16.mxu0 %v2201
        %2657 = vmatpush1.bf16.msra.mxu0 %v2200
        %2658 = vmatprep.subr.bf16.mxu0 %v2205
        %2659 = vmatpush1.bf16.msra.mxu0 %v2204
        %2660 = vmatprep.subr.bf16.mxu0 %v2209
        %2661 = vmatpush1.bf16.msra.mxu0 %v2208
        %2662 = vmatprep.subr.bf16.mxu0 %v2213
        %2663 = vmatpush1.bf16.msra.mxu0 %v2212
        %2664 = vmatprep.subr.bf16.mxu0 %v2217
        %2665 = vmatpush1.bf16.msra.mxu0 %v2216
        %2666 = vmatprep.subr.bf16.mxu0 %v2221
        %2667 = vmatpush1.bf16.msra.mxu0 %v2220
        %2668 = vmatprep.subr.bf16.mxu0 %v2225
        %2669 = vmatpush1.bf16.msra.mxu0 %v2224
        %2670 = vmatprep.subr.bf16.mxu0 %v2229
        %2671 = vmatpush1.bf16.msra.mxu0 %v2228
        %2672 = vmatprep.subr.bf16.mxu0 %v2233
        %2673 = vmatpush1.bf16.msra.mxu0 %v2232
        %2674 = vmatprep.subr.bf16.mxu0 %v2237
        %2675 = vmatpush1.bf16.msra.mxu0 %v2236
        %2676 = vmatprep.subr.bf16.mxu0 %v2241
        %2677 = vmatpush1.bf16.msra.mxu0 %v2240
        %2678 = vmatprep.mubr.bf16.mxu0 %v1025
        %2679 = vmatmul.mubr.bf16.gmra.mrb[0].mxu0 %v1024
        %v2680 = vpop.f32.mrb[0].mxu0
        %v2681 = vadd.f32 %v2640, %v2680
        %v2682 = vpop.f32.mrb[0].mxu0
        %v2683 = vadd.f32 %v2642, %v2682
        %v2684 = vpop.f32.mrb[0].mxu0
        %v2685 = vpop.f32.mrb[0].mxu0
        %2686 = vdwg.mxu0
        %2687 = vmatprep.subr.bf16.mxu0 %v2245
        %2688 = vmatpush1.bf16.msra.mxu0 %v2244
        %2689 = vmatprep.subr.bf16.mxu0 %v2249
        %2690 = vmatpush1.bf16.msra.mxu0 %v2248
        %2691 = vmatprep.subr.bf16.mxu0 %v2253
        %2692 = vmatpush1.bf16.msra.mxu0 %v2252
        %2693 = vmatprep.subr.bf16.mxu0 %v2257
        %2694 = vmatpush1.bf16.msra.mxu0 %v2256
        %2695 = vmatprep.subr.bf16.mxu0 %v2261
        %2696 = vmatpush1.bf16.msra.mxu0 %v2260
        %2697 = vmatprep.subr.bf16.mxu0 %v2265
        %2698 = vmatpush1.bf16.msra.mxu0 %v2264
        %2699 = vmatprep.subr.bf16.mxu0 %v2269
        %2700 = vmatpush1.bf16.msra.mxu0 %v2268
        %2701 = vmatprep.subr.bf16.mxu0 %v2273
        %2702 = vmatpush1.bf16.msra.mxu0 %v2272
        %2703 = vmatprep.subr.bf16.mxu0 %v2277
        %2704 = vmatpush1.bf16.msra.mxu0 %v2276
        %2705 = vmatprep.subr.bf16.mxu0 %v2281
        %2706 = vmatpush1.bf16.msra.mxu0 %v2280
        %2707 = vmatprep.subr.bf16.mxu0 %v2285
        %2708 = vmatpush1.bf16.msra.mxu0 %v2284
        %2709 = vmatprep.subr.bf16.mxu0 %v2289
        %2710 = vmatpush1.bf16.msra.mxu0 %v2288
        %2711 = vmatprep.subr.bf16.mxu0 %v2293
        %2712 = vmatpush1.bf16.msra.mxu0 %v2292
        %2713 = vmatprep.subr.bf16.mxu0 %v2297
        %2714 = vmatpush1.bf16.msra.mxu0 %v2296
        %2715 = vmatprep.subr.bf16.mxu0 %v2301
        %2716 = vmatpush1.bf16.msra.mxu0 %v2300
        %2717 = vmatprep.subr.bf16.mxu0 %v2305
        %2718 = vmatpush1.bf16.msra.mxu0 %v2304
        %2719 = vmatprep.mubr.bf16.mxu0 %v1027
        %2720 = vmatmul.mubr.bf16.gmra.mrb[0].mxu0 %v1026
        %v2721 = vpop.f32.mrb[0].mxu0
        %v2722 = vadd.f32 %v2681, %v2721
        %v2723 = vpop.f32.mrb[0].mxu0
        %v2724 = vadd.f32 %v2683, %v2723
        %v2725 = vpop.f32.mrb[0].mxu0
        %v2726 = vpop.f32.mrb[0].mxu0
        %2727 = vdwg.mxu0
        %2728 = vmatprep.subr.bf16.mxu0 %v2055
        %2729 = vmatpush1.bf16.msra.mxu0 %v2054
        %2730 = vmatprep.subr.bf16.mxu0 %v2059
        %2731 = vmatpush1.bf16.msra.mxu0 %v2058
        %2732 = vmatprep.subr.bf16.mxu0 %v2063
        %2733 = vmatpush1.bf16.msra.mxu0 %v2062
        %2734 = vmatprep.subr.bf16.mxu0 %v2067
        %2735 = vmatpush1.bf16.msra.mxu0 %v2066
        %2736 = vmatprep.subr.bf16.mxu0 %v2071
        %2737 = vmatpush1.bf16.msra.mxu0 %v2070
        %2738 = vmatprep.subr.bf16.mxu0 %v2075
        %2739 = vmatpush1.bf16.msra.mxu0 %v2074
        %2740 = vmatprep.subr.bf16.mxu0 %v2079
        %2741 = vmatpush1.bf16.msra.mxu0 %v2078
        %2742 = vmatprep.subr.bf16.mxu0 %v2083
        %2743 = vmatpush1.bf16.msra.mxu0 %v2082
        %2744 = vmatprep.subr.bf16.mxu0 %v2087
        %2745 = vmatpush1.bf16.msra.mxu0 %v2086
        %2746 = vmatprep.subr.bf16.mxu0 %v2091
        %2747 = vmatpush1.bf16.msra.mxu0 %v2090
        %2748 = vmatprep.subr.bf16.mxu0 %v2095
        %2749 = vmatpush1.bf16.msra.mxu0 %v2094
        %2750 = vmatprep.subr.bf16.mxu0 %v2099
        %2751 = vmatpush1.bf16.msra.mxu0 %v2098
        %2752 = vmatprep.subr.bf16.mxu0 %v2103
        %2753 = vmatpush1.bf16.msra.mxu0 %v2102
        %2754 = vmatprep.subr.bf16.mxu0 %v2107
        %2755 = vmatpush1.bf16.msra.mxu0 %v2106
        %2756 = vmatprep.subr.bf16.mxu0 %v2111
        %2757 = vmatpush1.bf16.msra.mxu0 %v2110
        %2758 = vmatprep.subr.bf16.mxu0 %v2115
        %2759 = vmatpush1.bf16.msra.mxu0 %v2114
        %2760 = vmatprep.mubr.bf16.mxu0 %v1021
        %2761 = vmatmul.mubr.bf16.gmra.mrb[0].mxu0 %v1020
        %v2762 = vpop.f32.mrb[0].mxu0
        %v2763 = vadd.f32 0.0, %v2762
        %v2764 = vpop.f32.mrb[0].mxu0
        %v2765 = vadd.f32 0.0, %v2764
        %v2766 = vpop.f32.mrb[0].mxu0
        %v2767 = vpop.f32.mrb[0].mxu0
        %2768 = vdwg.mxu0
        %2769 = vmatprep.subr.bf16.mxu0 %v2119
        %2770 = vmatpush1.bf16.msra.mxu0 %v2118
        %2771 = vmatprep.subr.bf16.mxu0 %v2123
        %2772 = vmatpush1.bf16.msra.mxu0 %v2122
        %2773 = vmatprep.subr.bf16.mxu0 %v2127
        %2774 = vmatpush1.bf16.msra.mxu0 %v2126
        %2775 = vmatprep.subr.bf16.mxu0 %v2131
        %2776 = vmatpush1.bf16.msra.mxu0 %v2130
        %2777 = vmatprep.subr.bf16.mxu0 %v2135
        %2778 = vmatpush1.bf16.msra.mxu0 %v2134
        %2779 = vmatprep.subr.bf16.mxu0 %v2139
        %2780 = vmatpush1.bf16.msra.mxu0 %v2138
        %2781 = vmatprep.subr.bf16.mxu0 %v2143
        %2782 = vmatpush1.bf16.msra.mxu0 %v2142
        %2783 = vmatprep.subr.bf16.mxu0 %v2147
        %2784 = vmatpush1.bf16.msra.mxu0 %v2146
        %2785 = vmatprep.subr.bf16.mxu0 %v2151
        %2786 = vmatpush1.bf16.msra.mxu0 %v2150
        %2787 = vmatprep.subr.bf16.mxu0 %v2155
        %2788 = vmatpush1.bf16.msra.mxu0 %v2154
        %2789 = vmatprep.subr.bf16.mxu0 %v2159
        %2790 = vmatpush1.bf16.msra.mxu0 %v2158
        %2791 = vmatprep.subr.bf16.mxu0 %v2163
        %2792 = vmatpush1.bf16.msra.mxu0 %v2162
        %2793 = vmatprep.subr.bf16.mxu0 %v2167
        %2794 = vmatpush1.bf16.msra.mxu0 %v2166
        %2795 = vmatprep.subr.bf16.mxu0 %v2171
        %2796 = vmatpush1.bf16.msra.mxu0 %v2170
        %2797 = vmatprep.subr.bf16.mxu0 %v2175
        %2798 = vmatpush1.bf16.msra.mxu0 %v2174
        %2799 = vmatprep.subr.bf16.mxu0 %v2179
        %2800 = vmatpush1.bf16.msra.mxu0 %v2178
        %2801 = vmatprep.mubr.bf16.mxu0 %v1023
        %2802 = vmatmul.mubr.bf16.gmra.mrb[0].mxu0 %v1022
        %v2803 = vpop.f32.mrb[0].mxu0
        %v2804 = vadd.f32 %v2763, %v2803
        %v2805 = vpop.f32.mrb[0].mxu0
        %v2806 = vadd.f32 %v2765, %v2805
        %v2807 = vpop.f32.mrb[0].mxu0
        %v2808 = vpop.f32.mrb[0].mxu0
        %2809 = vdwg.mxu0
        %2810 = vmatprep.subr.bf16.mxu0 %v2183
        %2811 = vmatpush1.bf16.msra.mxu0 %v2182
        %2812 = vmatprep.subr.bf16.mxu0 %v2187
        %2813 = vmatpush1.bf16.msra.mxu0 %v2186
        %2814 = vmatprep.subr.bf16.mxu0 %v2191
        %2815 = vmatpush1.bf16.msra.mxu0 %v2190
        %2816 = vmatprep.subr.bf16.mxu0 %v2195
        %2817 = vmatpush1.bf16.msra.mxu0 %v2194
        %2818 = vmatprep.subr.bf16.mxu0 %v2199
        %2819 = vmatpush1.bf16.msra.mxu0 %v2198
        %2820 = vmatprep.subr.bf16.mxu0 %v2203
        %2821 = vmatpush1.bf16.msra.mxu0 %v2202
        %2822 = vmatprep.subr.bf16.mxu0 %v2207
        %2823 = vmatpush1.bf16.msra.mxu0 %v2206
        %2824 = vmatprep.subr.bf16.mxu0 %v2211
        %2825 = vmatpush1.bf16.msra.mxu0 %v2210
        %2826 = vmatprep.subr.bf16.mxu0 %v2215
        %2827 = vmatpush1.bf16.msra.mxu0 %v2214
        %2828 = vmatprep.subr.bf16.mxu0 %v2219
        %2829 = vmatpush1.bf16.msra.mxu0 %v2218
        %2830 = vmatprep.subr.bf16.mxu0 %v2223
        %2831 = vmatpush1.bf16.msra.mxu0 %v2222
        %2832 = vmatprep.subr.bf16.mxu0 %v2227
        %2833 = vmatpush1.bf16.msra.mxu0 %v2226
        %2834 = vmatprep.subr.bf16.mxu0 %v2231
        %2835 = vmatpush1.bf16.msra.mxu0 %v2230
        %2836 = vmatprep.subr.bf16.mxu0 %v2235
        %2837 = vmatpush1.bf16.msra.mxu0 %v2234
        %2838 = vmatprep.subr.bf16.mxu0 %v2239
        %2839 = vmatpush1.bf16.msra.mxu0 %v2238
        %2840 = vmatprep.subr.bf16.mxu0 %v2243
        %2841 = vmatpush1.bf16.msra.mxu0 %v2242
        %2842 = vmatprep.mubr.bf16.mxu0 %v1025
        %2843 = vmatmul.mubr.bf16.gmra.mrb[0].mxu0 %v1024
        %v2844 = vpop.f32.mrb[0].mxu0
        %v2845 = vadd.f32 %v2804, %v2844
        %v2846 = vpop.f32.mrb[0].mxu0
        %v2847 = vadd.f32 %v2806, %v2846
        %v2848 = vpop.f32.mrb[0].mxu0
        %v2849 = vpop.f32.mrb[0].mxu0
        %2850 = vdwg.mxu0
        %2851 = vmatprep.subr.bf16.mxu0 %v2247
        %2852 = vmatpush1.bf16.msra.mxu0 %v2246
        %2853 = vmatprep.subr.bf16.mxu0 %v2251
        %2854 = vmatpush1.bf16.msra.mxu0 %v2250
        %2855 = vmatprep.subr.bf16.mxu0 %v2255
        %2856 = vmatpush1.bf16.msra.mxu0 %v2254
        %2857 = vmatprep.subr.bf16.mxu0 %v2259
        %2858 = vmatpush1.bf16.msra.mxu0 %v2258
        %2859 = vmatprep.subr.bf16.mxu0 %v2263
        %2860 = vmatpush1.bf16.msra.mxu0 %v2262
        %2861 = vmatprep.subr.bf16.mxu0 %v2267
        %2862 = vmatpush1.bf16.msra.mxu0 %v2266
        %2863 = vmatprep.subr.bf16.mxu0 %v2271
        %2864 = vmatpush1.bf16.msra.mxu0 %v2270
        %2865 = vmatprep.subr.bf16.mxu0 %v2275
        %2866 = vmatpush1.bf16.msra.mxu0 %v2274
        %2867 = vmatprep.subr.bf16.mxu0 %v2279
        %2868 = vmatpush1.bf16.msra.mxu0 %v2278
        %2869 = vmatprep.subr.bf16.mxu0 %v2283
        %2870 = vmatpush1.bf16.msra.mxu0 %v2282
        %2871 = vmatprep.subr.bf16.mxu0 %v2287
        %2872 = vmatpush1.bf16.msra.mxu0 %v2286
        %2873 = vmatprep.subr.bf16.mxu0 %v2291
        %2874 = vmatpush1.bf16.msra.mxu0 %v2290
        %2875 = vmatprep.subr.bf16.mxu0 %v2295
        %2876 = vmatpush1.bf16.msra.mxu0 %v2294
        %2877 = vmatprep.subr.bf16.mxu0 %v2299
        %2878 = vmatpush1.bf16.msra.mxu0 %v2298
        %2879 = vmatprep.subr.bf16.mxu0 %v2303
        %2880 = vmatpush1.bf16.msra.mxu0 %v2302
        %2881 = vmatprep.subr.bf16.mxu0 %v2307
        %2882 = vmatpush1.bf16.msra.mxu0 %v2306
        %2883 = vmatprep.mubr.bf16.mxu0 %v1027
        %2884 = vmatmul.mubr.bf16.gmra.mrb[0].mxu0 %v1026
        %v2885 = vpop.f32.mrb[0].mxu0
        %v2886 = vadd.f32 %v2845, %v2885
        %v2887 = vpop.f32.mrb[0].mxu0
        %v2888 = vadd.f32 %v2847, %v2887
        %v2889 = vpop.f32.mrb[0].mxu0
        %v2890 = vpop.f32.mrb[0].mxu0
        %2891 = vdwg.mxu0
        %v2896 = vcombine.low %v2722, %v2724
        %v2897 = vcombine.low %v2886, %v2888
        %v2899 = vunpack.c.l.s4 1983009808
        %v2900 = vunpack.c.0.s8 %v2899
        %v2901 = vlaneseq
        %v2902 = vshrl.u32 %v2901, 7
        %v2903 = vsub.s32 %v2900, %v2902
        %v2904 = vrot.slane %v2896, %v2903
        %v2906 = vunpack.c.l.s4 1983009808
        %v2907 = vunpack.c.0.s8 %v2906
        %v2908 = vlaneseq
        %v2909 = vshrl.u32 %v2908, 7
        %v2910 = vsub.s32 %v2907, %v2909
        %v2911 = vrot.slane %v2897, %v2910
        %v2912 = vcombine.low %v2904, %v2911
        %2914 = vst [vmem:[%s318] sm:$0xff] %v2912
        %p2915 = scmp.lt.s32.totalorder %s19, 7
        %s2916 = scalar_select %p2915, %s19, 7
        %s2917 = smul.addr %s2916, 4
        %s2918 = smul.addr %s2917, 2
        %s2919 = scalar_lea.vmem %s5, %s2918
        // Predicated region
        $region45: #{nonlocal_net_forward.5} parent=39 // pred_check
          %p2920 = pneg %p167
        $region46: #{nonlocal_net_forward.5} parent=39 // pred_check_branch
          %2922 = sbr.rel (%p2920) target = $region48
        $region47: #{nonlocal_net_forward.5} parent=39 // pred_region
          _
        $region48: #{nonlocal_net_forward.5} parent=39 // pred_fallthru
          _
      $region40: #{nonlocal_net_forward.5} parent=5 // pred_fallthru
        _
      %p2923 = scmp.le.s32.totalorder 2, %s14
      // Predicated region
      $region49: #{nonlocal_net_forward.5} parent=5 // pred_check
        %p2924 = pneg %p2923
      $region50: #{nonlocal_net_forward.5} parent=5 // pred_check_branch
        %2926 = sbr.rel (%p2924) target = $region52
      $region51: #{nonlocal_net_forward.5} parent=5 // pred_region
        %s2927 = ssub.s32 %s14, 2
        // Predicated region
        $region53: #{nonlocal_net_forward.5} parent=51 // pred_check
          %p2928 = pneg %p173
        $region54: #{nonlocal_net_forward.5} parent=51 // pred_check_branch
          %2930 = sbr.rel (%p2928) target = $region56
        $region55: #{nonlocal_net_forward.5} parent=51 // pred_region
          %p2931 = scmp.lt.s32.totalorder %s20, 7
          %s2932 = scalar_select %p2931, %s20, 7
          %s2933 = smul.addr %s2932, 4
          %s2934 = smul.addr %s2933, 2
          %s2935 = scalar_lea.vmem %s5, %s2934
        $region56: #{nonlocal_net_forward.5} parent=51 // pred_fallthru
          _
      $region52: #{nonlocal_net_forward.5} parent=5 // pred_fallthru
        _
    $region6: #{nonlocal_net_forward.5} parent=1 // loop_footer
      %s18 = sadd.s32 1, %s14
    $region7: #{nonlocal_net_forward.5} parent=1 // loop_footer_branch
      %13 = sbr.rel target = $region3
    $region8: #{nonlocal_net_forward.5} parent=1 // loop_exit
      _
    %2936 = vsyncpa [#allocation3], 1
    %s2937 = scalar_lea.sflag [#allocation3], 1
    %2938 = vsyncpa %s2937, 1

</llo_original>
